<compile_context>
chip_gen: v7x
topology: tpu7x:2x2x1
jax: 0.10.0
libtpu: 0.0.40
codegen_flags: <defaults>
</compile_context>

<pallas_src>
import numpy as np
import jax
import jax.numpy as jnp
from jax.experimental import pallas as pl
from jax.experimental.pallas import tpu as pltpu

L_IN = 208                 # input sequence length
L_POOL1 = L_IN // 2        # 104 after MaxPool1d(2)
L_CONV4 = L_POOL1 - 2      # 102 after Conv1d(64, 1, 5, padding=1)
L_POOL2 = L_CONV4 // 2     # 51  after MaxPool1d(2)
LIN_IN, LIN_OUT = 51, 48
TB = 8                     # batch elements processed per grid step


# ---------------------------------------------------------------------------
# in-kernel helpers (pure 2-D value ops: slices, concats, one dot per conv)
# ---------------------------------------------------------------------------
def _shift_left_zero(x):
    """x[:, l] -> x[:, l + 1], zero-filled in the last column."""
    c = x.shape[0]
    return jnp.concatenate([x[:, 1:], jnp.zeros((c, 1), x.dtype)], axis=1)


def _im2col(x, ksize, pad=1):
    """(C, L) -> (ksize*C, L_out); row k*C + ci holds x_padded[ci, l + k]."""
    c, l_in = x.shape
    l_out = l_in + 2 * pad - ksize + 1
    taps = []
    for k in range(ksize):
        s = k - pad
        if s < 0:
            taps.append(jnp.concatenate(
                [jnp.zeros((c, -s), x.dtype), x[:, :l_out + s]], axis=1))
        elif s + l_out <= l_in:
            taps.append(x[:, s:s + l_out])
        else:
            taps.append(jnp.concatenate(
                [x[:, s:], jnp.zeros((c, s + l_out - l_in), x.dtype)], axis=1))
    return jnp.concatenate(taps, axis=0)


def _conv_relu(x, w_flat, bias, ksize):
    """Conv1d(padding=1, cross-correlation) + bias + ReLU as one MXU matmul."""
    a = _im2col(x, ksize, pad=1)
    y = jnp.dot(w_flat, a, preferred_element_type=jnp.float32) + bias
    return jnp.maximum(y, 0.0)


# ---------------------------------------------------------------------------
# kernel: one grid step == TB batch elements
# ---------------------------------------------------------------------------
def encoder_kernel(x_ref, w1_ref, b1_ref, w2_ref, b2_ref, w3_ref, b3_ref,
                   w4_ref, b4_ref, s1_ref, s2_ref, wl_ref, bl_ref, out_ref):
    tb = x_ref.shape[0]
    w1, b1 = w1_ref[...], b1_ref[...]
    w2, b2 = w2_ref[...], b2_ref[...]
    w3, b3 = w3_ref[...], b3_ref[...]
    w4blk, b4 = w4_ref[...], b4_ref[...]
    s1, s2 = s1_ref[...], s2_ref[...]
    wl, bl = wl_ref[...], bl_ref[...]

    # Conv1d(c1p,16,3,p=1)+ReLU, Conv1d(16,32,3,p=1)+ReLU, and the pairwise max
    # of MaxPool1d(2), per element; results stacked on the sublane axis.
    m_rows = []
    for b in range(tb):
        h = _conv_relu(x_ref[b], w1, b1, 3)                 # (16, 208)
        h = _conv_relu(h, w2, b2, 3)                        # (32, 208)
        m_rows.append(jnp.maximum(h, _shift_left_zero(h)))  # (32, 208)
    m_all = jnp.concatenate(m_rows, axis=0)                 # (tb*32, 208)
    # even-lane gather of MaxPool1d(2): ONE selector matmul for the block
    pooled1 = jnp.dot(m_all, s1, preferred_element_type=jnp.float32)  # (tb*32, 104)

    # Conv1d(32,64,3,p=1)+ReLU per element, plus the im2col rows for conv4.
    a4_rows = []
    for b in range(tb):
        h = _conv_relu(pooled1[b * 32:(b + 1) * 32, :], w3, b3, 3)    # (64, 104)
        a4_rows.append(_im2col(h, 5, pad=1))                          # (320, 102)
    a4_all = jnp.concatenate(a4_rows, axis=0)               # (tb*320, 102)

    # Conv1d(64,1,5,p=1)+ReLU for the whole block: one block-diagonal matmul.
    h4 = jnp.maximum(
        jnp.dot(w4blk, a4_all, preferred_element_type=jnp.float32) + b4,
        0.0)                                                # (tb, 102)

    # MaxPool1d(2) -> (tb, 51), then Linear(51, 48) -> lane-dense (tb, 48).
    m4 = jnp.maximum(h4, _shift_left_zero(h4))
    pooled2 = jnp.dot(m4, s2, preferred_element_type=jnp.float32)     # (tb, 51)
    out_ref[...] = (jnp.dot(pooled2, wl, preferred_element_type=jnp.float32)
                    + bl)
    # TODO(synk): Dropout layers are identity here (eval/inference semantics);
    # the module's one-shot debug print of y.shape is omitted.


# ---------------------------------------------------------------------------
# wrapper
# ---------------------------------------------------------------------------
def _pool_selector(l_in):
    """(l_in, l_in // 2) 0/1 matrix whose columns pick the even lanes."""
    l_out = l_in // 2
    rows = jnp.arange(l_in)[:, None]
    cols = jnp.arange(l_out)[None, :]
    return (rows == 2 * cols).astype(jnp.float32)


def _flat_conv_weight(w, c_in_pad=None):
    """(C_out, C_in, K) torch weight -> (C_out, K*C_in) im2col layout."""
    c_out, c_in, _ = w.shape
    if c_in_pad is not None and c_in_pad > c_in:
        w = jnp.pad(w, ((0, 0), (0, c_in_pad - c_in), (0, 0)))
    return jnp.transpose(w, (0, 2, 1)).reshape(c_out, -1)


def _full_spec(shape):
    nd = len(shape)
    return pl.BlockSpec(shape, lambda b, _nd=nd: (0,) * _nd)


@jax.jit
def get_latent(x_blf, params):
    """x_blf: (B, L, F) like the PyTorch input; returns the squeezed encoding."""
    B, L, F_ = x_blf.shape
    assert L == L_IN, "Linear(51, 48) forces a sequence length of 208"
    # torch .view(batch, features, L) is a *reshape*, not a transpose.
    x = x_blf.reshape(B, F_, L)

    c1p = max(8, ((F_ + 7) // 8) * 8)      # pad conv1 in-channels (aligned concats)
    bp = ((B + TB - 1) // TB) * TB         # pad batch to a multiple of TB
    x = jnp.pad(x, ((0, bp - B), (0, c1p - F_), (0, 0)))

    # kernel-friendly parameter layouts
    w1f = _flat_conv_weight(params["w1"], c1p)               # (16, 3*c1p)
    w2f = _flat_conv_weight(params["w2"])                    # (32, 48)
    w3f = _flat_conv_weight(params["w3"])                    # (64, 96)
    w4f = _flat_conv_weight(params["w4"])                    # (1, 320)
    w4blk = jnp.kron(jnp.eye(TB, dtype=jnp.float32), w4f)    # (TB, TB*320)
    b1 = params["b1"].reshape(-1, 1)
    b2 = params["b2"].reshape(-1, 1)
    b3 = params["b3"].reshape(-1, 1)
    b4 = params["b4"].reshape(1, 1)
    wlt = params["wl"].T                                     # (51, 48)
    bl = params["bl"].reshape(1, -1)                         # (1, 48)
    s1 = _pool_selector(L_IN)                                # (208, 104)
    s2 = _pool_selector(L_CONV4)                             # (102, 51)

    args = (x, w1f, b1, w2f, b2, w3f, b3, w4blk, b4, s1, s2, wlt, bl)
    in_specs = [pl.BlockSpec((TB, c1p, L), lambda b: (b, 0, 0))]
    in_specs += [_full_spec(a.shape) for a in args[1:]]

    out = pl.pallas_call(
        encoder_kernel,
        out_shape=jax.ShapeDtypeStruct((bp, LIN_OUT), jnp.float32),
        grid_spec=pltpu.PrefetchScalarGridSpec(
            num_scalar_prefetch=0,
            grid=(bp // TB,),
            in_specs=in_specs,
            out_specs=pl.BlockSpec((TB, LIN_OUT), lambda b: (b, 0)),
        ),
        compiler_params=pltpu.CompilerParams(
            dimension_semantics=("parallel",)),
    )(*args)
    return jnp.squeeze(out[:B])   # matches torch .squeeze(): (B, 48) for B > 1


def triplet_forward(a, p, n, params):
    return get_latent(a, params), get_latent(p, params), get_latent(n, params)


def init_params(key, in_size):
    ks = jax.random.split(key, 10)

    def u(k, shape, scale):
        return jax.random.uniform(k, shape, jnp.float32, -1.0, 1.0) * scale

    return dict(
        w1=u(ks[0], (16, in_size, 3), 0.2), b1=u(ks[1], (16,), 0.2),
        w2=u(ks[2], (32, 16, 3), 0.1),      b2=u(ks[3], (32,), 0.1),
        w3=u(ks[4], (64, 32, 3), 0.1),      b3=u(ks[5], (64,), 0.1),
        w4=u(ks[6], (1, 64, 5), 0.1),       b4=u(ks[7], (1,), 0.1),
        wl=u(ks[8], (LIN_OUT, LIN_IN), 0.1), bl=u(ks[9], (LIN_OUT,), 0.1),
    )


def ref_get_latent(inp, params):
    """Pure-JAX reference reproducing the PyTorch forward (eval mode)."""
    B, L, F_ = inp.shape
    x = inp.reshape(B, F_, L)
    dn = ("NCH", "OIH", "NCH")

    def conv(x, w, b, pad):
        y = jax.lax.conv_general_dilated(
            x, w, window_strides=(1,), padding=[(pad, pad)],
            dimension_numbers=dn, precision=jax.lax.Precision.HIGHEST)
        return y + b[None, :, None]

    def pool2(x):
        l = (x.shape[-1] // 2) * 2
        x = x[..., :l]
        return jnp.maximum(x[..., 0::2], x[..., 1::2])

    h = jax.nn.relu(conv(x, params["w1"], params["b1"], 1))
    h = jax.nn.relu(conv(h, params["w2"], params["b2"], 1))
    h = pool2(h)
    h = jax.nn.relu(conv(h, params["w3"], params["b3"], 1))
    h = jax.nn.relu(conv(h, params["w4"], params["b4"], 1))
    h = pool2(h)
    y = jnp.einsum("bcl,ol->bco", h, params["wl"],
                   precision=jax.lax.Precision.HIGHEST) + params["bl"]
    return jnp.squeeze(y)


if __name__ == "__main__":
    key = jax.random.PRNGKey(0)
    k_a, k_p, k_n, k_w, k_x = jax.random.split(key, 5)
    B, F_ = 2, 4
    a = jax.random.normal(k_a, (B, L_IN, F_), jnp.float32)
    p = jax.random.normal(k_p, (B, L_IN, F_), jnp.float32)
    n = jax.random.normal(k_n, (B, L_IN, F_), jnp.float32)
    params = init_params(k_w, in_size=F_)

    enc_a, enc_p, enc_n = triplet_forward(a, p, n, params)
    jax.block_until_ready((enc_a, enc_p, enc_n))

    for x, enc in ((a, enc_a), (p, enc_p), (n, enc_n)):
        assert enc.shape == (B, LIN_OUT)
        ref = ref_get_latent(x, params)
        np.testing.assert_allclose(np.asarray(enc), np.asarray(ref),
                                   rtol=5e-3, atol=5e-3)

    # exercise the multi-step grid + batch-padding path (B=9 -> 2 grid steps)
    xb = jax.random.normal(k_x, (9, L_IN, F_), jnp.float32)
    enc_b = jax.block_until_ready(get_latent(xb, params))
    assert enc_b.shape == (9, LIN_OUT)
    np.testing.assert_allclose(np.asarray(enc_b),
                               np.asarray(ref_get_latent(xb, params)),
                               rtol=5e-3, atol=5e-3)

    print("KERNEL_OK")
</pallas_src>

<mosaic_0001>
module attributes {stable_mosaic.version = 11 : i64} {
  func.func @encoder_kernel(%arg0: i32, %arg1: memref<8x8x208xf32, #tpu.memory_space<vmem>>, %arg2: memref<16x24xf32, #tpu.memory_space<vmem>>, %arg3: memref<16x1xf32, #tpu.memory_space<vmem>>, %arg4: memref<32x48xf32, #tpu.memory_space<vmem>>, %arg5: memref<32x1xf32, #tpu.memory_space<vmem>>, %arg6: memref<64x96xf32, #tpu.memory_space<vmem>>, %arg7: memref<64x1xf32, #tpu.memory_space<vmem>>, %arg8: memref<8x2560xf32, #tpu.memory_space<vmem>>, %arg9: memref<1x1xf32, #tpu.memory_space<vmem>>, %arg10: memref<208x104xf32, #tpu.memory_space<vmem>>, %arg11: memref<102x51xf32, #tpu.memory_space<vmem>>, %arg12: memref<51x48xf32, #tpu.memory_space<vmem>>, %arg13: memref<1x48xf32, #tpu.memory_space<vmem>>, %arg14: memref<8x48xf32, #tpu.memory_space<vmem>>) attributes {dimension_semantics = [#tpu.dimension_semantics<parallel>], iteration_bounds = array<i64: 1>, scalar_prefetch = 0 : i64, scratch_operands = 0 : i64, tpu.core_type = #tpu.core_type<tc>, window_params = [{transform_indices = @transform_0, window_bounds = array<i64: 8, 8, 208>}, {pipeline_mode = #tpu.pipeline_mode<synchronous>, transform_indices = @transform_1, window_bounds = array<i64: 16, 24>}, {pipeline_mode = #tpu.pipeline_mode<synchronous>, transform_indices = @transform_2, window_bounds = array<i64: 16, 1>}, {pipeline_mode = #tpu.pipeline_mode<synchronous>, transform_indices = @transform_3, window_bounds = array<i64: 32, 48>}, {pipeline_mode = #tpu.pipeline_mode<synchronous>, transform_indices = @transform_4, window_bounds = array<i64: 32, 1>}, {pipeline_mode = #tpu.pipeline_mode<synchronous>, transform_indices = @transform_5, window_bounds = array<i64: 64, 96>}, {pipeline_mode = #tpu.pipeline_mode<synchronous>, transform_indices = @transform_6, window_bounds = array<i64: 64, 1>}, {pipeline_mode = #tpu.pipeline_mode<synchronous>, transform_indices = @transform_7, window_bounds = array<i64: 8, 2560>}, {pipeline_mode = #tpu.pipeline_mode<synchronous>, transform_indices = @transform_8, window_bounds = array<i64: 1, 1>}, {pipeline_mode = #tpu.pipeline_mode<synchronous>, transform_indices = @transform_9, window_bounds = array<i64: 208, 104>}, {pipeline_mode = #tpu.pipeline_mode<synchronous>, transform_indices = @transform_10, window_bounds = array<i64: 102, 51>}, {pipeline_mode = #tpu.pipeline_mode<synchronous>, transform_indices = @transform_11, window_bounds = array<i64: 51, 48>}, {pipeline_mode = #tpu.pipeline_mode<synchronous>, transform_indices = @transform_12, window_bounds = array<i64: 1, 48>}, {transform_indices = @transform_13, window_bounds = array<i64: 8, 48>}]} {
    %c0 = arith.constant 0 : index
    %c0_0 = arith.constant 0 : index
    %0 = vector.load %arg2[%c0, %c0_0] : memref<16x24xf32, #tpu.memory_space<vmem>>, vector<16x24xf32>
    %c0_1 = arith.constant 0 : index
    %c0_2 = arith.constant 0 : index
    %1 = vector.load %arg3[%c0_1, %c0_2] : memref<16x1xf32, #tpu.memory_space<vmem>>, vector<16x1xf32>
    %c0_3 = arith.constant 0 : index
    %c0_4 = arith.constant 0 : index
    %2 = vector.load %arg4[%c0_3, %c0_4] : memref<32x48xf32, #tpu.memory_space<vmem>>, vector<32x48xf32>
    %c0_5 = arith.constant 0 : index
    %c0_6 = arith.constant 0 : index
    %3 = vector.load %arg5[%c0_5, %c0_6] : memref<32x1xf32, #tpu.memory_space<vmem>>, vector<32x1xf32>
    %c0_7 = arith.constant 0 : index
    %c0_8 = arith.constant 0 : index
    %4 = vector.load %arg6[%c0_7, %c0_8] : memref<64x96xf32, #tpu.memory_space<vmem>>, vector<64x96xf32>
    %c0_9 = arith.constant 0 : index
    %c0_10 = arith.constant 0 : index
    %5 = vector.load %arg7[%c0_9, %c0_10] : memref<64x1xf32, #tpu.memory_space<vmem>>, vector<64x1xf32>
    %c0_11 = arith.constant 0 : index
    %c0_12 = arith.constant 0 : index
    %6 = vector.load %arg8[%c0_11, %c0_12] : memref<8x2560xf32, #tpu.memory_space<vmem>>, vector<8x2560xf32>
    %c0_13 = arith.constant 0 : index
    %c0_14 = arith.constant 0 : index
    %7 = vector.load %arg9[%c0_13, %c0_14] : memref<1x1xf32, #tpu.memory_space<vmem>>, vector<1x1xf32>
    %c0_15 = arith.constant 0 : index
    %c0_16 = arith.constant 0 : index
    %8 = vector.load %arg10[%c0_15, %c0_16] : memref<208x104xf32, #tpu.memory_space<vmem>>, vector<208x104xf32>
    %c0_17 = arith.constant 0 : index
    %c0_18 = arith.constant 0 : index
    %9 = vector.load %arg11[%c0_17, %c0_18] : memref<102x51xf32, #tpu.memory_space<vmem>>, vector<102x51xf32>
    %c0_19 = arith.constant 0 : index
    %c0_20 = arith.constant 0 : index
    %10 = vector.load %arg12[%c0_19, %c0_20] : memref<51x48xf32, #tpu.memory_space<vmem>>, vector<51x48xf32>
    %c0_21 = arith.constant 0 : index
    %c0_22 = arith.constant 0 : index
    %11 = vector.load %arg13[%c0_21, %c0_22] : memref<1x48xf32, #tpu.memory_space<vmem>>, vector<1x48xf32>
    %c0_23 = arith.constant 0 : index
    %c0_24 = arith.constant 0 : index
    %c0_25 = arith.constant 0 : index
    %12 = vector.load %arg1[%c0_23, %c0_24, %c0_25] : memref<8x8x208xf32, #tpu.memory_space<vmem>>, vector<1x8x208xf32>
    %13 = vector.shape_cast %12 : vector<1x8x208xf32> to vector<8x208xf32>
    %cst = arith.constant 0.000000e+00 : f32
    %14 = vector.broadcast %cst : f32 to vector<8x1xf32>
    %15 = vector.extract_strided_slice %13 {offsets = [0, 0], sizes = [8, 207], strides = [1, 1]} : vector<8x208xf32> to vector<8x207xf32>
    %16 = tpu.concatenate %14, %15 in 1 : vector<8x1xf32>, vector<8x207xf32> -> vector<8x208xf32>
    %17 = vector.extract_strided_slice %13 {offsets = [0, 1], sizes = [8, 207], strides = [1, 1]} : vector<8x208xf32> to vector<8x207xf32>
    %cst_26 = arith.constant 0.000000e+00 : f32
    %18 = vector.broadcast %cst_26 : f32 to vector<8x1xf32>
    %19 = tpu.concatenate %17, %18 in 1 : vector<8x207xf32>, vector<8x1xf32> -> vector<8x208xf32>
    %20 = tpu.concatenate %16, %13, %19 in 0 : vector<8x208xf32>, vector<8x208xf32>, vector<8x208xf32> -> vector<24x208xf32>
    %cst_27 = arith.constant dense<0.000000e+00> : vector<16x208xf32>
    %21 = tpu.matmul %0, %20, %cst_27 {dimension_numbers = #tpu.dot_dimension_numbers<[1], [0], [0], [1], [0, 0, 1, 1], [], []>} : vector<16x24xf32>, vector<24x208xf32>, vector<16x208xf32> -> vector<16x208xf32>
    %22 = vector.broadcast %1 : vector<16x1xf32> to vector<16x208xf32>
    %23 = arith.addf %21, %22 : vector<16x208xf32>
    %cst_28 = arith.constant 0.000000e+00 : f32
    %24 = vector.broadcast %cst_28 : f32 to vector<16x208xf32>
    %25 = arith.maximumf %23, %24 : vector<16x208xf32>
    %cst_29 = arith.constant 0.000000e+00 : f32
    %26 = vector.broadcast %cst_29 : f32 to vector<16x1xf32>
    %27 = vector.extract_strided_slice %25 {offsets = [0, 0], sizes = [16, 207], strides = [1, 1]} : vector<16x208xf32> to vector<16x207xf32>
    %28 = tpu.concatenate %26, %27 in 1 : vector<16x1xf32>, vector<16x207xf32> -> vector<16x208xf32>
    %29 = vector.extract_strided_slice %25 {offsets = [0, 1], sizes = [16, 207], strides = [1, 1]} : vector<16x208xf32> to vector<16x207xf32>
    %cst_30 = arith.constant 0.000000e+00 : f32
    %30 = vector.broadcast %cst_30 : f32 to vector<16x1xf32>
    %31 = tpu.concatenate %29, %30 in 1 : vector<16x207xf32>, vector<16x1xf32> -> vector<16x208xf32>
    %32 = tpu.concatenate %28, %25, %31 in 0 : vector<16x208xf32>, vector<16x208xf32>, vector<16x208xf32> -> vector<48x208xf32>
    %cst_31 = arith.constant dense<0.000000e+00> : vector<32x208xf32>
    %33 = tpu.matmul %2, %32, %cst_31 {dimension_numbers = #tpu.dot_dimension_numbers<[1], [0], [0], [1], [0, 0, 1, 1], [], []>} : vector<32x48xf32>, vector<48x208xf32>, vector<32x208xf32> -> vector<32x208xf32>
    %34 = vector.broadcast %3 : vector<32x1xf32> to vector<32x208xf32>
    %35 = arith.addf %33, %34 : vector<32x208xf32>
    %cst_32 = arith.constant 0.000000e+00 : f32
    %36 = vector.broadcast %cst_32 : f32 to vector<32x208xf32>
    %37 = arith.maximumf %35, %36 : vector<32x208xf32>
    %38 = vector.extract_strided_slice %37 {offsets = [0, 1], sizes = [32, 207], strides = [1, 1]} : vector<32x208xf32> to vector<32x207xf32>
    %cst_33 = arith.constant 0.000000e+00 : f32
    %39 = vector.broadcast %cst_33 : f32 to vector<32x1xf32>
    %40 = tpu.concatenate %38, %39 in 1 : vector<32x207xf32>, vector<32x1xf32> -> vector<32x208xf32>
    %41 = arith.maximumf %37, %40 : vector<32x208xf32>
    %c1 = arith.constant 1 : index
    %c0_34 = arith.constant 0 : index
    %c0_35 = arith.constant 0 : index
    %42 = vector.load %arg1[%c1, %c0_34, %c0_35] : memref<8x8x208xf32, #tpu.memory_space<vmem>>, vector<1x8x208xf32>
    %43 = vector.shape_cast %42 : vector<1x8x208xf32> to vector<8x208xf32>
    %cst_36 = arith.constant 0.000000e+00 : f32
    %44 = vector.broadcast %cst_36 : f32 to vector<8x1xf32>
    %45 = vector.extract_strided_slice %43 {offsets = [0, 0], sizes = [8, 207], strides = [1, 1]} : vector<8x208xf32> to vector<8x207xf32>
    %46 = tpu.concatenate %44, %45 in 1 : vector<8x1xf32>, vector<8x207xf32> -> vector<8x208xf32>
    %47 = vector.extract_strided_slice %43 {offsets = [0, 1], sizes = [8, 207], strides = [1, 1]} : vector<8x208xf32> to vector<8x207xf32>
    %cst_37 = arith.constant 0.000000e+00 : f32
    %48 = vector.broadcast %cst_37 : f32 to vector<8x1xf32>
    %49 = tpu.concatenate %47, %48 in 1 : vector<8x207xf32>, vector<8x1xf32> -> vector<8x208xf32>
    %50 = tpu.concatenate %46, %43, %49 in 0 : vector<8x208xf32>, vector<8x208xf32>, vector<8x208xf32> -> vector<24x208xf32>
    %cst_38 = arith.constant dense<0.000000e+00> : vector<16x208xf32>
    %51 = tpu.matmul %0, %50, %cst_38 {dimension_numbers = #tpu.dot_dimension_numbers<[1], [0], [0], [1], [0, 0, 1, 1], [], []>} : vector<16x24xf32>, vector<24x208xf32>, vector<16x208xf32> -> vector<16x208xf32>
    %52 = vector.broadcast %1 : vector<16x1xf32> to vector<16x208xf32>
    %53 = arith.addf %51, %52 : vector<16x208xf32>
    %cst_39 = arith.constant 0.000000e+00 : f32
    %54 = vector.broadcast %cst_39 : f32 to vector<16x208xf32>
    %55 = arith.maximumf %53, %54 : vector<16x208xf32>
    %cst_40 = arith.constant 0.000000e+00 : f32
    %56 = vector.broadcast %cst_40 : f32 to vector<16x1xf32>
    %57 = vector.extract_strided_slice %55 {offsets = [0, 0], sizes = [16, 207], strides = [1, 1]} : vector<16x208xf32> to vector<16x207xf32>
    %58 = tpu.concatenate %56, %57 in 1 : vector<16x1xf32>, vector<16x207xf32> -> vector<16x208xf32>
    %59 = vector.extract_strided_slice %55 {offsets = [0, 1], sizes = [16, 207], strides = [1, 1]} : vector<16x208xf32> to vector<16x207xf32>
    %cst_41 = arith.constant 0.000000e+00 : f32
    %60 = vector.broadcast %cst_41 : f32 to vector<16x1xf32>
    %61 = tpu.concatenate %59, %60 in 1 : vector<16x207xf32>, vector<16x1xf32> -> vector<16x208xf32>
    %62 = tpu.concatenate %58, %55, %61 in 0 : vector<16x208xf32>, vector<16x208xf32>, vector<16x208xf32> -> vector<48x208xf32>
    %cst_42 = arith.constant dense<0.000000e+00> : vector<32x208xf32>
    %63 = tpu.matmul %2, %62, %cst_42 {dimension_numbers = #tpu.dot_dimension_numbers<[1], [0], [0], [1], [0, 0, 1, 1], [], []>} : vector<32x48xf32>, vector<48x208xf32>, vector<32x208xf32> -> vector<32x208xf32>
    %64 = vector.broadcast %3 : vector<32x1xf32> to vector<32x208xf32>
    %65 = arith.addf %63, %64 : vector<32x208xf32>
    %cst_43 = arith.constant 0.000000e+00 : f32
    %66 = vector.broadcast %cst_43 : f32 to vector<32x208xf32>
    %67 = arith.maximumf %65, %66 : vector<32x208xf32>
    %68 = vector.extract_strided_slice %67 {offsets = [0, 1], sizes = [32, 207], strides = [1, 1]} : vector<32x208xf32> to vector<32x207xf32>
    %cst_44 = arith.constant 0.000000e+00 : f32
    %69 = vector.broadcast %cst_44 : f32 to vector<32x1xf32>
    %70 = tpu.concatenate %68, %69 in 1 : vector<32x207xf32>, vector<32x1xf32> -> vector<32x208xf32>
    %71 = arith.maximumf %67, %70 : vector<32x208xf32>
    %c2 = arith.constant 2 : index
    %c0_45 = arith.constant 0 : index
    %c0_46 = arith.constant 0 : index
    %72 = vector.load %arg1[%c2, %c0_45, %c0_46] : memref<8x8x208xf32, #tpu.memory_space<vmem>>, vector<1x8x208xf32>
    %73 = vector.shape_cast %72 : vector<1x8x208xf32> to vector<8x208xf32>
    %cst_47 = arith.constant 0.000000e+00 : f32
    %74 = vector.broadcast %cst_47 : f32 to vector<8x1xf32>
    %75 = vector.extract_strided_slice %73 {offsets = [0, 0], sizes = [8, 207], strides = [1, 1]} : vector<8x208xf32> to vector<8x207xf32>
    %76 = tpu.concatenate %74, %75 in 1 : vector<8x1xf32>, vector<8x207xf32> -> vector<8x208xf32>
    %77 = vector.extract_strided_slice %73 {offsets = [0, 1], sizes = [8, 207], strides = [1, 1]} : vector<8x208xf32> to vector<8x207xf32>
    %cst_48 = arith.constant 0.000000e+00 : f32
    %78 = vector.broadcast %cst_48 : f32 to vector<8x1xf32>
    %79 = tpu.concatenate %77, %78 in 1 : vector<8x207xf32>, vector<8x1xf32> -> vector<8x208xf32>
    %80 = tpu.concatenate %76, %73, %79 in 0 : vector<8x208xf32>, vector<8x208xf32>, vector<8x208xf32> -> vector<24x208xf32>
    %cst_49 = arith.constant dense<0.000000e+00> : vector<16x208xf32>
    %81 = tpu.matmul %0, %80, %cst_49 {dimension_numbers = #tpu.dot_dimension_numbers<[1], [0], [0], [1], [0, 0, 1, 1], [], []>} : vector<16x24xf32>, vector<24x208xf32>, vector<16x208xf32> -> vector<16x208xf32>
    %82 = vector.broadcast %1 : vector<16x1xf32> to vector<16x208xf32>
    %83 = arith.addf %81, %82 : vector<16x208xf32>
    %cst_50 = arith.constant 0.000000e+00 : f32
    %84 = vector.broadcast %cst_50 : f32 to vector<16x208xf32>
    %85 = arith.maximumf %83, %84 : vector<16x208xf32>
    %cst_51 = arith.constant 0.000000e+00 : f32
    %86 = vector.broadcast %cst_51 : f32 to vector<16x1xf32>
    %87 = vector.extract_strided_slice %85 {offsets = [0, 0], sizes = [16, 207], strides = [1, 1]} : vector<16x208xf32> to vector<16x207xf32>
    %88 = tpu.concatenate %86, %87 in 1 : vector<16x1xf32>, vector<16x207xf32> -> vector<16x208xf32>
    %89 = vector.extract_strided_slice %85 {offsets = [0, 1], sizes = [16, 207], strides = [1, 1]} : vector<16x208xf32> to vector<16x207xf32>
    %cst_52 = arith.constant 0.000000e+00 : f32
    %90 = vector.broadcast %cst_52 : f32 to vector<16x1xf32>
    %91 = tpu.concatenate %89, %90 in 1 : vector<16x207xf32>, vector<16x1xf32> -> vector<16x208xf32>
    %92 = tpu.concatenate %88, %85, %91 in 0 : vector<16x208xf32>, vector<16x208xf32>, vector<16x208xf32> -> vector<48x208xf32>
    %cst_53 = arith.constant dense<0.000000e+00> : vector<32x208xf32>
    %93 = tpu.matmul %2, %92, %cst_53 {dimension_numbers = #tpu.dot_dimension_numbers<[1], [0], [0], [1], [0, 0, 1, 1], [], []>} : vector<32x48xf32>, vector<48x208xf32>, vector<32x208xf32> -> vector<32x208xf32>
    %94 = vector.broadcast %3 : vector<32x1xf32> to vector<32x208xf32>
    %95 = arith.addf %93, %94 : vector<32x208xf32>
    %cst_54 = arith.constant 0.000000e+00 : f32
    %96 = vector.broadcast %cst_54 : f32 to vector<32x208xf32>
    %97 = arith.maximumf %95, %96 : vector<32x208xf32>
    %98 = vector.extract_strided_slice %97 {offsets = [0, 1], sizes = [32, 207], strides = [1, 1]} : vector<32x208xf32> to vector<32x207xf32>
    %cst_55 = arith.constant 0.000000e+00 : f32
    %99 = vector.broadcast %cst_55 : f32 to vector<32x1xf32>
    %100 = tpu.concatenate %98, %99 in 1 : vector<32x207xf32>, vector<32x1xf32> -> vector<32x208xf32>
    %101 = arith.maximumf %97, %100 : vector<32x208xf32>
    %c3 = arith.constant 3 : index
    %c0_56 = arith.constant 0 : index
    %c0_57 = arith.constant 0 : index
    %102 = vector.load %arg1[%c3, %c0_56, %c0_57] : memref<8x8x208xf32, #tpu.memory_space<vmem>>, vector<1x8x208xf32>
    %103 = vector.shape_cast %102 : vector<1x8x208xf32> to vector<8x208xf32>
    %cst_58 = arith.constant 0.000000e+00 : f32
    %104 = vector.broadcast %cst_58 : f32 to vector<8x1xf32>
    %105 = vector.extract_strided_slice %103 {offsets = [0, 0], sizes = [8, 207], strides = [1, 1]} : vector<8x208xf32> to vector<8x207xf32>
    %106 = tpu.concatenate %104, %105 in 1 : vector<8x1xf32>, vector<8x207xf32> -> vector<8x208xf32>
    %107 = vector.extract_strided_slice %103 {offsets = [0, 1], sizes = [8, 207], strides = [1, 1]} : vector<8x208xf32> to vector<8x207xf32>
    %cst_59 = arith.constant 0.000000e+00 : f32
    %108 = vector.broadcast %cst_59 : f32 to vector<8x1xf32>
    %109 = tpu.concatenate %107, %108 in 1 : vector<8x207xf32>, vector<8x1xf32> -> vector<8x208xf32>
    %110 = tpu.concatenate %106, %103, %109 in 0 : vector<8x208xf32>, vector<8x208xf32>, vector<8x208xf32> -> vector<24x208xf32>
    %cst_60 = arith.constant dense<0.000000e+00> : vector<16x208xf32>
    %111 = tpu.matmul %0, %110, %cst_60 {dimension_numbers = #tpu.dot_dimension_numbers<[1], [0], [0], [1], [0, 0, 1, 1], [], []>} : vector<16x24xf32>, vector<24x208xf32>, vector<16x208xf32> -> vector<16x208xf32>
    %112 = vector.broadcast %1 : vector<16x1xf32> to vector<16x208xf32>
    %113 = arith.addf %111, %112 : vector<16x208xf32>
    %cst_61 = arith.constant 0.000000e+00 : f32
    %114 = vector.broadcast %cst_61 : f32 to vector<16x208xf32>
    %115 = arith.maximumf %113, %114 : vector<16x208xf32>
    %cst_62 = arith.constant 0.000000e+00 : f32
    %116 = vector.broadcast %cst_62 : f32 to vector<16x1xf32>
    %117 = vector.extract_strided_slice %115 {offsets = [0, 0], sizes = [16, 207], strides = [1, 1]} : vector<16x208xf32> to vector<16x207xf32>
    %118 = tpu.concatenate %116, %117 in 1 : vector<16x1xf32>, vector<16x207xf32> -> vector<16x208xf32>
    %119 = vector.extract_strided_slice %115 {offsets = [0, 1], sizes = [16, 207], strides = [1, 1]} : vector<16x208xf32> to vector<16x207xf32>
    %cst_63 = arith.constant 0.000000e+00 : f32
    %120 = vector.broadcast %cst_63 : f32 to vector<16x1xf32>
    %121 = tpu.concatenate %119, %120 in 1 : vector<16x207xf32>, vector<16x1xf32> -> vector<16x208xf32>
    %122 = tpu.concatenate %118, %115, %121 in 0 : vector<16x208xf32>, vector<16x208xf32>, vector<16x208xf32> -> vector<48x208xf32>
    %cst_64 = arith.constant dense<0.000000e+00> : vector<32x208xf32>
    %123 = tpu.matmul %2, %122, %cst_64 {dimension_numbers = #tpu.dot_dimension_numbers<[1], [0], [0], [1], [0, 0, 1, 1], [], []>} : vector<32x48xf32>, vector<48x208xf32>, vector<32x208xf32> -> vector<32x208xf32>
    %124 = vector.broadcast %3 : vector<32x1xf32> to vector<32x208xf32>
    %125 = arith.addf %123, %124 : vector<32x208xf32>
    %cst_65 = arith.constant 0.000000e+00 : f32
    %126 = vector.broadcast %cst_65 : f32 to vector<32x208xf32>
    %127 = arith.maximumf %125, %126 : vector<32x208xf32>
    %128 = vector.extract_strided_slice %127 {offsets = [0, 1], sizes = [32, 207], strides = [1, 1]} : vector<32x208xf32> to vector<32x207xf32>
    %cst_66 = arith.constant 0.000000e+00 : f32
    %129 = vector.broadcast %cst_66 : f32 to vector<32x1xf32>
    %130 = tpu.concatenate %128, %129 in 1 : vector<32x207xf32>, vector<32x1xf32> -> vector<32x208xf32>
    %131 = arith.maximumf %127, %130 : vector<32x208xf32>
    %c4 = arith.constant 4 : index
    %c0_67 = arith.constant 0 : index
    %c0_68 = arith.constant 0 : index
    %132 = vector.load %arg1[%c4, %c0_67, %c0_68] : memref<8x8x208xf32, #tpu.memory_space<vmem>>, vector<1x8x208xf32>
    %133 = vector.shape_cast %132 : vector<1x8x208xf32> to vector<8x208xf32>
    %cst_69 = arith.constant 0.000000e+00 : f32
    %134 = vector.broadcast %cst_69 : f32 to vector<8x1xf32>
    %135 = vector.extract_strided_slice %133 {offsets = [0, 0], sizes = [8, 207], strides = [1, 1]} : vector<8x208xf32> to vector<8x207xf32>
    %136 = tpu.concatenate %134, %135 in 1 : vector<8x1xf32>, vector<8x207xf32> -> vector<8x208xf32>
    %137 = vector.extract_strided_slice %133 {offsets = [0, 1], sizes = [8, 207], strides = [1, 1]} : vector<8x208xf32> to vector<8x207xf32>
    %cst_70 = arith.constant 0.000000e+00 : f32
    %138 = vector.broadcast %cst_70 : f32 to vector<8x1xf32>
    %139 = tpu.concatenate %137, %138 in 1 : vector<8x207xf32>, vector<8x1xf32> -> vector<8x208xf32>
    %140 = tpu.concatenate %136, %133, %139 in 0 : vector<8x208xf32>, vector<8x208xf32>, vector<8x208xf32> -> vector<24x208xf32>
    %cst_71 = arith.constant dense<0.000000e+00> : vector<16x208xf32>
    %141 = tpu.matmul %0, %140, %cst_71 {dimension_numbers = #tpu.dot_dimension_numbers<[1], [0], [0], [1], [0, 0, 1, 1], [], []>} : vector<16x24xf32>, vector<24x208xf32>, vector<16x208xf32> -> vector<16x208xf32>
    %142 = vector.broadcast %1 : vector<16x1xf32> to vector<16x208xf32>
    %143 = arith.addf %141, %142 : vector<16x208xf32>
    %cst_72 = arith.constant 0.000000e+00 : f32
    %144 = vector.broadcast %cst_72 : f32 to vector<16x208xf32>
    %145 = arith.maximumf %143, %144 : vector<16x208xf32>
    %cst_73 = arith.constant 0.000000e+00 : f32
    %146 = vector.broadcast %cst_73 : f32 to vector<16x1xf32>
    %147 = vector.extract_strided_slice %145 {offsets = [0, 0], sizes = [16, 207], strides = [1, 1]} : vector<16x208xf32> to vector<16x207xf32>
    %148 = tpu.concatenate %146, %147 in 1 : vector<16x1xf32>, vector<16x207xf32> -> vector<16x208xf32>
    %149 = vector.extract_strided_slice %145 {offsets = [0, 1], sizes = [16, 207], strides = [1, 1]} : vector<16x208xf32> to vector<16x207xf32>
    %cst_74 = arith.constant 0.000000e+00 : f32
    %150 = vector.broadcast %cst_74 : f32 to vector<16x1xf32>
    %151 = tpu.concatenate %149, %150 in 1 : vector<16x207xf32>, vector<16x1xf32> -> vector<16x208xf32>
    %152 = tpu.concatenate %148, %145, %151 in 0 : vector<16x208xf32>, vector<16x208xf32>, vector<16x208xf32> -> vector<48x208xf32>
    %cst_75 = arith.constant dense<0.000000e+00> : vector<32x208xf32>
    %153 = tpu.matmul %2, %152, %cst_75 {dimension_numbers = #tpu.dot_dimension_numbers<[1], [0], [0], [1], [0, 0, 1, 1], [], []>} : vector<32x48xf32>, vector<48x208xf32>, vector<32x208xf32> -> vector<32x208xf32>
    %154 = vector.broadcast %3 : vector<32x1xf32> to vector<32x208xf32>
    %155 = arith.addf %153, %154 : vector<32x208xf32>
    %cst_76 = arith.constant 0.000000e+00 : f32
    %156 = vector.broadcast %cst_76 : f32 to vector<32x208xf32>
    %157 = arith.maximumf %155, %156 : vector<32x208xf32>
    %158 = vector.extract_strided_slice %157 {offsets = [0, 1], sizes = [32, 207], strides = [1, 1]} : vector<32x208xf32> to vector<32x207xf32>
    %cst_77 = arith.constant 0.000000e+00 : f32
    %159 = vector.broadcast %cst_77 : f32 to vector<32x1xf32>
    %160 = tpu.concatenate %158, %159 in 1 : vector<32x207xf32>, vector<32x1xf32> -> vector<32x208xf32>
    %161 = arith.maximumf %157, %160 : vector<32x208xf32>
    %c5 = arith.constant 5 : index
    %c0_78 = arith.constant 0 : index
    %c0_79 = arith.constant 0 : index
    %162 = vector.load %arg1[%c5, %c0_78, %c0_79] : memref<8x8x208xf32, #tpu.memory_space<vmem>>, vector<1x8x208xf32>
    %163 = vector.shape_cast %162 : vector<1x8x208xf32> to vector<8x208xf32>
    %cst_80 = arith.constant 0.000000e+00 : f32
    %164 = vector.broadcast %cst_80 : f32 to vector<8x1xf32>
    %165 = vector.extract_strided_slice %163 {offsets = [0, 0], sizes = [8, 207], strides = [1, 1]} : vector<8x208xf32> to vector<8x207xf32>
    %166 = tpu.concatenate %164, %165 in 1 : vector<8x1xf32>, vector<8x207xf32> -> vector<8x208xf32>
    %167 = vector.extract_strided_slice %163 {offsets = [0, 1], sizes = [8, 207], strides = [1, 1]} : vector<8x208xf32> to vector<8x207xf32>
    %cst_81 = arith.constant 0.000000e+00 : f32
    %168 = vector.broadcast %cst_81 : f32 to vector<8x1xf32>
    %169 = tpu.concatenate %167, %168 in 1 : vector<8x207xf32>, vector<8x1xf32> -> vector<8x208xf32>
    %170 = tpu.concatenate %166, %163, %169 in 0 : vector<8x208xf32>, vector<8x208xf32>, vector<8x208xf32> -> vector<24x208xf32>
    %cst_82 = arith.constant dense<0.000000e+00> : vector<16x208xf32>
    %171 = tpu.matmul %0, %170, %cst_82 {dimension_numbers = #tpu.dot_dimension_numbers<[1], [0], [0], [1], [0, 0, 1, 1], [], []>} : vector<16x24xf32>, vector<24x208xf32>, vector<16x208xf32> -> vector<16x208xf32>
    %172 = vector.broadcast %1 : vector<16x1xf32> to vector<16x208xf32>
    %173 = arith.addf %171, %172 : vector<16x208xf32>
    %cst_83 = arith.constant 0.000000e+00 : f32
    %174 = vector.broadcast %cst_83 : f32 to vector<16x208xf32>
    %175 = arith.maximumf %173, %174 : vector<16x208xf32>
    %cst_84 = arith.constant 0.000000e+00 : f32
    %176 = vector.broadcast %cst_84 : f32 to vector<16x1xf32>
    %177 = vector.extract_strided_slice %175 {offsets = [0, 0], sizes = [16, 207], strides = [1, 1]} : vector<16x208xf32> to vector<16x207xf32>
    %178 = tpu.concatenate %176, %177 in 1 : vector<16x1xf32>, vector<16x207xf32> -> vector<16x208xf32>
    %179 = vector.extract_strided_slice %175 {offsets = [0, 1], sizes = [16, 207], strides = [1, 1]} : vector<16x208xf32> to vector<16x207xf32>
    %cst_85 = arith.constant 0.000000e+00 : f32
    %180 = vector.broadcast %cst_85 : f32 to vector<16x1xf32>
    %181 = tpu.concatenate %179, %180 in 1 : vector<16x207xf32>, vector<16x1xf32> -> vector<16x208xf32>
    %182 = tpu.concatenate %178, %175, %181 in 0 : vector<16x208xf32>, vector<16x208xf32>, vector<16x208xf32> -> vector<48x208xf32>
    %cst_86 = arith.constant dense<0.000000e+00> : vector<32x208xf32>
    %183 = tpu.matmul %2, %182, %cst_86 {dimension_numbers = #tpu.dot_dimension_numbers<[1], [0], [0], [1], [0, 0, 1, 1], [], []>} : vector<32x48xf32>, vector<48x208xf32>, vector<32x208xf32> -> vector<32x208xf32>
    %184 = vector.broadcast %3 : vector<32x1xf32> to vector<32x208xf32>
    %185 = arith.addf %183, %184 : vector<32x208xf32>
    %cst_87 = arith.constant 0.000000e+00 : f32
    %186 = vector.broadcast %cst_87 : f32 to vector<32x208xf32>
    %187 = arith.maximumf %185, %186 : vector<32x208xf32>
    %188 = vector.extract_strided_slice %187 {offsets = [0, 1], sizes = [32, 207], strides = [1, 1]} : vector<32x208xf32> to vector<32x207xf32>
    %cst_88 = arith.constant 0.000000e+00 : f32
    %189 = vector.broadcast %cst_88 : f32 to vector<32x1xf32>
    %190 = tpu.concatenate %188, %189 in 1 : vector<32x207xf32>, vector<32x1xf32> -> vector<32x208xf32>
    %191 = arith.maximumf %187, %190 : vector<32x208xf32>
    %c6 = arith.constant 6 : index
    %c0_89 = arith.constant 0 : index
    %c0_90 = arith.constant 0 : index
    %192 = vector.load %arg1[%c6, %c0_89, %c0_90] : memref<8x8x208xf32, #tpu.memory_space<vmem>>, vector<1x8x208xf32>
    %193 = vector.shape_cast %192 : vector<1x8x208xf32> to vector<8x208xf32>
    %cst_91 = arith.constant 0.000000e+00 : f32
    %194 = vector.broadcast %cst_91 : f32 to vector<8x1xf32>
    %195 = vector.extract_strided_slice %193 {offsets = [0, 0], sizes = [8, 207], strides = [1, 1]} : vector<8x208xf32> to vector<8x207xf32>
    %196 = tpu.concatenate %194, %195 in 1 : vector<8x1xf32>, vector<8x207xf32> -> vector<8x208xf32>
    %197 = vector.extract_strided_slice %193 {offsets = [0, 1], sizes = [8, 207], strides = [1, 1]} : vector<8x208xf32> to vector<8x207xf32>
    %cst_92 = arith.constant 0.000000e+00 : f32
    %198 = vector.broadcast %cst_92 : f32 to vector<8x1xf32>
    %199 = tpu.concatenate %197, %198 in 1 : vector<8x207xf32>, vector<8x1xf32> -> vector<8x208xf32>
    %200 = tpu.concatenate %196, %193, %199 in 0 : vector<8x208xf32>, vector<8x208xf32>, vector<8x208xf32> -> vector<24x208xf32>
    %cst_93 = arith.constant dense<0.000000e+00> : vector<16x208xf32>
    %201 = tpu.matmul %0, %200, %cst_93 {dimension_numbers = #tpu.dot_dimension_numbers<[1], [0], [0], [1], [0, 0, 1, 1], [], []>} : vector<16x24xf32>, vector<24x208xf32>, vector<16x208xf32> -> vector<16x208xf32>
    %202 = vector.broadcast %1 : vector<16x1xf32> to vector<16x208xf32>
    %203 = arith.addf %201, %202 : vector<16x208xf32>
    %cst_94 = arith.constant 0.000000e+00 : f32
    %204 = vector.broadcast %cst_94 : f32 to vector<16x208xf32>
    %205 = arith.maximumf %203, %204 : vector<16x208xf32>
    %cst_95 = arith.constant 0.000000e+00 : f32
    %206 = vector.broadcast %cst_95 : f32 to vector<16x1xf32>
    %207 = vector.extract_strided_slice %205 {offsets = [0, 0], sizes = [16, 207], strides = [1, 1]} : vector<16x208xf32> to vector<16x207xf32>
    %208 = tpu.concatenate %206, %207 in 1 : vector<16x1xf32>, vector<16x207xf32> -> vector<16x208xf32>
    %209 = vector.extract_strided_slice %205 {offsets = [0, 1], sizes = [16, 207], strides = [1, 1]} : vector<16x208xf32> to vector<16x207xf32>
    %cst_96 = arith.constant 0.000000e+00 : f32
    %210 = vector.broadcast %cst_96 : f32 to vector<16x1xf32>
    %211 = tpu.concatenate %209, %210 in 1 : vector<16x207xf32>, vector<16x1xf32> -> vector<16x208xf32>
    %212 = tpu.concatenate %208, %205, %211 in 0 : vector<16x208xf32>, vector<16x208xf32>, vector<16x208xf32> -> vector<48x208xf32>
    %cst_97 = arith.constant dense<0.000000e+00> : vector<32x208xf32>
    %213 = tpu.matmul %2, %212, %cst_97 {dimension_numbers = #tpu.dot_dimension_numbers<[1], [0], [0], [1], [0, 0, 1, 1], [], []>} : vector<32x48xf32>, vector<48x208xf32>, vector<32x208xf32> -> vector<32x208xf32>
    %214 = vector.broadcast %3 : vector<32x1xf32> to vector<32x208xf32>
    %215 = arith.addf %213, %214 : vector<32x208xf32>
    %cst_98 = arith.constant 0.000000e+00 : f32
    %216 = vector.broadcast %cst_98 : f32 to vector<32x208xf32>
    %217 = arith.maximumf %215, %216 : vector<32x208xf32>
    %218 = vector.extract_strided_slice %217 {offsets = [0, 1], sizes = [32, 207], strides = [1, 1]} : vector<32x208xf32> to vector<32x207xf32>
    %cst_99 = arith.constant 0.000000e+00 : f32
    %219 = vector.broadcast %cst_99 : f32 to vector<32x1xf32>
    %220 = tpu.concatenate %218, %219 in 1 : vector<32x207xf32>, vector<32x1xf32> -> vector<32x208xf32>
    %221 = arith.maximumf %217, %220 : vector<32x208xf32>
    %c7 = arith.constant 7 : index
    %c0_100 = arith.constant 0 : index
    %c0_101 = arith.constant 0 : index
    %222 = vector.load %arg1[%c7, %c0_100, %c0_101] : memref<8x8x208xf32, #tpu.memory_space<vmem>>, vector<1x8x208xf32>
    %223 = vector.shape_cast %222 : vector<1x8x208xf32> to vector<8x208xf32>
    %cst_102 = arith.constant 0.000000e+00 : f32
    %224 = vector.broadcast %cst_102 : f32 to vector<8x1xf32>
    %225 = vector.extract_strided_slice %223 {offsets = [0, 0], sizes = [8, 207], strides = [1, 1]} : vector<8x208xf32> to vector<8x207xf32>
    %226 = tpu.concatenate %224, %225 in 1 : vector<8x1xf32>, vector<8x207xf32> -> vector<8x208xf32>
    %227 = vector.extract_strided_slice %223 {offsets = [0, 1], sizes = [8, 207], strides = [1, 1]} : vector<8x208xf32> to vector<8x207xf32>
    %cst_103 = arith.constant 0.000000e+00 : f32
    %228 = vector.broadcast %cst_103 : f32 to vector<8x1xf32>
    %229 = tpu.concatenate %227, %228 in 1 : vector<8x207xf32>, vector<8x1xf32> -> vector<8x208xf32>
    %230 = tpu.concatenate %226, %223, %229 in 0 : vector<8x208xf32>, vector<8x208xf32>, vector<8x208xf32> -> vector<24x208xf32>
    %cst_104 = arith.constant dense<0.000000e+00> : vector<16x208xf32>
    %231 = tpu.matmul %0, %230, %cst_104 {dimension_numbers = #tpu.dot_dimension_numbers<[1], [0], [0], [1], [0, 0, 1, 1], [], []>} : vector<16x24xf32>, vector<24x208xf32>, vector<16x208xf32> -> vector<16x208xf32>
    %232 = vector.broadcast %1 : vector<16x1xf32> to vector<16x208xf32>
    %233 = arith.addf %231, %232 : vector<16x208xf32>
    %cst_105 = arith.constant 0.000000e+00 : f32
    %234 = vector.broadcast %cst_105 : f32 to vector<16x208xf32>
    %235 = arith.maximumf %233, %234 : vector<16x208xf32>
    %cst_106 = arith.constant 0.000000e+00 : f32
    %236 = vector.broadcast %cst_106 : f32 to vector<16x1xf32>
    %237 = vector.extract_strided_slice %235 {offsets = [0, 0], sizes = [16, 207], strides = [1, 1]} : vector<16x208xf32> to vector<16x207xf32>
    %238 = tpu.concatenate %236, %237 in 1 : vector<16x1xf32>, vector<16x207xf32> -> vector<16x208xf32>
    %239 = vector.extract_strided_slice %235 {offsets = [0, 1], sizes = [16, 207], strides = [1, 1]} : vector<16x208xf32> to vector<16x207xf32>
    %cst_107 = arith.constant 0.000000e+00 : f32
    %240 = vector.broadcast %cst_107 : f32 to vector<16x1xf32>
    %241 = tpu.concatenate %239, %240 in 1 : vector<16x207xf32>, vector<16x1xf32> -> vector<16x208xf32>
    %242 = tpu.concatenate %238, %235, %241 in 0 : vector<16x208xf32>, vector<16x208xf32>, vector<16x208xf32> -> vector<48x208xf32>
    %cst_108 = arith.constant dense<0.000000e+00> : vector<32x208xf32>
    %243 = tpu.matmul %2, %242, %cst_108 {dimension_numbers = #tpu.dot_dimension_numbers<[1], [0], [0], [1], [0, 0, 1, 1], [], []>} : vector<32x48xf32>, vector<48x208xf32>, vector<32x208xf32> -> vector<32x208xf32>
    %244 = vector.broadcast %3 : vector<32x1xf32> to vector<32x208xf32>
    %245 = arith.addf %243, %244 : vector<32x208xf32>
    %cst_109 = arith.constant 0.000000e+00 : f32
    %246 = vector.broadcast %cst_109 : f32 to vector<32x208xf32>
    %247 = arith.maximumf %245, %246 : vector<32x208xf32>
    %248 = vector.extract_strided_slice %247 {offsets = [0, 1], sizes = [32, 207], strides = [1, 1]} : vector<32x208xf32> to vector<32x207xf32>
    %cst_110 = arith.constant 0.000000e+00 : f32
    %249 = vector.broadcast %cst_110 : f32 to vector<32x1xf32>
    %250 = tpu.concatenate %248, %249 in 1 : vector<32x207xf32>, vector<32x1xf32> -> vector<32x208xf32>
    %251 = arith.maximumf %247, %250 : vector<32x208xf32>
    %252 = tpu.concatenate %41, %71, %101, %131, %161, %191, %221, %251 in 0 : vector<32x208xf32>, vector<32x208xf32>, vector<32x208xf32>, vector<32x208xf32>, vector<32x208xf32>, vector<32x208xf32>, vector<32x208xf32>, vector<32x208xf32> -> vector<256x208xf32>
    %cst_111 = arith.constant dense<0.000000e+00> : vector<256x104xf32>
    %253 = tpu.matmul %252, %8, %cst_111 {dimension_numbers = #tpu.dot_dimension_numbers<[1], [0], [0], [1], [0, 0, 1, 1], [], []>} : vector<256x208xf32>, vector<208x104xf32>, vector<256x104xf32> -> vector<256x104xf32>
    %254 = vector.extract_strided_slice %253 {offsets = [0, 0], sizes = [32, 104], strides = [1, 1]} : vector<256x104xf32> to vector<32x104xf32>
    %cst_112 = arith.constant 0.000000e+00 : f32
    %255 = vector.broadcast %cst_112 : f32 to vector<32x1xf32>
    %256 = vector.extract_strided_slice %254 {offsets = [0, 0], sizes = [32, 103], strides = [1, 1]} : vector<32x104xf32> to vector<32x103xf32>
    %257 = tpu.concatenate %255, %256 in 1 : vector<32x1xf32>, vector<32x103xf32> -> vector<32x104xf32>
    %258 = vector.extract_strided_slice %254 {offsets = [0, 1], sizes = [32, 103], strides = [1, 1]} : vector<32x104xf32> to vector<32x103xf32>
    %cst_113 = arith.constant 0.000000e+00 : f32
    %259 = vector.broadcast %cst_113 : f32 to vector<32x1xf32>
    %260 = tpu.concatenate %258, %259 in 1 : vector<32x103xf32>, vector<32x1xf32> -> vector<32x104xf32>
    %261 = tpu.concatenate %257, %254, %260 in 0 : vector<32x104xf32>, vector<32x104xf32>, vector<32x104xf32> -> vector<96x104xf32>
    %cst_114 = arith.constant dense<0.000000e+00> : vector<64x104xf32>
    %262 = tpu.matmul %4, %261, %cst_114 {dimension_numbers = #tpu.dot_dimension_numbers<[1], [0], [0], [1], [0, 0, 1, 1], [], []>} : vector<64x96xf32>, vector<96x104xf32>, vector<64x104xf32> -> vector<64x104xf32>
    %263 = vector.broadcast %5 : vector<64x1xf32> to vector<64x104xf32>
    %264 = arith.addf %262, %263 : vector<64x104xf32>
    %cst_115 = arith.constant 0.000000e+00 : f32
    %265 = vector.broadcast %cst_115 : f32 to vector<64x104xf32>
    %266 = arith.maximumf %264, %265 : vector<64x104xf32>
    %cst_116 = arith.constant 0.000000e+00 : f32
    %267 = vector.broadcast %cst_116 : f32 to vector<64x1xf32>
    %268 = vector.extract_strided_slice %266 {offsets = [0, 0], sizes = [64, 101], strides = [1, 1]} : vector<64x104xf32> to vector<64x101xf32>
    %269 = tpu.concatenate %267, %268 in 1 : vector<64x1xf32>, vector<64x101xf32> -> vector<64x102xf32>
    %270 = vector.extract_strided_slice %266 {offsets = [0, 0], sizes = [64, 102], strides = [1, 1]} : vector<64x104xf32> to vector<64x102xf32>
    %271 = vector.extract_strided_slice %266 {offsets = [0, 1], sizes = [64, 102], strides = [1, 1]} : vector<64x104xf32> to vector<64x102xf32>
    %272 = vector.extract_strided_slice %266 {offsets = [0, 2], sizes = [64, 102], strides = [1, 1]} : vector<64x104xf32> to vector<64x102xf32>
    %273 = vector.extract_strided_slice %266 {offsets = [0, 3], sizes = [64, 101], strides = [1, 1]} : vector<64x104xf32> to vector<64x101xf32>
    %cst_117 = arith.constant 0.000000e+00 : f32
    %274 = vector.broadcast %cst_117 : f32 to vector<64x1xf32>
    %275 = tpu.concatenate %273, %274 in 1 : vector<64x101xf32>, vector<64x1xf32> -> vector<64x102xf32>
    %276 = tpu.concatenate %269, %270, %271, %272, %275 in 0 : vector<64x102xf32>, vector<64x102xf32>, vector<64x102xf32>, vector<64x102xf32>, vector<64x102xf32> -> vector<320x102xf32>
    %277 = vector.extract_strided_slice %253 {offsets = [32, 0], sizes = [32, 104], strides = [1, 1]} : vector<256x104xf32> to vector<32x104xf32>
    %cst_118 = arith.constant 0.000000e+00 : f32
    %278 = vector.broadcast %cst_118 : f32 to vector<32x1xf32>
    %279 = vector.extract_strided_slice %277 {offsets = [0, 0], sizes = [32, 103], strides = [1, 1]} : vector<32x104xf32> to vector<32x103xf32>
    %280 = tpu.concatenate %278, %279 in 1 : vector<32x1xf32>, vector<32x103xf32> -> vector<32x104xf32>
    %281 = vector.extract_strided_slice %277 {offsets = [0, 1], sizes = [32, 103], strides = [1, 1]} : vector<32x104xf32> to vector<32x103xf32>
    %cst_119 = arith.constant 0.000000e+00 : f32
    %282 = vector.broadcast %cst_119 : f32 to vector<32x1xf32>
    %283 = tpu.concatenate %281, %282 in 1 : vector<32x103xf32>, vector<32x1xf32> -> vector<32x104xf32>
    %284 = tpu.concatenate %280, %277, %283 in 0 : vector<32x104xf32>, vector<32x104xf32>, vector<32x104xf32> -> vector<96x104xf32>
    %cst_120 = arith.constant dense<0.000000e+00> : vector<64x104xf32>
    %285 = tpu.matmul %4, %284, %cst_120 {dimension_numbers = #tpu.dot_dimension_numbers<[1], [0], [0], [1], [0, 0, 1, 1], [], []>} : vector<64x96xf32>, vector<96x104xf32>, vector<64x104xf32> -> vector<64x104xf32>
    %286 = vector.broadcast %5 : vector<64x1xf32> to vector<64x104xf32>
    %287 = arith.addf %285, %286 : vector<64x104xf32>
    %cst_121 = arith.constant 0.000000e+00 : f32
    %288 = vector.broadcast %cst_121 : f32 to vector<64x104xf32>
    %289 = arith.maximumf %287, %288 : vector<64x104xf32>
    %cst_122 = arith.constant 0.000000e+00 : f32
    %290 = vector.broadcast %cst_122 : f32 to vector<64x1xf32>
    %291 = vector.extract_strided_slice %289 {offsets = [0, 0], sizes = [64, 101], strides = [1, 1]} : vector<64x104xf32> to vector<64x101xf32>
    %292 = tpu.concatenate %290, %291 in 1 : vector<64x1xf32>, vector<64x101xf32> -> vector<64x102xf32>
    %293 = vector.extract_strided_slice %289 {offsets = [0, 0], sizes = [64, 102], strides = [1, 1]} : vector<64x104xf32> to vector<64x102xf32>
    %294 = vector.extract_strided_slice %289 {offsets = [0, 1], sizes = [64, 102], strides = [1, 1]} : vector<64x104xf32> to vector<64x102xf32>
    %295 = vector.extract_strided_slice %289 {offsets = [0, 2], sizes = [64, 102], strides = [1, 1]} : vector<64x104xf32> to vector<64x102xf32>
    %296 = vector.extract_strided_slice %289 {offsets = [0, 3], sizes = [64, 101], strides = [1, 1]} : vector<64x104xf32> to vector<64x101xf32>
    %cst_123 = arith.constant 0.000000e+00 : f32
    %297 = vector.broadcast %cst_123 : f32 to vector<64x1xf32>
    %298 = tpu.concatenate %296, %297 in 1 : vector<64x101xf32>, vector<64x1xf32> -> vector<64x102xf32>
    %299 = tpu.concatenate %292, %293, %294, %295, %298 in 0 : vector<64x102xf32>, vector<64x102xf32>, vector<64x102xf32>, vector<64x102xf32>, vector<64x102xf32> -> vector<320x102xf32>
    %300 = vector.extract_strided_slice %253 {offsets = [64, 0], sizes = [32, 104], strides = [1, 1]} : vector<256x104xf32> to vector<32x104xf32>
    %cst_124 = arith.constant 0.000000e+00 : f32
    %301 = vector.broadcast %cst_124 : f32 to vector<32x1xf32>
    %302 = vector.extract_strided_slice %300 {offsets = [0, 0], sizes = [32, 103], strides = [1, 1]} : vector<32x104xf32> to vector<32x103xf32>
    %303 = tpu.concatenate %301, %302 in 1 : vector<32x1xf32>, vector<32x103xf32> -> vector<32x104xf32>
    %304 = vector.extract_strided_slice %300 {offsets = [0, 1], sizes = [32, 103], strides = [1, 1]} : vector<32x104xf32> to vector<32x103xf32>
    %cst_125 = arith.constant 0.000000e+00 : f32
    %305 = vector.broadcast %cst_125 : f32 to vector<32x1xf32>
    %306 = tpu.concatenate %304, %305 in 1 : vector<32x103xf32>, vector<32x1xf32> -> vector<32x104xf32>
    %307 = tpu.concatenate %303, %300, %306 in 0 : vector<32x104xf32>, vector<32x104xf32>, vector<32x104xf32> -> vector<96x104xf32>
    %cst_126 = arith.constant dense<0.000000e+00> : vector<64x104xf32>
    %308 = tpu.matmul %4, %307, %cst_126 {dimension_numbers = #tpu.dot_dimension_numbers<[1], [0], [0], [1], [0, 0, 1, 1], [], []>} : vector<64x96xf32>, vector<96x104xf32>, vector<64x104xf32> -> vector<64x104xf32>
    %309 = vector.broadcast %5 : vector<64x1xf32> to vector<64x104xf32>
    %310 = arith.addf %308, %309 : vector<64x104xf32>
    %cst_127 = arith.constant 0.000000e+00 : f32
    %311 = vector.broadcast %cst_127 : f32 to vector<64x104xf32>
    %312 = arith.maximumf %310, %311 : vector<64x104xf32>
    %cst_128 = arith.constant 0.000000e+00 : f32
    %313 = vector.broadcast %cst_128 : f32 to vector<64x1xf32>
    %314 = vector.extract_strided_slice %312 {offsets = [0, 0], sizes = [64, 101], strides = [1, 1]} : vector<64x104xf32> to vector<64x101xf32>
    %315 = tpu.concatenate %313, %314 in 1 : vector<64x1xf32>, vector<64x101xf32> -> vector<64x102xf32>
    %316 = vector.extract_strided_slice %312 {offsets = [0, 0], sizes = [64, 102], strides = [1, 1]} : vector<64x104xf32> to vector<64x102xf32>
    %317 = vector.extract_strided_slice %312 {offsets = [0, 1], sizes = [64, 102], strides = [1, 1]} : vector<64x104xf32> to vector<64x102xf32>
    %318 = vector.extract_strided_slice %312 {offsets = [0, 2], sizes = [64, 102], strides = [1, 1]} : vector<64x104xf32> to vector<64x102xf32>
    %319 = vector.extract_strided_slice %312 {offsets = [0, 3], sizes = [64, 101], strides = [1, 1]} : vector<64x104xf32> to vector<64x101xf32>
    %cst_129 = arith.constant 0.000000e+00 : f32
    %320 = vector.broadcast %cst_129 : f32 to vector<64x1xf32>
    %321 = tpu.concatenate %319, %320 in 1 : vector<64x101xf32>, vector<64x1xf32> -> vector<64x102xf32>
    %322 = tpu.concatenate %315, %316, %317, %318, %321 in 0 : vector<64x102xf32>, vector<64x102xf32>, vector<64x102xf32>, vector<64x102xf32>, vector<64x102xf32> -> vector<320x102xf32>
    %323 = vector.extract_strided_slice %253 {offsets = [96, 0], sizes = [32, 104], strides = [1, 1]} : vector<256x104xf32> to vector<32x104xf32>
    %cst_130 = arith.constant 0.000000e+00 : f32
    %324 = vector.broadcast %cst_130 : f32 to vector<32x1xf32>
    %325 = vector.extract_strided_slice %323 {offsets = [0, 0], sizes = [32, 103], strides = [1, 1]} : vector<32x104xf32> to vector<32x103xf32>
    %326 = tpu.concatenate %324, %325 in 1 : vector<32x1xf32>, vector<32x103xf32> -> vector<32x104xf32>
    %327 = vector.extract_strided_slice %323 {offsets = [0, 1], sizes = [32, 103], strides = [1, 1]} : vector<32x104xf32> to vector<32x103xf32>
    %cst_131 = arith.constant 0.000000e+00 : f32
    %328 = vector.broadcast %cst_131 : f32 to vector<32x1xf32>
    %329 = tpu.concatenate %327, %328 in 1 : vector<32x103xf32>, vector<32x1xf32> -> vector<32x104xf32>
    %330 = tpu.concatenate %326, %323, %329 in 0 : vector<32x104xf32>, vector<32x104xf32>, vector<32x104xf32> -> vector<96x104xf32>
    %cst_132 = arith.constant dense<0.000000e+00> : vector<64x104xf32>
    %331 = tpu.matmul %4, %330, %cst_132 {dimension_numbers = #tpu.dot_dimension_numbers<[1], [0], [0], [1], [0, 0, 1, 1], [], []>} : vector<64x96xf32>, vector<96x104xf32>, vector<64x104xf32> -> vector<64x104xf32>
    %332 = vector.broadcast %5 : vector<64x1xf32> to vector<64x104xf32>
    %333 = arith.addf %331, %332 : vector<64x104xf32>
    %cst_133 = arith.constant 0.000000e+00 : f32
    %334 = vector.broadcast %cst_133 : f32 to vector<64x104xf32>
    %335 = arith.maximumf %333, %334 : vector<64x104xf32>
    %cst_134 = arith.constant 0.000000e+00 : f32
    %336 = vector.broadcast %cst_134 : f32 to vector<64x1xf32>
    %337 = vector.extract_strided_slice %335 {offsets = [0, 0], sizes = [64, 101], strides = [1, 1]} : vector<64x104xf32> to vector<64x101xf32>
    %338 = tpu.concatenate %336, %337 in 1 : vector<64x1xf32>, vector<64x101xf32> -> vector<64x102xf32>
    %339 = vector.extract_strided_slice %335 {offsets = [0, 0], sizes = [64, 102], strides = [1, 1]} : vector<64x104xf32> to vector<64x102xf32>
    %340 = vector.extract_strided_slice %335 {offsets = [0, 1], sizes = [64, 102], strides = [1, 1]} : vector<64x104xf32> to vector<64x102xf32>
    %341 = vector.extract_strided_slice %335 {offsets = [0, 2], sizes = [64, 102], strides = [1, 1]} : vector<64x104xf32> to vector<64x102xf32>
    %342 = vector.extract_strided_slice %335 {offsets = [0, 3], sizes = [64, 101], strides = [1, 1]} : vector<64x104xf32> to vector<64x101xf32>
    %cst_135 = arith.constant 0.000000e+00 : f32
    %343 = vector.broadcast %cst_135 : f32 to vector<64x1xf32>
    %344 = tpu.concatenate %342, %343 in 1 : vector<64x101xf32>, vector<64x1xf32> -> vector<64x102xf32>
    %345 = tpu.concatenate %338, %339, %340, %341, %344 in 0 : vector<64x102xf32>, vector<64x102xf32>, vector<64x102xf32>, vector<64x102xf32>, vector<64x102xf32> -> vector<320x102xf32>
    %346 = vector.extract_strided_slice %253 {offsets = [128, 0], sizes = [32, 104], strides = [1, 1]} : vector<256x104xf32> to vector<32x104xf32>
    %cst_136 = arith.constant 0.000000e+00 : f32
    %347 = vector.broadcast %cst_136 : f32 to vector<32x1xf32>
    %348 = vector.extract_strided_slice %346 {offsets = [0, 0], sizes = [32, 103], strides = [1, 1]} : vector<32x104xf32> to vector<32x103xf32>
    %349 = tpu.concatenate %347, %348 in 1 : vector<32x1xf32>, vector<32x103xf32> -> vector<32x104xf32>
    %350 = vector.extract_strided_slice %346 {offsets = [0, 1], sizes = [32, 103], strides = [1, 1]} : vector<32x104xf32> to vector<32x103xf32>
    %cst_137 = arith.constant 0.000000e+00 : f32
    %351 = vector.broadcast %cst_137 : f32 to vector<32x1xf32>
    %352 = tpu.concatenate %350, %351 in 1 : vector<32x103xf32>, vector<32x1xf32> -> vector<32x104xf32>
    %353 = tpu.concatenate %349, %346, %352 in 0 : vector<32x104xf32>, vector<32x104xf32>, vector<32x104xf32> -> vector<96x104xf32>
    %cst_138 = arith.constant dense<0.000000e+00> : vector<64x104xf32>
    %354 = tpu.matmul %4, %353, %cst_138 {dimension_numbers = #tpu.dot_dimension_numbers<[1], [0], [0], [1], [0, 0, 1, 1], [], []>} : vector<64x96xf32>, vector<96x104xf32>, vector<64x104xf32> -> vector<64x104xf32>
    %355 = vector.broadcast %5 : vector<64x1xf32> to vector<64x104xf32>
    %356 = arith.addf %354, %355 : vector<64x104xf32>
    %cst_139 = arith.constant 0.000000e+00 : f32
    %357 = vector.broadcast %cst_139 : f32 to vector<64x104xf32>
    %358 = arith.maximumf %356, %357 : vector<64x104xf32>
    %cst_140 = arith.constant 0.000000e+00 : f32
    %359 = vector.broadcast %cst_140 : f32 to vector<64x1xf32>
    %360 = vector.extract_strided_slice %358 {offsets = [0, 0], sizes = [64, 101], strides = [1, 1]} : vector<64x104xf32> to vector<64x101xf32>
    %361 = tpu.concatenate %359, %360 in 1 : vector<64x1xf32>, vector<64x101xf32> -> vector<64x102xf32>
    %362 = vector.extract_strided_slice %358 {offsets = [0, 0], sizes = [64, 102], strides = [1, 1]} : vector<64x104xf32> to vector<64x102xf32>
    %363 = vector.extract_strided_slice %358 {offsets = [0, 1], sizes = [64, 102], strides = [1, 1]} : vector<64x104xf32> to vector<64x102xf32>
    %364 = vector.extract_strided_slice %358 {offsets = [0, 2], sizes = [64, 102], strides = [1, 1]} : vector<64x104xf32> to vector<64x102xf32>
    %365 = vector.extract_strided_slice %358 {offsets = [0, 3], sizes = [64, 101], strides = [1, 1]} : vector<64x104xf32> to vector<64x101xf32>
    %cst_141 = arith.constant 0.000000e+00 : f32
    %366 = vector.broadcast %cst_141 : f32 to vector<64x1xf32>
    %367 = tpu.concatenate %365, %366 in 1 : vector<64x101xf32>, vector<64x1xf32> -> vector<64x102xf32>
    %368 = tpu.concatenate %361, %362, %363, %364, %367 in 0 : vector<64x102xf32>, vector<64x102xf32>, vector<64x102xf32>, vector<64x102xf32>, vector<64x102xf32> -> vector<320x102xf32>
    %369 = vector.extract_strided_slice %253 {offsets = [160, 0], sizes = [32, 104], strides = [1, 1]} : vector<256x104xf32> to vector<32x104xf32>
    %cst_142 = arith.constant 0.000000e+00 : f32
    %370 = vector.broadcast %cst_142 : f32 to vector<32x1xf32>
    %371 = vector.extract_strided_slice %369 {offsets = [0, 0], sizes = [32, 103], strides = [1, 1]} : vector<32x104xf32> to vector<32x103xf32>
    %372 = tpu.concatenate %370, %371 in 1 : vector<32x1xf32>, vector<32x103xf32> -> vector<32x104xf32>
    %373 = vector.extract_strided_slice %369 {offsets = [0, 1], sizes = [32, 103], strides = [1, 1]} : vector<32x104xf32> to vector<32x103xf32>
    %cst_143 = arith.constant 0.000000e+00 : f32
    %374 = vector.broadcast %cst_143 : f32 to vector<32x1xf32>
    %375 = tpu.concatenate %373, %374 in 1 : vector<32x103xf32>, vector<32x1xf32> -> vector<32x104xf32>
    %376 = tpu.concatenate %372, %369, %375 in 0 : vector<32x104xf32>, vector<32x104xf32>, vector<32x104xf32> -> vector<96x104xf32>
    %cst_144 = arith.constant dense<0.000000e+00> : vector<64x104xf32>
    %377 = tpu.matmul %4, %376, %cst_144 {dimension_numbers = #tpu.dot_dimension_numbers<[1], [0], [0], [1], [0, 0, 1, 1], [], []>} : vector<64x96xf32>, vector<96x104xf32>, vector<64x104xf32> -> vector<64x104xf32>
    %378 = vector.broadcast %5 : vector<64x1xf32> to vector<64x104xf32>
    %379 = arith.addf %377, %378 : vector<64x104xf32>
    %cst_145 = arith.constant 0.000000e+00 : f32
    %380 = vector.broadcast %cst_145 : f32 to vector<64x104xf32>
    %381 = arith.maximumf %379, %380 : vector<64x104xf32>
    %cst_146 = arith.constant 0.000000e+00 : f32
    %382 = vector.broadcast %cst_146 : f32 to vector<64x1xf32>
    %383 = vector.extract_strided_slice %381 {offsets = [0, 0], sizes = [64, 101], strides = [1, 1]} : vector<64x104xf32> to vector<64x101xf32>
    %384 = tpu.concatenate %382, %383 in 1 : vector<64x1xf32>, vector<64x101xf32> -> vector<64x102xf32>
    %385 = vector.extract_strided_slice %381 {offsets = [0, 0], sizes = [64, 102], strides = [1, 1]} : vector<64x104xf32> to vector<64x102xf32>
    %386 = vector.extract_strided_slice %381 {offsets = [0, 1], sizes = [64, 102], strides = [1, 1]} : vector<64x104xf32> to vector<64x102xf32>
    %387 = vector.extract_strided_slice %381 {offsets = [0, 2], sizes = [64, 102], strides = [1, 1]} : vector<64x104xf32> to vector<64x102xf32>
    %388 = vector.extract_strided_slice %381 {offsets = [0, 3], sizes = [64, 101], strides = [1, 1]} : vector<64x104xf32> to vector<64x101xf32>
    %cst_147 = arith.constant 0.000000e+00 : f32
    %389 = vector.broadcast %cst_147 : f32 to vector<64x1xf32>
    %390 = tpu.concatenate %388, %389 in 1 : vector<64x101xf32>, vector<64x1xf32> -> vector<64x102xf32>
    %391 = tpu.concatenate %384, %385, %386, %387, %390 in 0 : vector<64x102xf32>, vector<64x102xf32>, vector<64x102xf32>, vector<64x102xf32>, vector<64x102xf32> -> vector<320x102xf32>
    %392 = vector.extract_strided_slice %253 {offsets = [192, 0], sizes = [32, 104], strides = [1, 1]} : vector<256x104xf32> to vector<32x104xf32>
    %cst_148 = arith.constant 0.000000e+00 : f32
    %393 = vector.broadcast %cst_148 : f32 to vector<32x1xf32>
    %394 = vector.extract_strided_slice %392 {offsets = [0, 0], sizes = [32, 103], strides = [1, 1]} : vector<32x104xf32> to vector<32x103xf32>
    %395 = tpu.concatenate %393, %394 in 1 : vector<32x1xf32>, vector<32x103xf32> -> vector<32x104xf32>
    %396 = vector.extract_strided_slice %392 {offsets = [0, 1], sizes = [32, 103], strides = [1, 1]} : vector<32x104xf32> to vector<32x103xf32>
    %cst_149 = arith.constant 0.000000e+00 : f32
    %397 = vector.broadcast %cst_149 : f32 to vector<32x1xf32>
    %398 = tpu.concatenate %396, %397 in 1 : vector<32x103xf32>, vector<32x1xf32> -> vector<32x104xf32>
    %399 = tpu.concatenate %395, %392, %398 in 0 : vector<32x104xf32>, vector<32x104xf32>, vector<32x104xf32> -> vector<96x104xf32>
    %cst_150 = arith.constant dense<0.000000e+00> : vector<64x104xf32>
    %400 = tpu.matmul %4, %399, %cst_150 {dimension_numbers = #tpu.dot_dimension_numbers<[1], [0], [0], [1], [0, 0, 1, 1], [], []>} : vector<64x96xf32>, vector<96x104xf32>, vector<64x104xf32> -> vector<64x104xf32>
    %401 = vector.broadcast %5 : vector<64x1xf32> to vector<64x104xf32>
    %402 = arith.addf %400, %401 : vector<64x104xf32>
    %cst_151 = arith.constant 0.000000e+00 : f32
    %403 = vector.broadcast %cst_151 : f32 to vector<64x104xf32>
    %404 = arith.maximumf %402, %403 : vector<64x104xf32>
    %cst_152 = arith.constant 0.000000e+00 : f32
    %405 = vector.broadcast %cst_152 : f32 to vector<64x1xf32>
    %406 = vector.extract_strided_slice %404 {offsets = [0, 0], sizes = [64, 101], strides = [1, 1]} : vector<64x104xf32> to vector<64x101xf32>
    %407 = tpu.concatenate %405, %406 in 1 : vector<64x1xf32>, vector<64x101xf32> -> vector<64x102xf32>
    %408 = vector.extract_strided_slice %404 {offsets = [0, 0], sizes = [64, 102], strides = [1, 1]} : vector<64x104xf32> to vector<64x102xf32>
    %409 = vector.extract_strided_slice %404 {offsets = [0, 1], sizes = [64, 102], strides = [1, 1]} : vector<64x104xf32> to vector<64x102xf32>
    %410 = vector.extract_strided_slice %404 {offsets = [0, 2], sizes = [64, 102], strides = [1, 1]} : vector<64x104xf32> to vector<64x102xf32>
    %411 = vector.extract_strided_slice %404 {offsets = [0, 3], sizes = [64, 101], strides = [1, 1]} : vector<64x104xf32> to vector<64x101xf32>
    %cst_153 = arith.constant 0.000000e+00 : f32
    %412 = vector.broadcast %cst_153 : f32 to vector<64x1xf32>
    %413 = tpu.concatenate %411, %412 in 1 : vector<64x101xf32>, vector<64x1xf32> -> vector<64x102xf32>
    %414 = tpu.concatenate %407, %408, %409, %410, %413 in 0 : vector<64x102xf32>, vector<64x102xf32>, vector<64x102xf32>, vector<64x102xf32>, vector<64x102xf32> -> vector<320x102xf32>
    %415 = vector.extract_strided_slice %253 {offsets = [224, 0], sizes = [32, 104], strides = [1, 1]} : vector<256x104xf32> to vector<32x104xf32>
    %cst_154 = arith.constant 0.000000e+00 : f32
    %416 = vector.broadcast %cst_154 : f32 to vector<32x1xf32>
    %417 = vector.extract_strided_slice %415 {offsets = [0, 0], sizes = [32, 103], strides = [1, 1]} : vector<32x104xf32> to vector<32x103xf32>
    %418 = tpu.concatenate %416, %417 in 1 : vector<32x1xf32>, vector<32x103xf32> -> vector<32x104xf32>
    %419 = vector.extract_strided_slice %415 {offsets = [0, 1], sizes = [32, 103], strides = [1, 1]} : vector<32x104xf32> to vector<32x103xf32>
    %cst_155 = arith.constant 0.000000e+00 : f32
    %420 = vector.broadcast %cst_155 : f32 to vector<32x1xf32>
    %421 = tpu.concatenate %419, %420 in 1 : vector<32x103xf32>, vector<32x1xf32> -> vector<32x104xf32>
    %422 = tpu.concatenate %418, %415, %421 in 0 : vector<32x104xf32>, vector<32x104xf32>, vector<32x104xf32> -> vector<96x104xf32>
    %cst_156 = arith.constant dense<0.000000e+00> : vector<64x104xf32>
    %423 = tpu.matmul %4, %422, %cst_156 {dimension_numbers = #tpu.dot_dimension_numbers<[1], [0], [0], [1], [0, 0, 1, 1], [], []>} : vector<64x96xf32>, vector<96x104xf32>, vector<64x104xf32> -> vector<64x104xf32>
    %424 = vector.broadcast %5 : vector<64x1xf32> to vector<64x104xf32>
    %425 = arith.addf %423, %424 : vector<64x104xf32>
    %cst_157 = arith.constant 0.000000e+00 : f32
    %426 = vector.broadcast %cst_157 : f32 to vector<64x104xf32>
    %427 = arith.maximumf %425, %426 : vector<64x104xf32>
    %cst_158 = arith.constant 0.000000e+00 : f32
    %428 = vector.broadcast %cst_158 : f32 to vector<64x1xf32>
    %429 = vector.extract_strided_slice %427 {offsets = [0, 0], sizes = [64, 101], strides = [1, 1]} : vector<64x104xf32> to vector<64x101xf32>
    %430 = tpu.concatenate %428, %429 in 1 : vector<64x1xf32>, vector<64x101xf32> -> vector<64x102xf32>
    %431 = vector.extract_strided_slice %427 {offsets = [0, 0], sizes = [64, 102], strides = [1, 1]} : vector<64x104xf32> to vector<64x102xf32>
    %432 = vector.extract_strided_slice %427 {offsets = [0, 1], sizes = [64, 102], strides = [1, 1]} : vector<64x104xf32> to vector<64x102xf32>
    %433 = vector.extract_strided_slice %427 {offsets = [0, 2], sizes = [64, 102], strides = [1, 1]} : vector<64x104xf32> to vector<64x102xf32>
    %434 = vector.extract_strided_slice %427 {offsets = [0, 3], sizes = [64, 101], strides = [1, 1]} : vector<64x104xf32> to vector<64x101xf32>
    %cst_159 = arith.constant 0.000000e+00 : f32
    %435 = vector.broadcast %cst_159 : f32 to vector<64x1xf32>
    %436 = tpu.concatenate %434, %435 in 1 : vector<64x101xf32>, vector<64x1xf32> -> vector<64x102xf32>
    %437 = tpu.concatenate %430, %431, %432, %433, %436 in 0 : vector<64x102xf32>, vector<64x102xf32>, vector<64x102xf32>, vector<64x102xf32>, vector<64x102xf32> -> vector<320x102xf32>
    %438 = tpu.concatenate %276, %299, %322, %345, %368, %391, %414, %437 in 0 : vector<320x102xf32>, vector<320x102xf32>, vector<320x102xf32>, vector<320x102xf32>, vector<320x102xf32>, vector<320x102xf32>, vector<320x102xf32>, vector<320x102xf32> -> vector<2560x102xf32>
    %cst_160 = arith.constant dense<0.000000e+00> : vector<8x102xf32>
    %439 = tpu.matmul %6, %438, %cst_160 {dimension_numbers = #tpu.dot_dimension_numbers<[1], [0], [0], [1], [0, 0, 1, 1], [], []>} : vector<8x2560xf32>, vector<2560x102xf32>, vector<8x102xf32> -> vector<8x102xf32>
    %440 = vector.broadcast %7 : vector<1x1xf32> to vector<8x102xf32>
    %441 = arith.addf %439, %440 : vector<8x102xf32>
    %cst_161 = arith.constant 0.000000e+00 : f32
    %442 = vector.broadcast %cst_161 : f32 to vector<8x102xf32>
    %443 = arith.maximumf %441, %442 : vector<8x102xf32>
    %444 = vector.extract_strided_slice %443 {offsets = [0, 1], sizes = [8, 101], strides = [1, 1]} : vector<8x102xf32> to vector<8x101xf32>
    %cst_162 = arith.constant 0.000000e+00 : f32
    %445 = vector.broadcast %cst_162 : f32 to vector<8x1xf32>
    %446 = tpu.concatenate %444, %445 in 1 : vector<8x101xf32>, vector<8x1xf32> -> vector<8x102xf32>
    %447 = arith.maximumf %443, %446 : vector<8x102xf32>
    %cst_163 = arith.constant dense<0.000000e+00> : vector<8x51xf32>
    %448 = tpu.matmul %447, %9, %cst_163 {dimension_numbers = #tpu.dot_dimension_numbers<[1], [0], [0], [1], [0, 0, 1, 1], [], []>} : vector<8x102xf32>, vector<102x51xf32>, vector<8x51xf32> -> vector<8x51xf32>
    %cst_164 = arith.constant dense<0.000000e+00> : vector<8x48xf32>
    %449 = tpu.matmul %448, %10, %cst_164 {dimension_numbers = #tpu.dot_dimension_numbers<[1], [0], [0], [1], [0, 0, 1, 1], [], []>} : vector<8x51xf32>, vector<51x48xf32>, vector<8x48xf32> -> vector<8x48xf32>
    %450 = vector.broadcast %11 : vector<1x48xf32> to vector<8x48xf32>
    %451 = arith.addf %449, %450 : vector<8x48xf32>
    %c0_165 = arith.constant 0 : index
    %c0_166 = arith.constant 0 : index
    %452 = vector.load %arg14[%c0_165, %c0_166] : memref<8x48xf32, #tpu.memory_space<vmem>>, vector<8x48xf32>
    tpu.vector_store %arg14[%c0_165, %c0_166], %451 {strides = array<i32>} : memref<8x48xf32, #tpu.memory_space<vmem>>, vector<8x48xf32>,
    return
  }
  func.func @transform_0(%arg0: i32) -> (i32, i32, i32) {
    %c0_i32 = arith.constant 0 : i32
    %c0_i32_0 = arith.constant 0 : i32
    %c0_i32_1 = arith.constant 0 : i32
    return %arg0, %c0_i32, %c0_i32_0 : i32, i32, i32
  }
  func.func @transform_1(%arg0: i32) -> (i32, i32) {
    %c0_i32 = arith.constant 0 : i32
    %c0_i32_0 = arith.constant 0 : i32
    %c0_i32_1 = arith.constant 0 : i32
    return %c0_i32, %c0_i32_0 : i32, i32
  }
  func.func @transform_2(%arg0: i32) -> (i32, i32) {
    %c0_i32 = arith.constant 0 : i32
    %c0_i32_0 = arith.constant 0 : i32
    %c0_i32_1 = arith.constant 0 : i32
    return %c0_i32, %c0_i32_0 : i32, i32
  }
  func.func @transform_3(%arg0: i32) -> (i32, i32) {
    %c0_i32 = arith.constant 0 : i32
    %c0_i32_0 = arith.constant 0 : i32
    %c0_i32_1 = arith.constant 0 : i32
    return %c0_i32, %c0_i32_0 : i32, i32
  }
  func.func @transform_4(%arg0: i32) -> (i32, i32) {
    %c0_i32 = arith.constant 0 : i32
    %c0_i32_0 = arith.constant 0 : i32
    %c0_i32_1 = arith.constant 0 : i32
    return %c0_i32, %c0_i32_0 : i32, i32
  }
  func.func @transform_5(%arg0: i32) -> (i32, i32) {
    %c0_i32 = arith.constant 0 : i32
    %c0_i32_0 = arith.constant 0 : i32
    %c0_i32_1 = arith.constant 0 : i32
    return %c0_i32, %c0_i32_0 : i32, i32
  }
  func.func @transform_6(%arg0: i32) -> (i32, i32) {
    %c0_i32 = arith.constant 0 : i32
    %c0_i32_0 = arith.constant 0 : i32
    %c0_i32_1 = arith.constant 0 : i32
    return %c0_i32, %c0_i32_0 : i32, i32
  }
  func.func @transform_7(%arg0: i32) -> (i32, i32) {
    %c0_i32 = arith.constant 0 : i32
    %c0_i32_0 = arith.constant 0 : i32
    %c0_i32_1 = arith.constant 0 : i32
    return %c0_i32, %c0_i32_0 : i32, i32
  }
  func.func @transform_8(%arg0: i32) -> (i32, i32) {
    %c0_i32 = arith.constant 0 : i32
    %c0_i32_0 = arith.constant 0 : i32
    %c0_i32_1 = arith.constant 0 : i32
    return %c0_i32, %c0_i32_0 : i32, i32
  }
  func.func @transform_9(%arg0: i32) -> (i32, i32) {
    %c0_i32 = arith.constant 0 : i32
    %c0_i32_0 = arith.constant 0 : i32
    %c0_i32_1 = arith.constant 0 : i32
    return %c0_i32, %c0_i32_0 : i32, i32
  }
  func.func @transform_10(%arg0: i32) -> (i32, i32) {
    %c0_i32 = arith.constant 0 : i32
    %c0_i32_0 = arith.constant 0 : i32
    %c0_i32_1 = arith.constant 0 : i32
    return %c0_i32, %c0_i32_0 : i32, i32
  }
  func.func @transform_11(%arg0: i32) -> (i32, i32) {
    %c0_i32 = arith.constant 0 : i32
    %c0_i32_0 = arith.constant 0 : i32
    %c0_i32_1 = arith.constant 0 : i32
    return %c0_i32, %c0_i32_0 : i32, i32
  }
  func.func @transform_12(%arg0: i32) -> (i32, i32) {
    %c0_i32 = arith.constant 0 : i32
    %c0_i32_0 = arith.constant 0 : i32
    %c0_i32_1 = arith.constant 0 : i32
    return %c0_i32, %c0_i32_0 : i32, i32
  }
  func.func @transform_13(%arg0: i32) -> (i32, i32) {
    %c0_i32 = arith.constant 0 : i32
    %c0_i32_0 = arith.constant 0 : i32
    return %arg0, %c0_i32 : i32, i32
  }
}

</mosaic_0001>

<llo_original>
// kernel: get_latent.1
$region0: #{get_latent.1}
  #allocation0 [shape = 'u32[]', space=smem, size = 0x4, offset = 0x4, fixed_abs, tag = 'smem constant byte address 0x4 - core index']
  #allocation1 [shape = 'u32[144,128]{1,0:T(1,128)}', space=vmem, size = 0x12000, scoped, tag = 'internal scratch']
  #allocation2 [shape = 'f32[1,1]{1,0:T(1,128)S(1)}', space=vmem, size = 0x200, scoped, tag = 'scoped memory for get_latent.1']
  %s0 = inlined_call_operand.vmem [shape: f32[8,8,208], index: 0, kind: input, shape index: {}]
  %s1 = inlined_call_operand.vmem [shape: f32[16,24], index: 1, kind: input, shape index: {}]
  %s2 = inlined_call_operand.vmem [shape: f32[16,1], index: 2, kind: input, shape index: {}]
  %s3 = inlined_call_operand.vmem [shape: f32[32,48], index: 3, kind: input, shape index: {}]
  %s4 = inlined_call_operand.vmem [shape: f32[32,1], index: 4, kind: input, shape index: {}]
  %s5 = inlined_call_operand.vmem [shape: f32[64,96], index: 5, kind: input, shape index: {}]
  %s6 = inlined_call_operand.vmem [shape: f32[64,1], index: 6, kind: input, shape index: {}]
  %s7 = inlined_call_operand.vmem [shape: f32[8,2560], index: 7, kind: input, shape index: {}]
  %s8 = inlined_call_operand.<no memory space> [shape: f32[1,1], index: 8, kind: input, shape index: {}]
  %s9 = inlined_call_operand.vmem [shape: f32[208,104], index: 9, kind: input, shape index: {}]
  %s10 = inlined_call_operand.vmem [shape: f32[102,51], index: 10, kind: input, shape index: {}]
  %s11 = inlined_call_operand.vmem [shape: f32[51,48], index: 11, kind: input, shape index: {}]
  %s12 = inlined_call_operand.vmem [shape: f32[1,48], index: 12, kind: input, shape index: {}]
  %s13 = inlined_call_operand.vmem [shape: f32[8,48], index: 13, kind: output, shape index: {}]
  %s14 = sld [smem:[#allocation0]]
  $region62: #{get_latent.1} parent=0
    _
  %s16 = ssub.s32 1, %s14
  %s17 = scalar_select 0, %s16, %s14
  %v18 = vstv %s8
  %19 = vst [vmem:[#allocation2] sm:$0x1] %v18
  // Predicated region
  $region2: #{get_latent.1} parent=0 // pred_check
    _
  $region3: #{get_latent.1} parent=0 // pred_check_branch
    %21 = sbr.rel (0) target = $region5
  $region4: #{get_latent.1} parent=0 // pred_region
    _
  $region5: #{get_latent.1} parent=0 // pred_fallthru
    _
  // Predicated region
  $region6: #{get_latent.1} parent=0 // pred_check
    _
  $region7: #{get_latent.1} parent=0 // pred_check_branch
    %23 = sbr.rel (0) target = $region9
  $region8: #{get_latent.1} parent=0 // pred_region
    _
  $region9: #{get_latent.1} parent=0 // pred_fallthru
    _
  // Predicated region
  $region10: #{get_latent.1} parent=0 // pred_check
    _
  $region11: #{get_latent.1} parent=0 // pred_check_branch
    %25 = sbr.rel (0) target = $region13
  $region12: #{get_latent.1} parent=0 // pred_region
    _
  $region13: #{get_latent.1} parent=0 // pred_fallthru
    _
  // Predicated region
  $region14: #{get_latent.1} parent=0 // pred_check
    _
  $region15: #{get_latent.1} parent=0 // pred_check_branch
    %27 = sbr.rel (0) target = $region17
  $region16: #{get_latent.1} parent=0 // pred_region
    _
  $region17: #{get_latent.1} parent=0 // pred_fallthru
    _
  // Predicated region
  $region18: #{get_latent.1} parent=0 // pred_check
    _
  $region19: #{get_latent.1} parent=0 // pred_check_branch
    %29 = sbr.rel (0) target = $region21
  $region20: #{get_latent.1} parent=0 // pred_region
    _
  $region21: #{get_latent.1} parent=0 // pred_fallthru
    _
  // Predicated region
  $region22: #{get_latent.1} parent=0 // pred_check
    _
  $region23: #{get_latent.1} parent=0 // pred_check_branch
    %31 = sbr.rel (0) target = $region25
  $region24: #{get_latent.1} parent=0 // pred_region
    _
  $region25: #{get_latent.1} parent=0 // pred_fallthru
    _
  // Predicated region
  $region26: #{get_latent.1} parent=0 // pred_check
    _
  $region27: #{get_latent.1} parent=0 // pred_check_branch
    %33 = sbr.rel (0) target = $region29
  $region28: #{get_latent.1} parent=0 // pred_region
    _
  $region29: #{get_latent.1} parent=0 // pred_fallthru
    _
  // Predicated region
  $region30: #{get_latent.1} parent=0 // pred_check
    _
  $region31: #{get_latent.1} parent=0 // pred_check_branch
    %35 = sbr.rel (0) target = $region33
  $region32: #{get_latent.1} parent=0 // pred_region
    _
  $region33: #{get_latent.1} parent=0 // pred_fallthru
    _
  // Predicated region
  $region34: #{get_latent.1} parent=0 // pred_check
    _
  $region35: #{get_latent.1} parent=0 // pred_check_branch
    %37 = sbr.rel (0) target = $region37
  $region36: #{get_latent.1} parent=0 // pred_region
    _
  $region37: #{get_latent.1} parent=0 // pred_fallthru
    _
  // Predicated region
  $region38: #{get_latent.1} parent=0 // pred_check
    _
  $region39: #{get_latent.1} parent=0 // pred_check_branch
    %39 = sbr.rel (0) target = $region41
  $region40: #{get_latent.1} parent=0 // pred_region
    _
  $region41: #{get_latent.1} parent=0 // pred_fallthru
    _
  // Predicated region
  $region42: #{get_latent.1} parent=0 // pred_check
    _
  $region43: #{get_latent.1} parent=0 // pred_check_branch
    %41 = sbr.rel (0) target = $region45
  $region44: #{get_latent.1} parent=0 // pred_region
    _
  $region45: #{get_latent.1} parent=0 // pred_fallthru
    _
  // Predicated region
  $region46: #{get_latent.1} parent=0 // pred_check
    _
  $region47: #{get_latent.1} parent=0 // pred_check_branch
    %43 = sbr.rel (0) target = $region49
  $region48: #{get_latent.1} parent=0 // pred_region
    _
  $region49: #{get_latent.1} parent=0 // pred_fallthru
    _
  // Predicated region
  $region50: #{get_latent.1} parent=0 // pred_check
    _
  $region51: #{get_latent.1} parent=0 // pred_check_branch
    %45 = sbr.rel (0) target = $region53
  $region52: #{get_latent.1} parent=0 // pred_region
    _
  $region53: #{get_latent.1} parent=0 // pred_fallthru
    _
  %v46 = vld [vmem:[%s1] sm:$0xff]
  %v47 = vld [vmem:[%s1 + $0x8] sm:$0xff]
  %v48 = vld [vmem:[%s2] sm:$0xff]
  %v49 = vld [vmem:[%s2 + $0x8] sm:$0xff]
  %v50 = vld [vmem:[%s3] sm:$0xff]
  %v51 = vld [vmem:[%s3 + $0x8] sm:$0xff]
  %v52 = vld [vmem:[%s3 + $0x10] sm:$0xff]
  %v53 = vld [vmem:[%s3 + $0x18] sm:$0xff]
  %v54 = vld [vmem:[%s4] sm:$0xff]
  %v55 = vld [vmem:[%s4 + $0x8] sm:$0xff]
  %v56 = vld [vmem:[%s4 + $0x10] sm:$0xff]
  %v57 = vld [vmem:[%s4 + $0x18] sm:$0xff]
  %v58 = vld [vmem:[%s5] sm:$0xff]
  %v59 = vld [vmem:[%s5 + $0x8] sm:$0xff]
  %v60 = vld [vmem:[%s5 + $0x10] sm:$0xff]
  %v61 = vld [vmem:[%s5 + $0x18] sm:$0xff]
  %v62 = vld [vmem:[%s5 + $0x20] sm:$0xff]
  %v63 = vld [vmem:[%s5 + $0x28] sm:$0xff]
  %v64 = vld [vmem:[%s5 + $0x30] sm:$0xff]
  %v65 = vld [vmem:[%s5 + $0x38] sm:$0xff]
  %v66 = vld [vmem:[%s6] sm:$0xff]
  %v67 = vld [vmem:[%s6 + $0x8] sm:$0xff]
  %v68 = vld [vmem:[%s6 + $0x10] sm:$0xff]
  %v69 = vld [vmem:[%s6 + $0x18] sm:$0xff]
  %v70 = vld [vmem:[%s6 + $0x20] sm:$0xff]
  %v71 = vld [vmem:[%s6 + $0x28] sm:$0xff]
  %v72 = vld [vmem:[%s6 + $0x30] sm:$0xff]
  %v73 = vld [vmem:[%s6 + $0x38] sm:$0xff]
  %v74 = vld [vmem:[%s7] sm:$0xff]
  %v75 = vld [vmem:[%s7 + $0x8] sm:$0xff]
  %v76 = vld [vmem:[%s7 + $0x10] sm:$0xff]
  %v77 = vld [vmem:[%s7 + $0x18] sm:$0xff]
  %v78 = vld [vmem:[%s7 + $0x20] sm:$0xff]
  %v79 = vld [vmem:[%s7 + $0x28] sm:$0xff]
  %v80 = vld [vmem:[%s7 + $0x30] sm:$0xff]
  %v81 = vld [vmem:[%s7 + $0x38] sm:$0xff]
  %v82 = vld [vmem:[%s7 + $0x40] sm:$0xff]
  %v83 = vld [vmem:[%s7 + $0x48] sm:$0xff]
  %v84 = vld [vmem:[%s7 + $0x50] sm:$0xff]
  %v85 = vld [vmem:[%s7 + $0x58] sm:$0xff]
  %v86 = vld [vmem:[%s7 + $0x60] sm:$0xff]
  %v87 = vld [vmem:[%s7 + $0x68] sm:$0xff]
  %v88 = vld [vmem:[%s7 + $0x70] sm:$0xff]
  %v89 = vld [vmem:[%s7 + $0x78] sm:$0xff]
  %v90 = vld [vmem:[%s7 + $0x80] sm:$0xff]
  %v91 = vld [vmem:[%s7 + $0x88] sm:$0xff]
  %v92 = vld [vmem:[%s7 + $0x90] sm:$0xff]
  %v93 = vld [vmem:[%s7 + $0x98] sm:$0xff]
  %v94 = vld [vmem:[#allocation2] sm:$0x1]
  %v95 = vld [vmem:[%s9] sm:$0xff]
  %v96 = vld [vmem:[%s9 + $0x8] sm:$0xff]
  %v97 = vld [vmem:[%s9 + $0x10] sm:$0xff]
  %v98 = vld [vmem:[%s9 + $0x18] sm:$0xff]
  %v99 = vld [vmem:[%s9 + $0x20] sm:$0xff]
  %v100 = vld [vmem:[%s9 + $0x28] sm:$0xff]
  %v101 = vld [vmem:[%s9 + $0x30] sm:$0xff]
  %v102 = vld [vmem:[%s9 + $0x38] sm:$0xff]
  %v103 = vld [vmem:[%s9 + $0x40] sm:$0xff]
  %v104 = vld [vmem:[%s9 + $0x48] sm:$0xff]
  %v105 = vld [vmem:[%s9 + $0x50] sm:$0xff]
  %v106 = vld [vmem:[%s9 + $0x58] sm:$0xff]
  %v107 = vld [vmem:[%s9 + $0x60] sm:$0xff]
  %v108 = vld [vmem:[%s9 + $0x68] sm:$0xff]
  %v109 = vld [vmem:[%s9 + $0x70] sm:$0xff]
  %v110 = vld [vmem:[%s9 + $0x78] sm:$0xff]
  %v111 = vld [vmem:[%s9 + $0x80] sm:$0xff]
  %v112 = vld [vmem:[%s9 + $0x88] sm:$0xff]
  %v113 = vld [vmem:[%s9 + $0x90] sm:$0xff]
  %v114 = vld [vmem:[%s9 + $0x98] sm:$0xff]
  %v115 = vld [vmem:[%s9 + $0xa0] sm:$0xff]
  %v116 = vld [vmem:[%s9 + $0xa8] sm:$0xff]
  %v117 = vld [vmem:[%s9 + $0xb0] sm:$0xff]
  %v118 = vld [vmem:[%s9 + $0xb8] sm:$0xff]
  %v119 = vld [vmem:[%s9 + $0xc0] sm:$0xff]
  %v120 = vld [vmem:[%s9 + $0xc8] sm:$0xff]
  %v121 = vld [vmem:[%s10] sm:$0xff]
  %v122 = vld [vmem:[%s10 + $0x8] sm:$0xff]
  %v123 = vld [vmem:[%s10 + $0x10] sm:$0xff]
  %v124 = vld [vmem:[%s10 + $0x18] sm:$0xff]
  %v125 = vld [vmem:[%s10 + $0x20] sm:$0xff]
  %v126 = vld [vmem:[%s10 + $0x28] sm:$0xff]
  %v127 = vld [vmem:[%s10 + $0x30] sm:$0xff]
  %v128 = vld [vmem:[%s10 + $0x38] sm:$0xff]
  %v129 = vld [vmem:[%s10 + $0x40] sm:$0xff]
  %v130 = vld [vmem:[%s10 + $0x48] sm:$0xff]
  %v131 = vld [vmem:[%s10 + $0x50] sm:$0xff]
  %v132 = vld [vmem:[%s10 + $0x58] sm:$0xff]
  %v133 = vld [vmem:[%s10 + $0x60] sm:$0x3f]
  %v134 = vld [vmem:[%s11] sm:$0xff]
  %v135 = vld [vmem:[%s11 + $0x8] sm:$0xff]
  %v136 = vld [vmem:[%s11 + $0x10] sm:$0xff]
  %v137 = vld [vmem:[%s11 + $0x18] sm:$0xff]
  %v138 = vld [vmem:[%s11 + $0x20] sm:$0xff]
  %v139 = vld [vmem:[%s11 + $0x28] sm:$0xff]
  %v140 = vld [vmem:[%s11 + $0x30] sm:$0x7]
  %v141 = vld [vmem:[%s12] sm:$0x1]
  %v142 = vld [vmem:[%s0] sm:$0xff]
  %v143 = vld [vmem:[%s0 + $0x8] sm:$0xff]
  %146 = vrot.lane.b32.xlu0 %v142, 1
  %v147 = vpop.permute.xlu0 %146
  %148 = vrot.lane.b32.xlu0 %v143, 1
  %v149 = vpop.permute.xlu0 %148
  %vm150 = vcmask 7168
  %v151 = vsel %vm150, %v147, %v149
  %v154 = vsel %vm150, 0.0, %v147
  %155 = vrot.lane.b32.xlu0 %v142, 127
  %v156 = vpop.permute.xlu0 %155
  %157 = vrot.lane.b32.xlu0 %v143, 127
  %v158 = vpop.permute.xlu0 %157
  %vm159 = vcmask 1039360
  %v160 = vsel %vm159, %v156, %v158
  %vm163 = vcmask 646144
  %v164 = vsel %vm163, %v158, 0.0
  %166 = vset.pattern.permute.xlu0 0
  %167 = vperm.xlu0 %166, %v48
  %v168 = vpop.permute.xlu0 %167
  %171 = vset.pattern.permute.xlu0 0
  %172 = vperm.xlu0 %171, %v49
  %v173 = vpop.permute.xlu0 %172
  %vm175 = vcmask 195584
  %v177 = vsel %vm175, %v46, 0
  %v180 = vsel %vm175, %v47, 0
  %182 = vmatprep.subr.mxu0 %v151
  %183 = vmatpush1.msra.mxu0 %v154
  %184 = vmatprep.subr.mxu0 %v143
  %185 = vmatpush1.msra.mxu0 %v142
  %186 = vmatprep.subr.mxu0 %v164
  %187 = vmatpush1.msra.mxu0 %v160
  %188 = vmatprep.subr.mxu0 0.0
  %189 = vmatpush1.msra.mxu0 0.0
  %190 = vmatprep.subr.mxu0 0.0
  %191 = vmatpush1.msra.mxu0 0.0
  %192 = vmatprep.subr.mxu0 0.0
  %193 = vmatpush1.msra.mxu0 0.0
  %194 = vmatprep.subr.mxu0 0.0
  %195 = vmatpush1.msra.mxu0 0.0
  %196 = vmatprep.subr.mxu0 0.0
  %197 = vmatpush1.msra.mxu0 0.0
  %198 = vmatprep.subr.mxu0 0.0
  %199 = vmatpush1.msra.mxu0 0.0
  %200 = vmatprep.subr.mxu0 0.0
  %201 = vmatpush1.msra.mxu0 0.0
  %202 = vmatprep.subr.mxu0 0.0
  %203 = vmatpush1.msra.mxu0 0.0
  %204 = vmatprep.subr.mxu0 0.0
  %205 = vmatpush1.msra.mxu0 0.0
  %206 = vmatprep.subr.mxu0 0.0
  %207 = vmatpush1.msra.mxu0 0.0
  %208 = vmatprep.subr.mxu0 0.0
  %209 = vmatpush1.msra.mxu0 0.0
  %210 = vmatprep.subr.mxu0 0.0
  %211 = vmatpush1.msra.mxu0 0.0
  %212 = vmatprep.subr.mxu0 0.0
  %213 = vmatpush1.msra.mxu0 0.0
  %214 = vmatprep.subr.mxu0 0.0
  %215 = vmatpush1.msra.mxu0 0.0
  %216 = vmatprep.subr.mxu0 0.0
  %217 = vmatpush1.msra.mxu0 0.0
  %218 = vmatprep.subr.mxu0 0.0
  %219 = vmatpush1.msra.mxu0 0.0
  %220 = vmatprep.subr.mxu0 0.0
  %221 = vmatpush1.msra.mxu0 0.0
  %222 = vmatprep.subr.mxu0 0.0
  %223 = vmatpush1.msra.mxu0 0.0
  %224 = vmatprep.subr.mxu0 0.0
  %225 = vmatpush1.msra.mxu0 0.0
  %226 = vmatprep.subr.mxu0 0.0
  %227 = vmatpush1.msra.mxu0 0.0
  %228 = vmatprep.subr.mxu0 0.0
  %229 = vmatpush1.msra.mxu0 0.0
  %230 = vmatprep.subr.mxu0 0.0
  %231 = vmatpush1.msra.mxu0 0.0
  %232 = vmatprep.subr.mxu0 0.0
  %233 = vmatpush1.msra.mxu0 0.0
  %234 = vmatprep.subr.mxu0 0.0
  %235 = vmatpush1.msra.mxu0 0.0
  %236 = vmatprep.subr.mxu0 0.0
  %237 = vmatpush1.msra.mxu0 0.0
  %238 = vmatprep.subr.mxu0 0.0
  %239 = vmatpush1.msra.mxu0 0.0
  %240 = vmatprep.subr.mxu0 0.0
  %241 = vmatpush1.msra.mxu0 0.0
  %242 = vmatprep.subr.mxu0 0.0
  %243 = vmatpush1.msra.mxu0 0.0
  %244 = vmatprep.subr.mxu0 0.0
  %245 = vmatpush1.msra.mxu0 0.0
  %246 = vmatprep.mubr.f32.mxu0 0.0
  %247 = vmatmul.mubr.f32.gmra.mrb[0].mxu0 %v177
  %v248 = vpop.f32.mrb[0].mxu0
  %v249 = vadd.f32 %v168, %v248
  %v250 = vpop.f32.mrb[0].mxu0
  %v251 = vadd.f32 %v168, %v250
  %252 = vmatprep.mubr.f32.mxu0 0.0
  %253 = vmatmul.mubr.f32.gmra.mrb[0].mxu0 %v180
  %v254 = vpop.f32.mrb[0].mxu0
  %v255 = vadd.f32 %v173, %v254
  %v256 = vpop.f32.mrb[0].mxu0
  %v257 = vadd.f32 %v173, %v256
  %258 = vdwg.mxu0
  %v259 = vmax.f32 %v249, 0.0
  %v260 = vmax.f32 %v251, 0.0
  %v261 = vmax.f32 %v255, 0.0
  %v262 = vmax.f32 %v257, 0.0
  %267 = vrot.lane.b32.xlu0 %v259, 1
  %v268 = vpop.permute.xlu0 %267
  %269 = vrot.lane.b32.xlu0 %v260, 1
  %v270 = vpop.permute.xlu0 %269
  %271 = vrot.lane.b32.xlu0 %v261, 1
  %v272 = vpop.permute.xlu0 %271
  %273 = vrot.lane.b32.xlu0 %v262, 1
  %v274 = vpop.permute.xlu0 %273
  %v275 = vsel %vm150, %v268, %v270
  %v276 = vsel %vm150, %v272, %v274
  %v281 = vsel %vm150, 0.0, %v268
  %v282 = vsel %vm150, 0.0, %v272
  %283 = vrot.lane.b32.xlu0 %v259, 127
  %v284 = vpop.permute.xlu0 %283
  %285 = vrot.lane.b32.xlu0 %v260, 127
  %v286 = vpop.permute.xlu0 %285
  %287 = vrot.lane.b32.xlu0 %v261, 127
  %v288 = vpop.permute.xlu0 %287
  %289 = vrot.lane.b32.xlu0 %v262, 127
  %v290 = vpop.permute.xlu0 %289
  %v291 = vsel %vm159, %v284, %v286
  %v292 = vsel %vm159, %v288, %v290
  %v297 = vsel %vm163, %v286, 0.0
  %v298 = vsel %vm163, %v290, 0.0
  %300 = vset.pattern.permute.xlu0 0
  %301 = vperm.xlu0 %300, %v54
  %v302 = vpop.permute.xlu0 %301
  %305 = vset.pattern.permute.xlu0 0
  %306 = vperm.xlu0 %305, %v55
  %v307 = vpop.permute.xlu0 %306
  %310 = vset.pattern.permute.xlu0 0
  %311 = vperm.xlu0 %310, %v56
  %v312 = vpop.permute.xlu0 %311
  %315 = vset.pattern.permute.xlu0 0
  %316 = vperm.xlu0 %315, %v57
  %v317 = vpop.permute.xlu0 %316
  %vm319 = vcmask 392192
  %v321 = vsel %vm319, %v50, 0
  %v324 = vsel %vm319, %v51, 0
  %v327 = vsel %vm319, %v52, 0
  %v330 = vsel %vm319, %v53, 0
  %332 = vmatprep.subr.mxu0 %v275
  %333 = vmatpush1.msra.mxu0 %v281
  %334 = vmatprep.subr.mxu0 %v276
  %335 = vmatpush1.msra.mxu0 %v282
  %336 = vmatprep.subr.mxu0 %v260
  %337 = vmatpush1.msra.mxu0 %v259
  %338 = vmatprep.subr.mxu0 %v262
  %339 = vmatpush1.msra.mxu0 %v261
  %340 = vmatprep.subr.mxu0 %v297
  %341 = vmatpush1.msra.mxu0 %v291
  %342 = vmatprep.subr.mxu0 %v298
  %343 = vmatpush1.msra.mxu0 %v292
  %344 = vmatprep.subr.mxu0 0.0
  %345 = vmatpush1.msra.mxu0 0.0
  %346 = vmatprep.subr.mxu0 0.0
  %347 = vmatpush1.msra.mxu0 0.0
  %348 = vmatprep.subr.mxu0 0.0
  %349 = vmatpush1.msra.mxu0 0.0
  %350 = vmatprep.subr.mxu0 0.0
  %351 = vmatpush1.msra.mxu0 0.0
  %352 = vmatprep.subr.mxu0 0.0
  %353 = vmatpush1.msra.mxu0 0.0
  %354 = vmatprep.subr.mxu0 0.0
  %355 = vmatpush1.msra.mxu0 0.0
  %356 = vmatprep.subr.mxu0 0.0
  %357 = vmatpush1.msra.mxu0 0.0
  %358 = vmatprep.subr.mxu0 0.0
  %359 = vmatpush1.msra.mxu0 0.0
  %360 = vmatprep.subr.mxu0 0.0
  %361 = vmatpush1.msra.mxu0 0.0
  %362 = vmatprep.subr.mxu0 0.0
  %363 = vmatpush1.msra.mxu0 0.0
  %364 = vmatprep.subr.mxu0 0.0
  %365 = vmatpush1.msra.mxu0 0.0
  %366 = vmatprep.subr.mxu0 0.0
  %367 = vmatpush1.msra.mxu0 0.0
  %368 = vmatprep.subr.mxu0 0.0
  %369 = vmatpush1.msra.mxu0 0.0
  %370 = vmatprep.subr.mxu0 0.0
  %371 = vmatpush1.msra.mxu0 0.0
  %372 = vmatprep.subr.mxu0 0.0
  %373 = vmatpush1.msra.mxu0 0.0
  %374 = vmatprep.subr.mxu0 0.0
  %375 = vmatpush1.msra.mxu0 0.0
  %376 = vmatprep.subr.mxu0 0.0
  %377 = vmatpush1.msra.mxu0 0.0
  %378 = vmatprep.subr.mxu0 0.0
  %379 = vmatpush1.msra.mxu0 0.0
  %380 = vmatprep.subr.mxu0 0.0
  %381 = vmatpush1.msra.mxu0 0.0
  %382 = vmatprep.subr.mxu0 0.0
  %383 = vmatpush1.msra.mxu0 0.0
  %384 = vmatprep.subr.mxu0 0.0
  %385 = vmatpush1.msra.mxu0 0.0
  %386 = vmatprep.subr.mxu0 0.0
  %387 = vmatpush1.msra.mxu0 0.0
  %388 = vmatprep.subr.mxu0 0.0
  %389 = vmatpush1.msra.mxu0 0.0
  %390 = vmatprep.subr.mxu0 0.0
  %391 = vmatpush1.msra.mxu0 0.0
  %392 = vmatprep.subr.mxu0 0.0
  %393 = vmatpush1.msra.mxu0 0.0
  %394 = vmatprep.subr.mxu0 0.0
  %395 = vmatpush1.msra.mxu0 0.0
  %396 = vmatprep.mubr.f32.mxu0 0.0
  %397 = vmatmul.mubr.f32.gmra.mrb[0].mxu0 %v321
  %v398 = vpop.f32.mrb[0].mxu0
  %v399 = vadd.f32 %v302, %v398
  %v400 = vpop.f32.mrb[0].mxu0
  %v401 = vadd.f32 %v302, %v400
  %402 = vmatprep.mubr.f32.mxu0 0.0
  %403 = vmatmul.mubr.f32.gmra.mrb[0].mxu0 %v324
  %v404 = vpop.f32.mrb[0].mxu0
  %v405 = vadd.f32 %v307, %v404
  %v406 = vpop.f32.mrb[0].mxu0
  %v407 = vadd.f32 %v307, %v406
  %408 = vmatprep.mubr.f32.mxu0 0.0
  %409 = vmatmul.mubr.f32.gmra.mrb[0].mxu0 %v327
  %v410 = vpop.f32.mrb[0].mxu0
  %v411 = vadd.f32 %v312, %v410
  %v412 = vpop.f32.mrb[0].mxu0
  %v413 = vadd.f32 %v312, %v412
  %414 = vmatprep.mubr.f32.mxu0 0.0
  %415 = vmatmul.mubr.f32.gmra.mrb[0].mxu0 %v330
  %v416 = vpop.f32.mrb[0].mxu0
  %v417 = vadd.f32 %v317, %v416
  %v418 = vpop.f32.mrb[0].mxu0
  %v419 = vadd.f32 %v317, %v418
  %420 = vdwg.mxu0
  %v421 = vmax.f32 %v399, 0.0
  %v422 = vmax.f32 %v401, 0.0
  %v423 = vmax.f32 %v405, 0.0
  %v424 = vmax.f32 %v407, 0.0
  %v425 = vmax.f32 %v411, 0.0
  %v426 = vmax.f32 %v413, 0.0
  %v427 = vmax.f32 %v417, 0.0
  %v428 = vmax.f32 %v419, 0.0
  %437 = vrot.lane.b32.xlu0 %v421, 127
  %v438 = vpop.permute.xlu0 %437
  %439 = vrot.lane.b32.xlu0 %v422, 127
  %v440 = vpop.permute.xlu0 %439
  %441 = vrot.lane.b32.xlu0 %v423, 127
  %v442 = vpop.permute.xlu0 %441
  %443 = vrot.lane.b32.xlu0 %v424, 127
  %v444 = vpop.permute.xlu0 %443
  %445 = vrot.lane.b32.xlu0 %v425, 127
  %v446 = vpop.permute.xlu0 %445
  %447 = vrot.lane.b32.xlu0 %v426, 127
  %v448 = vpop.permute.xlu0 %447
  %449 = vrot.lane.b32.xlu0 %v427, 127
  %v450 = vpop.permute.xlu0 %449
  %451 = vrot.lane.b32.xlu0 %v428, 127
  %v452 = vpop.permute.xlu0 %451
  %v453 = vsel %vm159, %v438, %v440
  %v454 = vsel %vm159, %v442, %v444
  %v455 = vsel %vm159, %v446, %v448
  %v456 = vsel %vm159, %v450, %v452
  %v465 = vsel %vm163, %v440, 0.0
  %v466 = vsel %vm163, %v444, 0.0
  %v467 = vsel %vm163, %v448, 0.0
  %v468 = vsel %vm163, %v452, 0.0
  %v469 = vmax.f32 %v421, %v453
  %v470 = vmax.f32 %v422, %v465
  %v471 = vmax.f32 %v423, %v454
  %v472 = vmax.f32 %v424, %v466
  %v473 = vmax.f32 %v425, %v455
  %v474 = vmax.f32 %v426, %v467
  %v475 = vmax.f32 %v427, %v456
  %v476 = vmax.f32 %v428, %v468
  %s477 = scalar_lea.vmem %s0, 16
  %v478 = vld [vmem:[%s477] sm:$0xff]
  %v479 = vld [vmem:[%s477 + $0x8] sm:$0xff]
  %482 = vrot.lane.b32.xlu0 %v478, 1
  %v483 = vpop.permute.xlu0 %482
  %484 = vrot.lane.b32.xlu0 %v479, 1
  %v485 = vpop.permute.xlu0 %484
  %v486 = vsel %vm150, %v483, %v485
  %v489 = vsel %vm150, 0.0, %v483
  %490 = vrot.lane.b32.xlu0 %v478, 127
  %v491 = vpop.permute.xlu0 %490
  %492 = vrot.lane.b32.xlu0 %v479, 127
  %v493 = vpop.permute.xlu0 %492
  %v494 = vsel %vm159, %v491, %v493
  %v497 = vsel %vm163, %v493, 0.0
  %498 = vmatprep.subr.mxu0 %v486
  %499 = vmatpush1.msra.mxu0 %v489
  %500 = vmatprep.subr.mxu0 %v479
  %501 = vmatpush1.msra.mxu0 %v478
  %502 = vmatprep.subr.mxu0 %v497
  %503 = vmatpush1.msra.mxu0 %v494
  %504 = vmatprep.subr.mxu0 0.0
  %505 = vmatpush1.msra.mxu0 0.0
  %506 = vmatprep.subr.mxu0 0.0
  %507 = vmatpush1.msra.mxu0 0.0
  %508 = vmatprep.subr.mxu0 0.0
  %509 = vmatpush1.msra.mxu0 0.0
  %510 = vmatprep.subr.mxu0 0.0
  %511 = vmatpush1.msra.mxu0 0.0
  %512 = vmatprep.subr.mxu0 0.0
  %513 = vmatpush1.msra.mxu0 0.0
  %514 = vmatprep.subr.mxu0 0.0
  %515 = vmatpush1.msra.mxu0 0.0
  %516 = vmatprep.subr.mxu0 0.0
  %517 = vmatpush1.msra.mxu0 0.0
  %518 = vmatprep.subr.mxu0 0.0
  %519 = vmatpush1.msra.mxu0 0.0
  %520 = vmatprep.subr.mxu0 0.0
  %521 = vmatpush1.msra.mxu0 0.0
  %522 = vmatprep.subr.mxu0 0.0
  %523 = vmatpush1.msra.mxu0 0.0
  %524 = vmatprep.subr.mxu0 0.0
  %525 = vmatpush1.msra.mxu0 0.0
  %526 = vmatprep.subr.mxu0 0.0
  %527 = vmatpush1.msra.mxu0 0.0
  %528 = vmatprep.subr.mxu0 0.0
  %529 = vmatpush1.msra.mxu0 0.0
  %530 = vmatprep.subr.mxu0 0.0
  %531 = vmatpush1.msra.mxu0 0.0
  %532 = vmatprep.subr.mxu0 0.0
  %533 = vmatpush1.msra.mxu0 0.0
  %534 = vmatprep.subr.mxu0 0.0
  %535 = vmatpush1.msra.mxu0 0.0
  %536 = vmatprep.subr.mxu0 0.0
  %537 = vmatpush1.msra.mxu0 0.0
  %538 = vmatprep.subr.mxu0 0.0
  %539 = vmatpush1.msra.mxu0 0.0
  %540 = vmatprep.subr.mxu0 0.0
  %541 = vmatpush1.msra.mxu0 0.0
  %542 = vmatprep.subr.mxu0 0.0
  %543 = vmatpush1.msra.mxu0 0.0
  %544 = vmatprep.subr.mxu0 0.0
  %545 = vmatpush1.msra.mxu0 0.0
  %546 = vmatprep.subr.mxu0 0.0
  %547 = vmatpush1.msra.mxu0 0.0
  %548 = vmatprep.subr.mxu0 0.0
  %549 = vmatpush1.msra.mxu0 0.0
  %550 = vmatprep.subr.mxu0 0.0
  %551 = vmatpush1.msra.mxu0 0.0
  %552 = vmatprep.subr.mxu0 0.0
  %553 = vmatpush1.msra.mxu0 0.0
  %554 = vmatprep.subr.mxu0 0.0
  %555 = vmatpush1.msra.mxu0 0.0
  %556 = vmatprep.subr.mxu0 0.0
  %557 = vmatpush1.msra.mxu0 0.0
  %558 = vmatprep.subr.mxu0 0.0
  %559 = vmatpush1.msra.mxu0 0.0
  %560 = vmatprep.subr.mxu0 0.0
  %561 = vmatpush1.msra.mxu0 0.0
  %562 = vmatprep.mubr.f32.mxu0 0.0
  %563 = vmatmul.mubr.f32.gmra.mrb[0].mxu0 %v177
  %v564 = vpop.f32.mrb[0].mxu0
  %v565 = vadd.f32 %v168, %v564
  %v566 = vpop.f32.mrb[0].mxu0
  %v567 = vadd.f32 %v168, %v566
  %568 = vmatprep.mubr.f32.mxu0 0.0
  %569 = vmatmul.mubr.f32.gmra.mrb[0].mxu0 %v180
  %v570 = vpop.f32.mrb[0].mxu0
  %v571 = vadd.f32 %v173, %v570
  %v572 = vpop.f32.mrb[0].mxu0
  %v573 = vadd.f32 %v173, %v572
  %574 = vdwg.mxu0
  %v575 = vmax.f32 %v565, 0.0
  %v576 = vmax.f32 %v567, 0.0
  %v577 = vmax.f32 %v571, 0.0
  %v578 = vmax.f32 %v573, 0.0
  %583 = vrot.lane.b32.xlu0 %v575, 1
  %v584 = vpop.permute.xlu0 %583
  %585 = vrot.lane.b32.xlu0 %v576, 1
  %v586 = vpop.permute.xlu0 %585
  %587 = vrot.lane.b32.xlu0 %v577, 1
  %v588 = vpop.permute.xlu0 %587
  %589 = vrot.lane.b32.xlu0 %v578, 1
  %v590 = vpop.permute.xlu0 %589
  %v591 = vsel %vm150, %v584, %v586
  %v592 = vsel %vm150, %v588, %v590
  %v597 = vsel %vm150, 0.0, %v584
  %v598 = vsel %vm150, 0.0, %v588
  %599 = vrot.lane.b32.xlu0 %v575, 127
  %v600 = vpop.permute.xlu0 %599
  %601 = vrot.lane.b32.xlu0 %v576, 127
  %v602 = vpop.permute.xlu0 %601
  %603 = vrot.lane.b32.xlu0 %v577, 127
  %v604 = vpop.permute.xlu0 %603
  %605 = vrot.lane.b32.xlu0 %v578, 127
  %v606 = vpop.permute.xlu0 %605
  %v607 = vsel %vm159, %v600, %v602
  %v608 = vsel %vm159, %v604, %v606
  %v613 = vsel %vm163, %v602, 0.0
  %v614 = vsel %vm163, %v606, 0.0
  %615 = vmatprep.subr.mxu0 %v591
  %616 = vmatpush1.msra.mxu0 %v597
  %617 = vmatprep.subr.mxu0 %v592
  %618 = vmatpush1.msra.mxu0 %v598
  %619 = vmatprep.subr.mxu0 %v576
  %620 = vmatpush1.msra.mxu0 %v575
  %621 = vmatprep.subr.mxu0 %v578
  %622 = vmatpush1.msra.mxu0 %v577
  %623 = vmatprep.subr.mxu0 %v613
  %624 = vmatpush1.msra.mxu0 %v607
  %625 = vmatprep.subr.mxu0 %v614
  %626 = vmatpush1.msra.mxu0 %v608
  %627 = vmatprep.subr.mxu0 0.0
  %628 = vmatpush1.msra.mxu0 0.0
  %629 = vmatprep.subr.mxu0 0.0
  %630 = vmatpush1.msra.mxu0 0.0
  %631 = vmatprep.subr.mxu0 0.0
  %632 = vmatpush1.msra.mxu0 0.0
  %633 = vmatprep.subr.mxu0 0.0
  %634 = vmatpush1.msra.mxu0 0.0
  %635 = vmatprep.subr.mxu0 0.0
  %636 = vmatpush1.msra.mxu0 0.0
  %637 = vmatprep.subr.mxu0 0.0
  %638 = vmatpush1.msra.mxu0 0.0
  %639 = vmatprep.subr.mxu0 0.0
  %640 = vmatpush1.msra.mxu0 0.0
  %641 = vmatprep.subr.mxu0 0.0
  %642 = vmatpush1.msra.mxu0 0.0
  %643 = vmatprep.subr.mxu0 0.0
  %644 = vmatpush1.msra.mxu0 0.0
  %645 = vmatprep.subr.mxu0 0.0
  %646 = vmatpush1.msra.mxu0 0.0
  %647 = vmatprep.subr.mxu0 0.0
  %648 = vmatpush1.msra.mxu0 0.0
  %649 = vmatprep.subr.mxu0 0.0
  %650 = vmatpush1.msra.mxu0 0.0
  %651 = vmatprep.subr.mxu0 0.0
  %652 = vmatpush1.msra.mxu0 0.0
  %653 = vmatprep.subr.mxu0 0.0
  %654 = vmatpush1.msra.mxu0 0.0
  %655 = vmatprep.subr.mxu0 0.0
  %656 = vmatpush1.msra.mxu0 0.0
  %657 = vmatprep.subr.mxu0 0.0
  %658 = vmatpush1.msra.mxu0 0.0
  %659 = vmatprep.subr.mxu0 0.0
  %660 = vmatpush1.msra.mxu0 0.0
  %661 = vmatprep.subr.mxu0 0.0
  %662 = vmatpush1.msra.mxu0 0.0
  %663 = vmatprep.subr.mxu0 0.0
  %664 = vmatpush1.msra.mxu0 0.0
  %665 = vmatprep.subr.mxu0 0.0
  %666 = vmatpush1.msra.mxu0 0.0
  %667 = vmatprep.subr.mxu0 0.0
  %668 = vmatpush1.msra.mxu0 0.0
  %669 = vmatprep.subr.mxu0 0.0
  %670 = vmatpush1.msra.mxu0 0.0
  %671 = vmatprep.subr.mxu0 0.0
  %672 = vmatpush1.msra.mxu0 0.0
  %673 = vmatprep.subr.mxu0 0.0
  %674 = vmatpush1.msra.mxu0 0.0
  %675 = vmatprep.subr.mxu0 0.0
  %676 = vmatpush1.msra.mxu0 0.0
  %677 = vmatprep.subr.mxu0 0.0
  %678 = vmatpush1.msra.mxu0 0.0
  %679 = vmatprep.mubr.f32.mxu0 0.0
  %680 = vmatmul.mubr.f32.gmra.mrb[0].mxu0 %v321
  %v681 = vpop.f32.mrb[0].mxu0
  %v682 = vadd.f32 %v302, %v681
  %v683 = vpop.f32.mrb[0].mxu0
  %v684 = vadd.f32 %v302, %v683
  %685 = vmatprep.mubr.f32.mxu0 0.0
  %686 = vmatmul.mubr.f32.gmra.mrb[0].mxu0 %v324
  %v687 = vpop.f32.mrb[0].mxu0
  %v688 = vadd.f32 %v307, %v687
  %v689 = vpop.f32.mrb[0].mxu0
  %v690 = vadd.f32 %v307, %v689
  %691 = vmatprep.mubr.f32.mxu0 0.0
  %692 = vmatmul.mubr.f32.gmra.mrb[0].mxu0 %v327
  %v693 = vpop.f32.mrb[0].mxu0
  %v694 = vadd.f32 %v312, %v693
  %v695 = vpop.f32.mrb[0].mxu0
  %v696 = vadd.f32 %v312, %v695
  %697 = vmatprep.mubr.f32.mxu0 0.0
  %698 = vmatmul.mubr.f32.gmra.mrb[0].mxu0 %v330
  %v699 = vpop.f32.mrb[0].mxu0
  %v700 = vadd.f32 %v317, %v699
  %v701 = vpop.f32.mrb[0].mxu0
  %v702 = vadd.f32 %v317, %v701
  %703 = vdwg.mxu0
  %v704 = vmax.f32 %v682, 0.0
  %v705 = vmax.f32 %v684, 0.0
  %v706 = vmax.f32 %v688, 0.0
  %v707 = vmax.f32 %v690, 0.0
  %v708 = vmax.f32 %v694, 0.0
  %v709 = vmax.f32 %v696, 0.0
  %v710 = vmax.f32 %v700, 0.0
  %v711 = vmax.f32 %v702, 0.0
  %720 = vrot.lane.b32.xlu0 %v704, 127
  %v721 = vpop.permute.xlu0 %720
  %722 = vrot.lane.b32.xlu0 %v705, 127
  %v723 = vpop.permute.xlu0 %722
  %724 = vrot.lane.b32.xlu0 %v706, 127
  %v725 = vpop.permute.xlu0 %724
  %726 = vrot.lane.b32.xlu0 %v707, 127
  %v727 = vpop.permute.xlu0 %726
  %728 = vrot.lane.b32.xlu0 %v708, 127
  %v729 = vpop.permute.xlu0 %728
  %730 = vrot.lane.b32.xlu0 %v709, 127
  %v731 = vpop.permute.xlu0 %730
  %732 = vrot.lane.b32.xlu0 %v710, 127
  %v733 = vpop.permute.xlu0 %732
  %734 = vrot.lane.b32.xlu0 %v711, 127
  %v735 = vpop.permute.xlu0 %734
  %v736 = vsel %vm159, %v721, %v723
  %v737 = vsel %vm159, %v725, %v727
  %v738 = vsel %vm159, %v729, %v731
  %v739 = vsel %vm159, %v733, %v735
  %v748 = vsel %vm163, %v723, 0.0
  %v749 = vsel %vm163, %v727, 0.0
  %v750 = vsel %vm163, %v731, 0.0
  %v751 = vsel %vm163, %v735, 0.0
  %v752 = vmax.f32 %v704, %v736
  %v753 = vmax.f32 %v705, %v748
  %v754 = vmax.f32 %v706, %v737
  %v755 = vmax.f32 %v707, %v749
  %v756 = vmax.f32 %v708, %v738
  %v757 = vmax.f32 %v709, %v750
  %v758 = vmax.f32 %v710, %v739
  %v759 = vmax.f32 %v711, %v751
  %s760 = scalar_lea.vmem %s0, 32
  %v761 = vld [vmem:[%s760] sm:$0xff]
  %v762 = vld [vmem:[%s760 + $0x8] sm:$0xff]
  %765 = vrot.lane.b32.xlu0 %v761, 1
  %v766 = vpop.permute.xlu0 %765
  %767 = vrot.lane.b32.xlu0 %v762, 1
  %v768 = vpop.permute.xlu0 %767
  %v769 = vsel %vm150, %v766, %v768
  %v772 = vsel %vm150, 0.0, %v766
  %773 = vrot.lane.b32.xlu0 %v761, 127
  %v774 = vpop.permute.xlu0 %773
  %775 = vrot.lane.b32.xlu0 %v762, 127
  %v776 = vpop.permute.xlu0 %775
  %v777 = vsel %vm159, %v774, %v776
  %v780 = vsel %vm163, %v776, 0.0
  %781 = vmatprep.subr.mxu0 %v769
  %782 = vmatpush1.msra.mxu0 %v772
  %783 = vmatprep.subr.mxu0 %v762
  %784 = vmatpush1.msra.mxu0 %v761
  %785 = vmatprep.subr.mxu0 %v780
  %786 = vmatpush1.msra.mxu0 %v777
  %787 = vmatprep.subr.mxu0 0.0
  %788 = vmatpush1.msra.mxu0 0.0
  %789 = vmatprep.subr.mxu0 0.0
  %790 = vmatpush1.msra.mxu0 0.0
  %791 = vmatprep.subr.mxu0 0.0
  %792 = vmatpush1.msra.mxu0 0.0
  %793 = vmatprep.subr.mxu0 0.0
  %794 = vmatpush1.msra.mxu0 0.0
  %795 = vmatprep.subr.mxu0 0.0
  %796 = vmatpush1.msra.mxu0 0.0
  %797 = vmatprep.subr.mxu0 0.0
  %798 = vmatpush1.msra.mxu0 0.0
  %799 = vmatprep.subr.mxu0 0.0
  %800 = vmatpush1.msra.mxu0 0.0
  %801 = vmatprep.subr.mxu0 0.0
  %802 = vmatpush1.msra.mxu0 0.0
  %803 = vmatprep.subr.mxu0 0.0
  %804 = vmatpush1.msra.mxu0 0.0
  %805 = vmatprep.subr.mxu0 0.0
  %806 = vmatpush1.msra.mxu0 0.0
  %807 = vmatprep.subr.mxu0 0.0
  %808 = vmatpush1.msra.mxu0 0.0
  %809 = vmatprep.subr.mxu0 0.0
  %810 = vmatpush1.msra.mxu0 0.0
  %811 = vmatprep.subr.mxu0 0.0
  %812 = vmatpush1.msra.mxu0 0.0
  %813 = vmatprep.subr.mxu0 0.0
  %814 = vmatpush1.msra.mxu0 0.0
  %815 = vmatprep.subr.mxu0 0.0
  %816 = vmatpush1.msra.mxu0 0.0
  %817 = vmatprep.subr.mxu0 0.0
  %818 = vmatpush1.msra.mxu0 0.0
  %819 = vmatprep.subr.mxu0 0.0
  %820 = vmatpush1.msra.mxu0 0.0
  %821 = vmatprep.subr.mxu0 0.0
  %822 = vmatpush1.msra.mxu0 0.0
  %823 = vmatprep.subr.mxu0 0.0
  %824 = vmatpush1.msra.mxu0 0.0
  %825 = vmatprep.subr.mxu0 0.0
  %826 = vmatpush1.msra.mxu0 0.0
  %827 = vmatprep.subr.mxu0 0.0
  %828 = vmatpush1.msra.mxu0 0.0
  %829 = vmatprep.subr.mxu0 0.0
  %830 = vmatpush1.msra.mxu0 0.0
  %831 = vmatprep.subr.mxu0 0.0
  %832 = vmatpush1.msra.mxu0 0.0
  %833 = vmatprep.subr.mxu0 0.0
  %834 = vmatpush1.msra.mxu0 0.0
  %835 = vmatprep.subr.mxu0 0.0
  %836 = vmatpush1.msra.mxu0 0.0
  %837 = vmatprep.subr.mxu0 0.0
  %838 = vmatpush1.msra.mxu0 0.0
  %839 = vmatprep.subr.mxu0 0.0
  %840 = vmatpush1.msra.mxu0 0.0
  %841 = vmatprep.subr.mxu0 0.0
  %842 = vmatpush1.msra.mxu0 0.0
  %843 = vmatprep.subr.mxu0 0.0
  %844 = vmatpush1.msra.mxu0 0.0
  %845 = vmatprep.mubr.f32.mxu0 0.0
  %846 = vmatmul.mubr.f32.gmra.mrb[0].mxu0 %v177
  %v847 = vpop.f32.mrb[0].mxu0
  %v848 = vadd.f32 %v168, %v847
  %v849 = vpop.f32.mrb[0].mxu0
  %v850 = vadd.f32 %v168, %v849
  %851 = vmatprep.mubr.f32.mxu0 0.0
  %852 = vmatmul.mubr.f32.gmra.mrb[0].mxu0 %v180
  %v853 = vpop.f32.mrb[0].mxu0
  %v854 = vadd.f32 %v173, %v853
  %v855 = vpop.f32.mrb[0].mxu0
  %v856 = vadd.f32 %v173, %v855
  %857 = vdwg.mxu0
  %v858 = vmax.f32 %v848, 0.0
  %v859 = vmax.f32 %v850, 0.0
  %v860 = vmax.f32 %v854, 0.0
  %v861 = vmax.f32 %v856, 0.0
  %866 = vrot.lane.b32.xlu0 %v858, 1
  %v867 = vpop.permute.xlu0 %866
  %868 = vrot.lane.b32.xlu0 %v859, 1
  %v869 = vpop.permute.xlu0 %868
  %870 = vrot.lane.b32.xlu0 %v860, 1
  %v871 = vpop.permute.xlu0 %870
  %872 = vrot.lane.b32.xlu0 %v861, 1
  %v873 = vpop.permute.xlu0 %872
  %v874 = vsel %vm150, %v867, %v869
  %v875 = vsel %vm150, %v871, %v873
  %v880 = vsel %vm150, 0.0, %v867
  %v881 = vsel %vm150, 0.0, %v871
  %882 = vrot.lane.b32.xlu0 %v858, 127
  %v883 = vpop.permute.xlu0 %882
  %884 = vrot.lane.b32.xlu0 %v859, 127
  %v885 = vpop.permute.xlu0 %884
  %886 = vrot.lane.b32.xlu0 %v860, 127
  %v887 = vpop.permute.xlu0 %886
  %888 = vrot.lane.b32.xlu0 %v861, 127
  %v889 = vpop.permute.xlu0 %888
  %v890 = vsel %vm159, %v883, %v885
  %v891 = vsel %vm159, %v887, %v889
  %v896 = vsel %vm163, %v885, 0.0
  %v897 = vsel %vm163, %v889, 0.0
  %898 = vmatprep.subr.mxu0 %v874
  %899 = vmatpush1.msra.mxu0 %v880
  %900 = vmatprep.subr.mxu0 %v875
  %901 = vmatpush1.msra.mxu0 %v881
  %902 = vmatprep.subr.mxu0 %v859
  %903 = vmatpush1.msra.mxu0 %v858
  %904 = vmatprep.subr.mxu0 %v861
  %905 = vmatpush1.msra.mxu0 %v860
  %906 = vmatprep.subr.mxu0 %v896
  %907 = vmatpush1.msra.mxu0 %v890
  %908 = vmatprep.subr.mxu0 %v897
  %909 = vmatpush1.msra.mxu0 %v891
  %910 = vmatprep.subr.mxu0 0.0
  %911 = vmatpush1.msra.mxu0 0.0
  %912 = vmatprep.subr.mxu0 0.0
  %913 = vmatpush1.msra.mxu0 0.0
  %914 = vmatprep.subr.mxu0 0.0
  %915 = vmatpush1.msra.mxu0 0.0
  %916 = vmatprep.subr.mxu0 0.0
  %917 = vmatpush1.msra.mxu0 0.0
  %918 = vmatprep.subr.mxu0 0.0
  %919 = vmatpush1.msra.mxu0 0.0
  %920 = vmatprep.subr.mxu0 0.0
  %921 = vmatpush1.msra.mxu0 0.0
  %922 = vmatprep.subr.mxu0 0.0
  %923 = vmatpush1.msra.mxu0 0.0
  %924 = vmatprep.subr.mxu0 0.0
  %925 = vmatpush1.msra.mxu0 0.0
  %926 = vmatprep.subr.mxu0 0.0
  %927 = vmatpush1.msra.mxu0 0.0
  %928 = vmatprep.subr.mxu0 0.0
  %929 = vmatpush1.msra.mxu0 0.0
  %930 = vmatprep.subr.mxu0 0.0
  %931 = vmatpush1.msra.mxu0 0.0
  %932 = vmatprep.subr.mxu0 0.0
  %933 = vmatpush1.msra.mxu0 0.0
  %934 = vmatprep.subr.mxu0 0.0
  %935 = vmatpush1.msra.mxu0 0.0
  %936 = vmatprep.subr.mxu0 0.0
  %937 = vmatpush1.msra.mxu0 0.0
  %938 = vmatprep.subr.mxu0 0.0
  %939 = vmatpush1.msra.mxu0 0.0
  %940 = vmatprep.subr.mxu0 0.0
  %941 = vmatpush1.msra.mxu0 0.0
  %942 = vmatprep.subr.mxu0 0.0
  %943 = vmatpush1.msra.mxu0 0.0
  %944 = vmatprep.subr.mxu0 0.0
  %945 = vmatpush1.msra.mxu0 0.0
  %946 = vmatprep.subr.mxu0 0.0
  %947 = vmatpush1.msra.mxu0 0.0
  %948 = vmatprep.subr.mxu0 0.0
  %949 = vmatpush1.msra.mxu0 0.0
  %950 = vmatprep.subr.mxu0 0.0
  %951 = vmatpush1.msra.mxu0 0.0
  %952 = vmatprep.subr.mxu0 0.0
  %953 = vmatpush1.msra.mxu0 0.0
  %954 = vmatprep.subr.mxu0 0.0
  %955 = vmatpush1.msra.mxu0 0.0
  %956 = vmatprep.subr.mxu0 0.0
  %957 = vmatpush1.msra.mxu0 0.0
  %958 = vmatprep.subr.mxu0 0.0
  %959 = vmatpush1.msra.mxu0 0.0
  %960 = vmatprep.subr.mxu0 0.0
  %961 = vmatpush1.msra.mxu0 0.0
  %962 = vmatprep.mubr.f32.mxu0 0.0
  %963 = vmatmul.mubr.f32.gmra.mrb[0].mxu0 %v321
  %v964 = vpop.f32.mrb[0].mxu0
  %v965 = vadd.f32 %v302, %v964
  %v966 = vpop.f32.mrb[0].mxu0
  %v967 = vadd.f32 %v302, %v966
  %968 = vmatprep.mubr.f32.mxu0 0.0
  %969 = vmatmul.mubr.f32.gmra.mrb[0].mxu0 %v324
  %v970 = vpop.f32.mrb[0].mxu0
  %v971 = vadd.f32 %v307, %v970
  %v972 = vpop.f32.mrb[0].mxu0
  %v973 = vadd.f32 %v307, %v972
  %974 = vmatprep.mubr.f32.mxu0 0.0
  %975 = vmatmul.mubr.f32.gmra.mrb[0].mxu0 %v327
  %v976 = vpop.f32.mrb[0].mxu0
  %v977 = vadd.f32 %v312, %v976
  %v978 = vpop.f32.mrb[0].mxu0
  %v979 = vadd.f32 %v312, %v978
  %980 = vmatprep.mubr.f32.mxu0 0.0
  %981 = vmatmul.mubr.f32.gmra.mrb[0].mxu0 %v330
  %v982 = vpop.f32.mrb[0].mxu0
  %v983 = vadd.f32 %v317, %v982
  %v984 = vpop.f32.mrb[0].mxu0
  %v985 = vadd.f32 %v317, %v984
  %986 = vdwg.mxu0
  %v987 = vmax.f32 %v965, 0.0
  %v988 = vmax.f32 %v967, 0.0
  %v989 = vmax.f32 %v971, 0.0
  %v990 = vmax.f32 %v973, 0.0
  %v991 = vmax.f32 %v977, 0.0
  %v992 = vmax.f32 %v979, 0.0
  %v993 = vmax.f32 %v983, 0.0
  %v994 = vmax.f32 %v985, 0.0
  %1003 = vrot.lane.b32.xlu0 %v987, 127
  %v1004 = vpop.permute.xlu0 %1003
  %1005 = vrot.lane.b32.xlu0 %v988, 127
  %v1006 = vpop.permute.xlu0 %1005
  %1007 = vrot.lane.b32.xlu0 %v989, 127
  %v1008 = vpop.permute.xlu0 %1007
  %1009 = vrot.lane.b32.xlu0 %v990, 127
  %v1010 = vpop.permute.xlu0 %1009
  %1011 = vrot.lane.b32.xlu0 %v991, 127
  %v1012 = vpop.permute.xlu0 %1011
  %1013 = vrot.lane.b32.xlu0 %v992, 127
  %v1014 = vpop.permute.xlu0 %1013
  %1015 = vrot.lane.b32.xlu0 %v993, 127
  %v1016 = vpop.permute.xlu0 %1015
  %1017 = vrot.lane.b32.xlu0 %v994, 127
  %v1018 = vpop.permute.xlu0 %1017
  %v1019 = vsel %vm159, %v1004, %v1006
  %v1020 = vsel %vm159, %v1008, %v1010
  %v1021 = vsel %vm159, %v1012, %v1014
  %v1022 = vsel %vm159, %v1016, %v1018
  %v1031 = vsel %vm163, %v1006, 0.0
  %v1032 = vsel %vm163, %v1010, 0.0
  %v1033 = vsel %vm163, %v1014, 0.0
  %v1034 = vsel %vm163, %v1018, 0.0
  %v1035 = vmax.f32 %v987, %v1019
  %v1036 = vmax.f32 %v988, %v1031
  %v1037 = vmax.f32 %v989, %v1020
  %v1038 = vmax.f32 %v990, %v1032
  %v1039 = vmax.f32 %v991, %v1021
  %v1040 = vmax.f32 %v992, %v1033
  %v1041 = vmax.f32 %v993, %v1022
  %v1042 = vmax.f32 %v994, %v1034
  %s1043 = scalar_lea.vmem %s0, 48
  %v1044 = vld [vmem:[%s1043] sm:$0xff]
  %v1045 = vld [vmem:[%s1043 + $0x8] sm:$0xff]
  %1048 = vrot.lane.b32.xlu0 %v1044, 1
  %v1049 = vpop.permute.xlu0 %1048
  %1050 = vrot.lane.b32.xlu0 %v1045, 1
  %v1051 = vpop.permute.xlu0 %1050
  %v1052 = vsel %vm150, %v1049, %v1051
  %v1055 = vsel %vm150, 0.0, %v1049
  %1056 = vrot.lane.b32.xlu0 %v1044, 127
  %v1057 = vpop.permute.xlu0 %1056
  %1058 = vrot.lane.b32.xlu0 %v1045, 127
  %v1059 = vpop.permute.xlu0 %1058
  %v1060 = vsel %vm159, %v1057, %v1059
  %v1063 = vsel %vm163, %v1059, 0.0
  %1064 = vmatprep.subr.mxu0 %v1052
  %1065 = vmatpush1.msra.mxu0 %v1055
  %1066 = vmatprep.subr.mxu0 %v1045
  %1067 = vmatpush1.msra.mxu0 %v1044
  %1068 = vmatprep.subr.mxu0 %v1063
  %1069 = vmatpush1.msra.mxu0 %v1060
  %1070 = vmatprep.subr.mxu0 0.0
  %1071 = vmatpush1.msra.mxu0 0.0
  %1072 = vmatprep.subr.mxu0 0.0
  %1073 = vmatpush1.msra.mxu0 0.0
  %1074 = vmatprep.subr.mxu0 0.0
  %1075 = vmatpush1.msra.mxu0 0.0
  %1076 = vmatprep.subr.mxu0 0.0
  %1077 = vmatpush1.msra.mxu0 0.0
  %1078 = vmatprep.subr.mxu0 0.0
  %1079 = vmatpush1.msra.mxu0 0.0
  %1080 = vmatprep.subr.mxu0 0.0
  %1081 = vmatpush1.msra.mxu0 0.0
  %1082 = vmatprep.subr.mxu0 0.0
  %1083 = vmatpush1.msra.mxu0 0.0
  %1084 = vmatprep.subr.mxu0 0.0
  %1085 = vmatpush1.msra.mxu0 0.0
  %1086 = vmatprep.subr.mxu0 0.0
  %1087 = vmatpush1.msra.mxu0 0.0
  %1088 = vmatprep.subr.mxu0 0.0
  %1089 = vmatpush1.msra.mxu0 0.0
  %1090 = vmatprep.subr.mxu0 0.0
  %1091 = vmatpush1.msra.mxu0 0.0
  %1092 = vmatprep.subr.mxu0 0.0
  %1093 = vmatpush1.msra.mxu0 0.0
  %1094 = vmatprep.subr.mxu0 0.0
  %1095 = vmatpush1.msra.mxu0 0.0
  %1096 = vmatprep.subr.mxu0 0.0
  %1097 = vmatpush1.msra.mxu0 0.0
  %1098 = vmatprep.subr.mxu0 0.0
  %1099 = vmatpush1.msra.mxu0 0.0
  %1100 = vmatprep.subr.mxu0 0.0
  %1101 = vmatpush1.msra.mxu0 0.0
  %1102 = vmatprep.subr.mxu0 0.0
  %1103 = vmatpush1.msra.mxu0 0.0
  %1104 = vmatprep.subr.mxu0 0.0
  %1105 = vmatpush1.msra.mxu0 0.0
  %1106 = vmatprep.subr.mxu0 0.0
  %1107 = vmatpush1.msra.mxu0 0.0
  %1108 = vmatprep.subr.mxu0 0.0
  %1109 = vmatpush1.msra.mxu0 0.0
  %1110 = vmatprep.subr.mxu0 0.0
  %1111 = vmatpush1.msra.mxu0 0.0
  %1112 = vmatprep.subr.mxu0 0.0
  %1113 = vmatpush1.msra.mxu0 0.0
  %1114 = vmatprep.subr.mxu0 0.0
  %1115 = vmatpush1.msra.mxu0 0.0
  %1116 = vmatprep.subr.mxu0 0.0
  %1117 = vmatpush1.msra.mxu0 0.0
  %1118 = vmatprep.subr.mxu0 0.0
  %1119 = vmatpush1.msra.mxu0 0.0
  %1120 = vmatprep.subr.mxu0 0.0
  %1121 = vmatpush1.msra.mxu0 0.0
  %1122 = vmatprep.subr.mxu0 0.0
  %1123 = vmatpush1.msra.mxu0 0.0
  %1124 = vmatprep.subr.mxu0 0.0
  %1125 = vmatpush1.msra.mxu0 0.0
  %1126 = vmatprep.subr.mxu0 0.0
  %1127 = vmatpush1.msra.mxu0 0.0
  %1128 = vmatprep.mubr.f32.mxu0 0.0
  %1129 = vmatmul.mubr.f32.gmra.mrb[0].mxu0 %v177
  %v1130 = vpop.f32.mrb[0].mxu0
  %v1131 = vadd.f32 %v168, %v1130
  %v1132 = vpop.f32.mrb[0].mxu0
  %v1133 = vadd.f32 %v168, %v1132
  %1134 = vmatprep.mubr.f32.mxu0 0.0
  %1135 = vmatmul.mubr.f32.gmra.mrb[0].mxu0 %v180
  %v1136 = vpop.f32.mrb[0].mxu0
  %v1137 = vadd.f32 %v173, %v1136
  %v1138 = vpop.f32.mrb[0].mxu0
  %v1139 = vadd.f32 %v173, %v1138
  %1140 = vdwg.mxu0
  %v1141 = vmax.f32 %v1131, 0.0
  %v1142 = vmax.f32 %v1133, 0.0
  %v1143 = vmax.f32 %v1137, 0.0
  %v1144 = vmax.f32 %v1139, 0.0
  %1149 = vrot.lane.b32.xlu0 %v1141, 1
  %v1150 = vpop.permute.xlu0 %1149
  %1151 = vrot.lane.b32.xlu0 %v1142, 1
  %v1152 = vpop.permute.xlu0 %1151
  %1153 = vrot.lane.b32.xlu0 %v1143, 1
  %v1154 = vpop.permute.xlu0 %1153
  %1155 = vrot.lane.b32.xlu0 %v1144, 1
  %v1156 = vpop.permute.xlu0 %1155
  %v1157 = vsel %vm150, %v1150, %v1152
  %v1158 = vsel %vm150, %v1154, %v1156
  %v1163 = vsel %vm150, 0.0, %v1150
  %v1164 = vsel %vm150, 0.0, %v1154
  %1165 = vrot.lane.b32.xlu0 %v1141, 127
  %v1166 = vpop.permute.xlu0 %1165
  %1167 = vrot.lane.b32.xlu0 %v1142, 127
  %v1168 = vpop.permute.xlu0 %1167
  %1169 = vrot.lane.b32.xlu0 %v1143, 127
  %v1170 = vpop.permute.xlu0 %1169
  %1171 = vrot.lane.b32.xlu0 %v1144, 127
  %v1172 = vpop.permute.xlu0 %1171
  %v1173 = vsel %vm159, %v1166, %v1168
  %v1174 = vsel %vm159, %v1170, %v1172
  %v1179 = vsel %vm163, %v1168, 0.0
  %v1180 = vsel %vm163, %v1172, 0.0
  %1181 = vmatprep.subr.mxu0 %v1157
  %1182 = vmatpush1.msra.mxu0 %v1163
  %1183 = vmatprep.subr.mxu0 %v1158
  %1184 = vmatpush1.msra.mxu0 %v1164
  %1185 = vmatprep.subr.mxu0 %v1142
  %1186 = vmatpush1.msra.mxu0 %v1141
  %1187 = vmatprep.subr.mxu0 %v1144
  %1188 = vmatpush1.msra.mxu0 %v1143
  %1189 = vmatprep.subr.mxu0 %v1179
  %1190 = vmatpush1.msra.mxu0 %v1173
  %1191 = vmatprep.subr.mxu0 %v1180
  %1192 = vmatpush1.msra.mxu0 %v1174
  %1193 = vmatprep.subr.mxu0 0.0
  %1194 = vmatpush1.msra.mxu0 0.0
  %1195 = vmatprep.subr.mxu0 0.0
  %1196 = vmatpush1.msra.mxu0 0.0
  %1197 = vmatprep.subr.mxu0 0.0
  %1198 = vmatpush1.msra.mxu0 0.0
  %1199 = vmatprep.subr.mxu0 0.0
  %1200 = vmatpush1.msra.mxu0 0.0
  %1201 = vmatprep.subr.mxu0 0.0
  %1202 = vmatpush1.msra.mxu0 0.0
  %1203 = vmatprep.subr.mxu0 0.0
  %1204 = vmatpush1.msra.mxu0 0.0
  %1205 = vmatprep.subr.mxu0 0.0
  %1206 = vmatpush1.msra.mxu0 0.0
  %1207 = vmatprep.subr.mxu0 0.0
  %1208 = vmatpush1.msra.mxu0 0.0
  %1209 = vmatprep.subr.mxu0 0.0
  %1210 = vmatpush1.msra.mxu0 0.0
  %1211 = vmatprep.subr.mxu0 0.0
  %1212 = vmatpush1.msra.mxu0 0.0
  %1213 = vmatprep.subr.mxu0 0.0
  %1214 = vmatpush1.msra.mxu0 0.0
  %1215 = vmatprep.subr.mxu0 0.0
  %1216 = vmatpush1.msra.mxu0 0.0
  %1217 = vmatprep.subr.mxu0 0.0
  %1218 = vmatpush1.msra.mxu0 0.0
  %1219 = vmatprep.subr.mxu0 0.0
  %1220 = vmatpush1.msra.mxu0 0.0
  %1221 = vmatprep.subr.mxu0 0.0
  %1222 = vmatpush1.msra.mxu0 0.0
  %1223 = vmatprep.subr.mxu0 0.0
  %1224 = vmatpush1.msra.mxu0 0.0
  %1225 = vmatprep.subr.mxu0 0.0
  %1226 = vmatpush1.msra.mxu0 0.0
  %1227 = vmatprep.subr.mxu0 0.0
  %1228 = vmatpush1.msra.mxu0 0.0
  %1229 = vmatprep.subr.mxu0 0.0
  %1230 = vmatpush1.msra.mxu0 0.0
  %1231 = vmatprep.subr.mxu0 0.0
  %1232 = vmatpush1.msra.mxu0 0.0
  %1233 = vmatprep.subr.mxu0 0.0
  %1234 = vmatpush1.msra.mxu0 0.0
  %1235 = vmatprep.subr.mxu0 0.0
  %1236 = vmatpush1.msra.mxu0 0.0
  %1237 = vmatprep.subr.mxu0 0.0
  %1238 = vmatpush1.msra.mxu0 0.0
  %1239 = vmatprep.subr.mxu0 0.0
  %1240 = vmatpush1.msra.mxu0 0.0
  %1241 = vmatprep.subr.mxu0 0.0
  %1242 = vmatpush1.msra.mxu0 0.0
  %1243 = vmatprep.subr.mxu0 0.0
  %1244 = vmatpush1.msra.mxu0 0.0
  %1245 = vmatprep.mubr.f32.mxu0 0.0
  %1246 = vmatmul.mubr.f32.gmra.mrb[0].mxu0 %v321
  %v1247 = vpop.f32.mrb[0].mxu0
  %v1248 = vadd.f32 %v302, %v1247
  %v1249 = vpop.f32.mrb[0].mxu0
  %v1250 = vadd.f32 %v302, %v1249
  %1251 = vmatprep.mubr.f32.mxu0 0.0
  %1252 = vmatmul.mubr.f32.gmra.mrb[0].mxu0 %v324
  %v1253 = vpop.f32.mrb[0].mxu0
  %v1254 = vadd.f32 %v307, %v1253
  %v1255 = vpop.f32.mrb[0].mxu0
  %v1256 = vadd.f32 %v307, %v1255
  %1257 = vmatprep.mubr.f32.mxu0 0.0
  %1258 = vmatmul.mubr.f32.gmra.mrb[0].mxu0 %v327
  %v1259 = vpop.f32.mrb[0].mxu0
  %v1260 = vadd.f32 %v312, %v1259
  %v1261 = vpop.f32.mrb[0].mxu0
  %v1262 = vadd.f32 %v312, %v1261
  %1263 = vmatprep.mubr.f32.mxu0 0.0
  %1264 = vmatmul.mubr.f32.gmra.mrb[0].mxu0 %v330
  %v1265 = vpop.f32.mrb[0].mxu0
  %v1266 = vadd.f32 %v317, %v1265
  %v1267 = vpop.f32.mrb[0].mxu0
  %v1268 = vadd.f32 %v317, %v1267
  %1269 = vdwg.mxu0
  %v1270 = vmax.f32 %v1248, 0.0
  %v1271 = vmax.f32 %v1250, 0.0
  %v1272 = vmax.f32 %v1254, 0.0
  %v1273 = vmax.f32 %v1256, 0.0
  %v1274 = vmax.f32 %v1260, 0.0
  %v1275 = vmax.f32 %v1262, 0.0
  %v1276 = vmax.f32 %v1266, 0.0
  %v1277 = vmax.f32 %v1268, 0.0
  %1286 = vrot.lane.b32.xlu0 %v1270, 127
  %v1287 = vpop.permute.xlu0 %1286
  %1288 = vrot.lane.b32.xlu0 %v1271, 127
  %v1289 = vpop.permute.xlu0 %1288
  %1290 = vrot.lane.b32.xlu0 %v1272, 127
  %v1291 = vpop.permute.xlu0 %1290
  %1292 = vrot.lane.b32.xlu0 %v1273, 127
  %v1293 = vpop.permute.xlu0 %1292
  %1294 = vrot.lane.b32.xlu0 %v1274, 127
  %v1295 = vpop.permute.xlu0 %1294
  %1296 = vrot.lane.b32.xlu0 %v1275, 127
  %v1297 = vpop.permute.xlu0 %1296
  %1298 = vrot.lane.b32.xlu0 %v1276, 127
  %v1299 = vpop.permute.xlu0 %1298
  %1300 = vrot.lane.b32.xlu0 %v1277, 127
  %v1301 = vpop.permute.xlu0 %1300
  %v1302 = vsel %vm159, %v1287, %v1289
  %v1303 = vsel %vm159, %v1291, %v1293
  %v1304 = vsel %vm159, %v1295, %v1297
  %v1305 = vsel %vm159, %v1299, %v1301
  %v1314 = vsel %vm163, %v1289, 0.0
  %v1315 = vsel %vm163, %v1293, 0.0
  %v1316 = vsel %vm163, %v1297, 0.0
  %v1317 = vsel %vm163, %v1301, 0.0
  %v1318 = vmax.f32 %v1270, %v1302
  %v1319 = vmax.f32 %v1271, %v1314
  %v1320 = vmax.f32 %v1272, %v1303
  %v1321 = vmax.f32 %v1273, %v1315
  %v1322 = vmax.f32 %v1274, %v1304
  %v1323 = vmax.f32 %v1275, %v1316
  %v1324 = vmax.f32 %v1276, %v1305
  %v1325 = vmax.f32 %v1277, %v1317
  %s1326 = scalar_lea.vmem %s0, 64
  %v1327 = vld [vmem:[%s1326] sm:$0xff]
  %v1328 = vld [vmem:[%s1326 + $0x8] sm:$0xff]
  %1331 = vrot.lane.b32.xlu0 %v1327, 1
  %v1332 = vpop.permute.xlu0 %1331
  %1333 = vrot.lane.b32.xlu0 %v1328, 1
  %v1334 = vpop.permute.xlu0 %1333
  %v1335 = vsel %vm150, %v1332, %v1334
  %v1338 = vsel %vm150, 0.0, %v1332
  %1339 = vrot.lane.b32.xlu0 %v1327, 127
  %v1340 = vpop.permute.xlu0 %1339
  %1341 = vrot.lane.b32.xlu0 %v1328, 127
  %v1342 = vpop.permute.xlu0 %1341
  %v1343 = vsel %vm159, %v1340, %v1342
  %v1346 = vsel %vm163, %v1342, 0.0
  %1347 = vmatprep.subr.mxu0 %v1335
  %1348 = vmatpush1.msra.mxu0 %v1338
  %1349 = vmatprep.subr.mxu0 %v1328
  %1350 = vmatpush1.msra.mxu0 %v1327
  %1351 = vmatprep.subr.mxu0 %v1346
  %1352 = vmatpush1.msra.mxu0 %v1343
  %1353 = vmatprep.subr.mxu0 0.0
  %1354 = vmatpush1.msra.mxu0 0.0
  %1355 = vmatprep.subr.mxu0 0.0
  %1356 = vmatpush1.msra.mxu0 0.0
  %1357 = vmatprep.subr.mxu0 0.0
  %1358 = vmatpush1.msra.mxu0 0.0
  %1359 = vmatprep.subr.mxu0 0.0
  %1360 = vmatpush1.msra.mxu0 0.0
  %1361 = vmatprep.subr.mxu0 0.0
  %1362 = vmatpush1.msra.mxu0 0.0
  %1363 = vmatprep.subr.mxu0 0.0
  %1364 = vmatpush1.msra.mxu0 0.0
  %1365 = vmatprep.subr.mxu0 0.0
  %1366 = vmatpush1.msra.mxu0 0.0
  %1367 = vmatprep.subr.mxu0 0.0
  %1368 = vmatpush1.msra.mxu0 0.0
  %1369 = vmatprep.subr.mxu0 0.0
  %1370 = vmatpush1.msra.mxu0 0.0
  %1371 = vmatprep.subr.mxu0 0.0
  %1372 = vmatpush1.msra.mxu0 0.0
  %1373 = vmatprep.subr.mxu0 0.0
  %1374 = vmatpush1.msra.mxu0 0.0
  %1375 = vmatprep.subr.mxu0 0.0
  %1376 = vmatpush1.msra.mxu0 0.0
  %1377 = vmatprep.subr.mxu0 0.0
  %1378 = vmatpush1.msra.mxu0 0.0
  %1379 = vmatprep.subr.mxu0 0.0
  %1380 = vmatpush1.msra.mxu0 0.0
  %1381 = vmatprep.subr.mxu0 0.0
  %1382 = vmatpush1.msra.mxu0 0.0
  %1383 = vmatprep.subr.mxu0 0.0
  %1384 = vmatpush1.msra.mxu0 0.0
  %1385 = vmatprep.subr.mxu0 0.0
  %1386 = vmatpush1.msra.mxu0 0.0
  %1387 = vmatprep.subr.mxu0 0.0
  %1388 = vmatpush1.msra.mxu0 0.0
  %1389 = vmatprep.subr.mxu0 0.0
  %1390 = vmatpush1.msra.mxu0 0.0
  %1391 = vmatprep.subr.mxu0 0.0
  %1392 = vmatpush1.msra.mxu0 0.0
  %1393 = vmatprep.subr.mxu0 0.0
  %1394 = vmatpush1.msra.mxu0 0.0
  %1395 = vmatprep.subr.mxu0 0.0
  %1396 = vmatpush1.msra.mxu0 0.0
  %1397 = vmatprep.subr.mxu0 0.0
  %1398 = vmatpush1.msra.mxu0 0.0
  %1399 = vmatprep.subr.mxu0 0.0
  %1400 = vmatpush1.msra.mxu0 0.0
  %1401 = vmatprep.subr.mxu0 0.0
  %1402 = vmatpush1.msra.mxu0 0.0
  %1403 = vmatprep.subr.mxu0 0.0
  %1404 = vmatpush1.msra.mxu0 0.0
  %1405 = vmatprep.subr.mxu0 0.0
  %1406 = vmatpush1.msra.mxu0 0.0
  %1407 = vmatprep.subr.mxu0 0.0
  %1408 = vmatpush1.msra.mxu0 0.0
  %1409 = vmatprep.subr.mxu0 0.0
  %1410 = vmatpush1.msra.mxu0 0.0
  %1411 = vmatprep.mubr.f32.mxu0 0.0
  %1412 = vmatmul.mubr.f32.gmra.mrb[0].mxu0 %v177
  %v1413 = vpop.f32.mrb[0].mxu0
  %v1414 = vadd.f32 %v168, %v1413
  %v1415 = vpop.f32.mrb[0].mxu0
  %v1416 = vadd.f32 %v168, %v1415
  %1417 = vmatprep.mubr.f32.mxu0 0.0
  %1418 = vmatmul.mubr.f32.gmra.mrb[0].mxu0 %v180
  %v1419 = vpop.f32.mrb[0].mxu0
  %v1420 = vadd.f32 %v173, %v1419
  %v1421 = vpop.f32.mrb[0].mxu0
  %v1422 = vadd.f32 %v173, %v1421
  %1423 = vdwg.mxu0
  %v1424 = vmax.f32 %v1414, 0.0
  %v1425 = vmax.f32 %v1416, 0.0
  %v1426 = vmax.f32 %v1420, 0.0
  %v1427 = vmax.f32 %v1422, 0.0
  %1432 = vrot.lane.b32.xlu0 %v1424, 1
  %v1433 = vpop.permute.xlu0 %1432
  %1434 = vrot.lane.b32.xlu0 %v1425, 1
  %v1435 = vpop.permute.xlu0 %1434
  %1436 = vrot.lane.b32.xlu0 %v1426, 1
  %v1437 = vpop.permute.xlu0 %1436
  %1438 = vrot.lane.b32.xlu0 %v1427, 1
  %v1439 = vpop.permute.xlu0 %1438
  %v1440 = vsel %vm150, %v1433, %v1435
  %v1441 = vsel %vm150, %v1437, %v1439
  %v1446 = vsel %vm150, 0.0, %v1433
  %v1447 = vsel %vm150, 0.0, %v1437
  %1448 = vrot.lane.b32.xlu0 %v1424, 127
  %v1449 = vpop.permute.xlu0 %1448
  %1450 = vrot.lane.b32.xlu0 %v1425, 127
  %v1451 = vpop.permute.xlu0 %1450
  %1452 = vrot.lane.b32.xlu0 %v1426, 127
  %v1453 = vpop.permute.xlu0 %1452
  %1454 = vrot.lane.b32.xlu0 %v1427, 127
  %v1455 = vpop.permute.xlu0 %1454
  %v1456 = vsel %vm159, %v1449, %v1451
  %v1457 = vsel %vm159, %v1453, %v1455
  %v1462 = vsel %vm163, %v1451, 0.0
  %v1463 = vsel %vm163, %v1455, 0.0
  %1464 = vmatprep.subr.mxu0 %v1440
  %1465 = vmatpush1.msra.mxu0 %v1446
  %1466 = vmatprep.subr.mxu0 %v1441
  %1467 = vmatpush1.msra.mxu0 %v1447
  %1468 = vmatprep.subr.mxu0 %v1425
  %1469 = vmatpush1.msra.mxu0 %v1424
  %1470 = vmatprep.subr.mxu0 %v1427
  %1471 = vmatpush1.msra.mxu0 %v1426
  %1472 = vmatprep.subr.mxu0 %v1462
  %1473 = vmatpush1.msra.mxu0 %v1456
  %1474 = vmatprep.subr.mxu0 %v1463
  %1475 = vmatpush1.msra.mxu0 %v1457
  %1476 = vmatprep.subr.mxu0 0.0
  %1477 = vmatpush1.msra.mxu0 0.0
  %1478 = vmatprep.subr.mxu0 0.0
  %1479 = vmatpush1.msra.mxu0 0.0
  %1480 = vmatprep.subr.mxu0 0.0
  %1481 = vmatpush1.msra.mxu0 0.0
  %1482 = vmatprep.subr.mxu0 0.0
  %1483 = vmatpush1.msra.mxu0 0.0
  %1484 = vmatprep.subr.mxu0 0.0
  %1485 = vmatpush1.msra.mxu0 0.0
  %1486 = vmatprep.subr.mxu0 0.0
  %1487 = vmatpush1.msra.mxu0 0.0
  %1488 = vmatprep.subr.mxu0 0.0
  %1489 = vmatpush1.msra.mxu0 0.0
  %1490 = vmatprep.subr.mxu0 0.0
  %1491 = vmatpush1.msra.mxu0 0.0
  %1492 = vmatprep.subr.mxu0 0.0
  %1493 = vmatpush1.msra.mxu0 0.0
  %1494 = vmatprep.subr.mxu0 0.0
  %1495 = vmatpush1.msra.mxu0 0.0
  %1496 = vmatprep.subr.mxu0 0.0
  %1497 = vmatpush1.msra.mxu0 0.0
  %1498 = vmatprep.subr.mxu0 0.0
  %1499 = vmatpush1.msra.mxu0 0.0
  %1500 = vmatprep.subr.mxu0 0.0
  %1501 = vmatpush1.msra.mxu0 0.0
  %1502 = vmatprep.subr.mxu0 0.0
  %1503 = vmatpush1.msra.mxu0 0.0
  %1504 = vmatprep.subr.mxu0 0.0
  %1505 = vmatpush1.msra.mxu0 0.0
  %1506 = vmatprep.subr.mxu0 0.0
  %1507 = vmatpush1.msra.mxu0 0.0
  %1508 = vmatprep.subr.mxu0 0.0
  %1509 = vmatpush1.msra.mxu0 0.0
  %1510 = vmatprep.subr.mxu0 0.0
  %1511 = vmatpush1.msra.mxu0 0.0
  %1512 = vmatprep.subr.mxu0 0.0
  %1513 = vmatpush1.msra.mxu0 0.0
  %1514 = vmatprep.subr.mxu0 0.0
  %1515 = vmatpush1.msra.mxu0 0.0
  %1516 = vmatprep.subr.mxu0 0.0
  %1517 = vmatpush1.msra.mxu0 0.0
  %1518 = vmatprep.subr.mxu0 0.0
  %1519 = vmatpush1.msra.mxu0 0.0
  %1520 = vmatprep.subr.mxu0 0.0
  %1521 = vmatpush1.msra.mxu0 0.0
  %1522 = vmatprep.subr.mxu0 0.0
  %1523 = vmatpush1.msra.mxu0 0.0
  %1524 = vmatprep.subr.mxu0 0.0
  %1525 = vmatpush1.msra.mxu0 0.0
  %1526 = vmatprep.subr.mxu0 0.0
  %1527 = vmatpush1.msra.mxu0 0.0
  %1528 = vmatprep.mubr.f32.mxu0 0.0
  %1529 = vmatmul.mubr.f32.gmra.mrb[0].mxu0 %v321
  %v1530 = vpop.f32.mrb[0].mxu0
  %v1531 = vadd.f32 %v302, %v1530
  %v1532 = vpop.f32.mrb[0].mxu0
  %v1533 = vadd.f32 %v302, %v1532
  %1534 = vmatprep.mubr.f32.mxu0 0.0
  %1535 = vmatmul.mubr.f32.gmra.mrb[0].mxu0 %v324
  %v1536 = vpop.f32.mrb[0].mxu0
  %v1537 = vadd.f32 %v307, %v1536
  %v1538 = vpop.f32.mrb[0].mxu0
  %v1539 = vadd.f32 %v307, %v1538
  %1540 = vmatprep.mubr.f32.mxu0 0.0
  %1541 = vmatmul.mubr.f32.gmra.mrb[0].mxu0 %v327
  %v1542 = vpop.f32.mrb[0].mxu0
  %v1543 = vadd.f32 %v312, %v1542
  %v1544 = vpop.f32.mrb[0].mxu0
  %v1545 = vadd.f32 %v312, %v1544
  %1546 = vmatprep.mubr.f32.mxu0 0.0
  %1547 = vmatmul.mubr.f32.gmra.mrb[0].mxu0 %v330
  %v1548 = vpop.f32.mrb[0].mxu0
  %v1549 = vadd.f32 %v317, %v1548
  %v1550 = vpop.f32.mrb[0].mxu0
  %v1551 = vadd.f32 %v317, %v1550
  %1552 = vdwg.mxu0
  %v1553 = vmax.f32 %v1531, 0.0
  %v1554 = vmax.f32 %v1533, 0.0
  %v1555 = vmax.f32 %v1537, 0.0
  %v1556 = vmax.f32 %v1539, 0.0
  %v1557 = vmax.f32 %v1543, 0.0
  %v1558 = vmax.f32 %v1545, 0.0
  %v1559 = vmax.f32 %v1549, 0.0
  %v1560 = vmax.f32 %v1551, 0.0
  %1569 = vrot.lane.b32.xlu0 %v1553, 127
  %v1570 = vpop.permute.xlu0 %1569
  %1571 = vrot.lane.b32.xlu0 %v1554, 127
  %v1572 = vpop.permute.xlu0 %1571
  %1573 = vrot.lane.b32.xlu0 %v1555, 127
  %v1574 = vpop.permute.xlu0 %1573
  %1575 = vrot.lane.b32.xlu0 %v1556, 127
  %v1576 = vpop.permute.xlu0 %1575
  %1577 = vrot.lane.b32.xlu0 %v1557, 127
  %v1578 = vpop.permute.xlu0 %1577
  %1579 = vrot.lane.b32.xlu0 %v1558, 127
  %v1580 = vpop.permute.xlu0 %1579
  %1581 = vrot.lane.b32.xlu0 %v1559, 127
  %v1582 = vpop.permute.xlu0 %1581
  %1583 = vrot.lane.b32.xlu0 %v1560, 127
  %v1584 = vpop.permute.xlu0 %1583
  %v1585 = vsel %vm159, %v1570, %v1572
  %v1586 = vsel %vm159, %v1574, %v1576
  %v1587 = vsel %vm159, %v1578, %v1580
  %v1588 = vsel %vm159, %v1582, %v1584
  %v1597 = vsel %vm163, %v1572, 0.0
  %v1598 = vsel %vm163, %v1576, 0.0
  %v1599 = vsel %vm163, %v1580, 0.0
  %v1600 = vsel %vm163, %v1584, 0.0
  %v1601 = vmax.f32 %v1553, %v1585
  %v1602 = vmax.f32 %v1554, %v1597
  %v1603 = vmax.f32 %v1555, %v1586
  %v1604 = vmax.f32 %v1556, %v1598
  %v1605 = vmax.f32 %v1557, %v1587
  %v1606 = vmax.f32 %v1558, %v1599
  %v1607 = vmax.f32 %v1559, %v1588
  %v1608 = vmax.f32 %v1560, %v1600
  %s1609 = scalar_lea.vmem %s0, 80
  %v1610 = vld [vmem:[%s1609] sm:$0xff]
  %v1611 = vld [vmem:[%s1609 + $0x8] sm:$0xff]
  %1614 = vrot.lane.b32.xlu0 %v1610, 1
  %v1615 = vpop.permute.xlu0 %1614
  %1616 = vrot.lane.b32.xlu0 %v1611, 1
  %v1617 = vpop.permute.xlu0 %1616
  %v1618 = vsel %vm150, %v1615, %v1617
  %v1621 = vsel %vm150, 0.0, %v1615
  %1622 = vrot.lane.b32.xlu0 %v1610, 127
  %v1623 = vpop.permute.xlu0 %1622
  %1624 = vrot.lane.b32.xlu0 %v1611, 127
  %v1625 = vpop.permute.xlu0 %1624
  %v1626 = vsel %vm159, %v1623, %v1625
  %v1629 = vsel %vm163, %v1625, 0.0
  %1630 = vmatprep.subr.mxu0 %v1618
  %1631 = vmatpush1.msra.mxu0 %v1621
  %1632 = vmatprep.subr.mxu0 %v1611
  %1633 = vmatpush1.msra.mxu0 %v1610
  %1634 = vmatprep.subr.mxu0 %v1629
  %1635 = vmatpush1.msra.mxu0 %v1626
  %1636 = vmatprep.subr.mxu0 0.0
  %1637 = vmatpush1.msra.mxu0 0.0
  %1638 = vmatprep.subr.mxu0 0.0
  %1639 = vmatpush1.msra.mxu0 0.0
  %1640 = vmatprep.subr.mxu0 0.0
  %1641 = vmatpush1.msra.mxu0 0.0
  %1642 = vmatprep.subr.mxu0 0.0
  %1643 = vmatpush1.msra.mxu0 0.0
  %1644 = vmatprep.subr.mxu0 0.0
  %1645 = vmatpush1.msra.mxu0 0.0
  %1646 = vmatprep.subr.mxu0 0.0
  %1647 = vmatpush1.msra.mxu0 0.0
  %1648 = vmatprep.subr.mxu0 0.0
  %1649 = vmatpush1.msra.mxu0 0.0
  %1650 = vmatprep.subr.mxu0 0.0
  %1651 = vmatpush1.msra.mxu0 0.0
  %1652 = vmatprep.subr.mxu0 0.0
  %1653 = vmatpush1.msra.mxu0 0.0
  %1654 = vmatprep.subr.mxu0 0.0
  %1655 = vmatpush1.msra.mxu0 0.0
  %1656 = vmatprep.subr.mxu0 0.0
  %1657 = vmatpush1.msra.mxu0 0.0
  %1658 = vmatprep.subr.mxu0 0.0
  %1659 = vmatpush1.msra.mxu0 0.0
  %1660 = vmatprep.subr.mxu0 0.0
  %1661 = vmatpush1.msra.mxu0 0.0
  %1662 = vmatprep.subr.mxu0 0.0
  %1663 = vmatpush1.msra.mxu0 0.0
  %1664 = vmatprep.subr.mxu0 0.0
  %1665 = vmatpush1.msra.mxu0 0.0
  %1666 = vmatprep.subr.mxu0 0.0
  %1667 = vmatpush1.msra.mxu0 0.0
  %1668 = vmatprep.subr.mxu0 0.0
  %1669 = vmatpush1.msra.mxu0 0.0
  %1670 = vmatprep.subr.mxu0 0.0
  %1671 = vmatpush1.msra.mxu0 0.0
  %1672 = vmatprep.subr.mxu0 0.0
  %1673 = vmatpush1.msra.mxu0 0.0
  %1674 = vmatprep.subr.mxu0 0.0
  %1675 = vmatpush1.msra.mxu0 0.0
  %1676 = vmatprep.subr.mxu0 0.0
  %1677 = vmatpush1.msra.mxu0 0.0
  %1678 = vmatprep.subr.mxu0 0.0
  %1679 = vmatpush1.msra.mxu0 0.0
  %1680 = vmatprep.subr.mxu0 0.0
  %1681 = vmatpush1.msra.mxu0 0.0
  %1682 = vmatprep.subr.mxu0 0.0
  %1683 = vmatpush1.msra.mxu0 0.0
  %1684 = vmatprep.subr.mxu0 0.0
  %1685 = vmatpush1.msra.mxu0 0.0
  %1686 = vmatprep.subr.mxu0 0.0
  %1687 = vmatpush1.msra.mxu0 0.0
  %1688 = vmatprep.subr.mxu0 0.0
  %1689 = vmatpush1.msra.mxu0 0.0
  %1690 = vmatprep.subr.mxu0 0.0
  %1691 = vmatpush1.msra.mxu0 0.0
  %1692 = vmatprep.subr.mxu0 0.0
  %1693 = vmatpush1.msra.mxu0 0.0
  %1694 = vmatprep.mubr.f32.mxu0 0.0
  %1695 = vmatmul.mubr.f32.gmra.mrb[0].mxu0 %v177
  %v1696 = vpop.f32.mrb[0].mxu0
  %v1697 = vadd.f32 %v168, %v1696
  %v1698 = vpop.f32.mrb[0].mxu0
  %v1699 = vadd.f32 %v168, %v1698
  %1700 = vmatprep.mubr.f32.mxu0 0.0
  %1701 = vmatmul.mubr.f32.gmra.mrb[0].mxu0 %v180
  %v1702 = vpop.f32.mrb[0].mxu0
  %v1703 = vadd.f32 %v173, %v1702
  %v1704 = vpop.f32.mrb[0].mxu0
  %v1705 = vadd.f32 %v173, %v1704
  %1706 = vdwg.mxu0
  %v1707 = vmax.f32 %v1697, 0.0
  %v1708 = vmax.f32 %v1699, 0.0
  %v1709 = vmax.f32 %v1703, 0.0
  %v1710 = vmax.f32 %v1705, 0.0
  %1715 = vrot.lane.b32.xlu0 %v1707, 1
  %v1716 = vpop.permute.xlu0 %1715
  %1717 = vrot.lane.b32.xlu0 %v1708, 1
  %v1718 = vpop.permute.xlu0 %1717
  %1719 = vrot.lane.b32.xlu0 %v1709, 1
  %v1720 = vpop.permute.xlu0 %1719
  %1721 = vrot.lane.b32.xlu0 %v1710, 1
  %v1722 = vpop.permute.xlu0 %1721
  %v1723 = vsel %vm150, %v1716, %v1718
  %v1724 = vsel %vm150, %v1720, %v1722
  %v1729 = vsel %vm150, 0.0, %v1716
  %v1730 = vsel %vm150, 0.0, %v1720
  %1731 = vrot.lane.b32.xlu0 %v1707, 127
  %v1732 = vpop.permute.xlu0 %1731
  %1733 = vrot.lane.b32.xlu0 %v1708, 127
  %v1734 = vpop.permute.xlu0 %1733
  %1735 = vrot.lane.b32.xlu0 %v1709, 127
  %v1736 = vpop.permute.xlu0 %1735
  %1737 = vrot.lane.b32.xlu0 %v1710, 127
  %v1738 = vpop.permute.xlu0 %1737
  %v1739 = vsel %vm159, %v1732, %v1734
  %v1740 = vsel %vm159, %v1736, %v1738
  %v1745 = vsel %vm163, %v1734, 0.0
  %v1746 = vsel %vm163, %v1738, 0.0
  %1747 = vmatprep.subr.mxu0 %v1723
  %1748 = vmatpush1.msra.mxu0 %v1729
  %1749 = vmatprep.subr.mxu0 %v1724
  %1750 = vmatpush1.msra.mxu0 %v1730
  %1751 = vmatprep.subr.mxu0 %v1708
  %1752 = vmatpush1.msra.mxu0 %v1707
  %1753 = vmatprep.subr.mxu0 %v1710
  %1754 = vmatpush1.msra.mxu0 %v1709
  %1755 = vmatprep.subr.mxu0 %v1745
  %1756 = vmatpush1.msra.mxu0 %v1739
  %1757 = vmatprep.subr.mxu0 %v1746
  %1758 = vmatpush1.msra.mxu0 %v1740
  %1759 = vmatprep.subr.mxu0 0.0
  %1760 = vmatpush1.msra.mxu0 0.0
  %1761 = vmatprep.subr.mxu0 0.0
  %1762 = vmatpush1.msra.mxu0 0.0
  %1763 = vmatprep.subr.mxu0 0.0
  %1764 = vmatpush1.msra.mxu0 0.0
  %1765 = vmatprep.subr.mxu0 0.0
  %1766 = vmatpush1.msra.mxu0 0.0
  %1767 = vmatprep.subr.mxu0 0.0
  %1768 = vmatpush1.msra.mxu0 0.0
  %1769 = vmatprep.subr.mxu0 0.0
  %1770 = vmatpush1.msra.mxu0 0.0
  %1771 = vmatprep.subr.mxu0 0.0
  %1772 = vmatpush1.msra.mxu0 0.0
  %1773 = vmatprep.subr.mxu0 0.0
  %1774 = vmatpush1.msra.mxu0 0.0
  %1775 = vmatprep.subr.mxu0 0.0
  %1776 = vmatpush1.msra.mxu0 0.0
  %1777 = vmatprep.subr.mxu0 0.0
  %1778 = vmatpush1.msra.mxu0 0.0
  %1779 = vmatprep.subr.mxu0 0.0
  %1780 = vmatpush1.msra.mxu0 0.0
  %1781 = vmatprep.subr.mxu0 0.0
  %1782 = vmatpush1.msra.mxu0 0.0
  %1783 = vmatprep.subr.mxu0 0.0
  %1784 = vmatpush1.msra.mxu0 0.0
  %1785 = vmatprep.subr.mxu0 0.0
  %1786 = vmatpush1.msra.mxu0 0.0
  %1787 = vmatprep.subr.mxu0 0.0
  %1788 = vmatpush1.msra.mxu0 0.0
  %1789 = vmatprep.subr.mxu0 0.0
  %1790 = vmatpush1.msra.mxu0 0.0
  %1791 = vmatprep.subr.mxu0 0.0
  %1792 = vmatpush1.msra.mxu0 0.0
  %1793 = vmatprep.subr.mxu0 0.0
  %1794 = vmatpush1.msra.mxu0 0.0
  %1795 = vmatprep.subr.mxu0 0.0
  %1796 = vmatpush1.msra.mxu0 0.0
  %1797 = vmatprep.subr.mxu0 0.0
  %1798 = vmatpush1.msra.mxu0 0.0
  %1799 = vmatprep.subr.mxu0 0.0
  %1800 = vmatpush1.msra.mxu0 0.0
  %1801 = vmatprep.subr.mxu0 0.0
  %1802 = vmatpush1.msra.mxu0 0.0
  %1803 = vmatprep.subr.mxu0 0.0
  %1804 = vmatpush1.msra.mxu0 0.0
  %1805 = vmatprep.subr.mxu0 0.0
  %1806 = vmatpush1.msra.mxu0 0.0
  %1807 = vmatprep.subr.mxu0 0.0
  %1808 = vmatpush1.msra.mxu0 0.0
  %1809 = vmatprep.subr.mxu0 0.0
  %1810 = vmatpush1.msra.mxu0 0.0
  %1811 = vmatprep.mubr.f32.mxu0 0.0
  %1812 = vmatmul.mubr.f32.gmra.mrb[0].mxu0 %v321
  %v1813 = vpop.f32.mrb[0].mxu0
  %v1814 = vadd.f32 %v302, %v1813
  %v1815 = vpop.f32.mrb[0].mxu0
  %v1816 = vadd.f32 %v302, %v1815
  %1817 = vmatprep.mubr.f32.mxu0 0.0
  %1818 = vmatmul.mubr.f32.gmra.mrb[0].mxu0 %v324
  %v1819 = vpop.f32.mrb[0].mxu0
  %v1820 = vadd.f32 %v307, %v1819
  %v1821 = vpop.f32.mrb[0].mxu0
  %v1822 = vadd.f32 %v307, %v1821
  %1823 = vmatprep.mubr.f32.mxu0 0.0
  %1824 = vmatmul.mubr.f32.gmra.mrb[0].mxu0 %v327
  %v1825 = vpop.f32.mrb[0].mxu0
  %v1826 = vadd.f32 %v312, %v1825
  %v1827 = vpop.f32.mrb[0].mxu0
  %v1828 = vadd.f32 %v312, %v1827
  %1829 = vmatprep.mubr.f32.mxu0 0.0
  %1830 = vmatmul.mubr.f32.gmra.mrb[0].mxu0 %v330
  %v1831 = vpop.f32.mrb[0].mxu0
  %v1832 = vadd.f32 %v317, %v1831
  %v1833 = vpop.f32.mrb[0].mxu0
  %v1834 = vadd.f32 %v317, %v1833
  %1835 = vdwg.mxu0
  %v1836 = vmax.f32 %v1814, 0.0
  %v1837 = vmax.f32 %v1816, 0.0
  %v1838 = vmax.f32 %v1820, 0.0
  %v1839 = vmax.f32 %v1822, 0.0
  %v1840 = vmax.f32 %v1826, 0.0
  %v1841 = vmax.f32 %v1828, 0.0
  %v1842 = vmax.f32 %v1832, 0.0
  %v1843 = vmax.f32 %v1834, 0.0
  %1852 = vrot.lane.b32.xlu0 %v1836, 127
  %v1853 = vpop.permute.xlu0 %1852
  %1854 = vrot.lane.b32.xlu0 %v1837, 127
  %v1855 = vpop.permute.xlu0 %1854
  %1856 = vrot.lane.b32.xlu0 %v1838, 127
  %v1857 = vpop.permute.xlu0 %1856
  %1858 = vrot.lane.b32.xlu0 %v1839, 127
  %v1859 = vpop.permute.xlu0 %1858
  %1860 = vrot.lane.b32.xlu0 %v1840, 127
  %v1861 = vpop.permute.xlu0 %1860
  %1862 = vrot.lane.b32.xlu0 %v1841, 127
  %v1863 = vpop.permute.xlu0 %1862
  %1864 = vrot.lane.b32.xlu0 %v1842, 127
  %v1865 = vpop.permute.xlu0 %1864
  %1866 = vrot.lane.b32.xlu0 %v1843, 127
  %v1867 = vpop.permute.xlu0 %1866
  %v1868 = vsel %vm159, %v1853, %v1855
  %v1869 = vsel %vm159, %v1857, %v1859
  %v1870 = vsel %vm159, %v1861, %v1863
  %v1871 = vsel %vm159, %v1865, %v1867
  %v1880 = vsel %vm163, %v1855, 0.0
  %v1881 = vsel %vm163, %v1859, 0.0
  %v1882 = vsel %vm163, %v1863, 0.0
  %v1883 = vsel %vm163, %v1867, 0.0
  %v1884 = vmax.f32 %v1836, %v1868
  %v1885 = vmax.f32 %v1837, %v1880
  %v1886 = vmax.f32 %v1838, %v1869
  %v1887 = vmax.f32 %v1839, %v1881
  %v1888 = vmax.f32 %v1840, %v1870
  %v1889 = vmax.f32 %v1841, %v1882
  %v1890 = vmax.f32 %v1842, %v1871
  %v1891 = vmax.f32 %v1843, %v1883
  %s1892 = scalar_lea.vmem %s0, 96
  %v1893 = vld [vmem:[%s1892] sm:$0xff]
  %v1894 = vld [vmem:[%s1892 + $0x8] sm:$0xff]
  %1897 = vrot.lane.b32.xlu0 %v1893, 1
  %v1898 = vpop.permute.xlu0 %1897
  %1899 = vrot.lane.b32.xlu0 %v1894, 1
  %v1900 = vpop.permute.xlu0 %1899
  %v1901 = vsel %vm150, %v1898, %v1900
  %v1904 = vsel %vm150, 0.0, %v1898
  %1905 = vrot.lane.b32.xlu0 %v1893, 127
  %v1906 = vpop.permute.xlu0 %1905
  %1907 = vrot.lane.b32.xlu0 %v1894, 127
  %v1908 = vpop.permute.xlu0 %1907
  %v1909 = vsel %vm159, %v1906, %v1908
  %v1912 = vsel %vm163, %v1908, 0.0
  %1913 = vmatprep.subr.mxu0 %v1901
  %1914 = vmatpush1.msra.mxu0 %v1904
  %1915 = vmatprep.subr.mxu0 %v1894
  %1916 = vmatpush1.msra.mxu0 %v1893
  %1917 = vmatprep.subr.mxu0 %v1912
  %1918 = vmatpush1.msra.mxu0 %v1909
  %1919 = vmatprep.subr.mxu0 0.0
  %1920 = vmatpush1.msra.mxu0 0.0
  %1921 = vmatprep.subr.mxu0 0.0
  %1922 = vmatpush1.msra.mxu0 0.0
  %1923 = vmatprep.subr.mxu0 0.0
  %1924 = vmatpush1.msra.mxu0 0.0
  %1925 = vmatprep.subr.mxu0 0.0
  %1926 = vmatpush1.msra.mxu0 0.0
  %1927 = vmatprep.subr.mxu0 0.0
  %1928 = vmatpush1.msra.mxu0 0.0
  %1929 = vmatprep.subr.mxu0 0.0
  %1930 = vmatpush1.msra.mxu0 0.0
  %1931 = vmatprep.subr.mxu0 0.0
  %1932 = vmatpush1.msra.mxu0 0.0
  %1933 = vmatprep.subr.mxu0 0.0
  %1934 = vmatpush1.msra.mxu0 0.0
  %1935 = vmatprep.subr.mxu0 0.0
  %1936 = vmatpush1.msra.mxu0 0.0
  %1937 = vmatprep.subr.mxu0 0.0
  %1938 = vmatpush1.msra.mxu0 0.0
  %1939 = vmatprep.subr.mxu0 0.0
  %1940 = vmatpush1.msra.mxu0 0.0
  %1941 = vmatprep.subr.mxu0 0.0
  %1942 = vmatpush1.msra.mxu0 0.0
  %1943 = vmatprep.subr.mxu0 0.0
  %1944 = vmatpush1.msra.mxu0 0.0
  %1945 = vmatprep.subr.mxu0 0.0
  %1946 = vmatpush1.msra.mxu0 0.0
  %1947 = vmatprep.subr.mxu0 0.0
  %1948 = vmatpush1.msra.mxu0 0.0
  %1949 = vmatprep.subr.mxu0 0.0
  %1950 = vmatpush1.msra.mxu0 0.0
  %1951 = vmatprep.subr.mxu0 0.0
  %1952 = vmatpush1.msra.mxu0 0.0
  %1953 = vmatprep.subr.mxu0 0.0
  %1954 = vmatpush1.msra.mxu0 0.0
  %1955 = vmatprep.subr.mxu0 0.0
  %1956 = vmatpush1.msra.mxu0 0.0
  %1957 = vmatprep.subr.mxu0 0.0
  %1958 = vmatpush1.msra.mxu0 0.0
  %1959 = vmatprep.subr.mxu0 0.0
  %1960 = vmatpush1.msra.mxu0 0.0
  %1961 = vmatprep.subr.mxu0 0.0
  %1962 = vmatpush1.msra.mxu0 0.0
  %1963 = vmatprep.subr.mxu0 0.0
  %1964 = vmatpush1.msra.mxu0 0.0
  %1965 = vmatprep.subr.mxu0 0.0
  %1966 = vmatpush1.msra.mxu0 0.0
  %1967 = vmatprep.subr.mxu0 0.0
  %1968 = vmatpush1.msra.mxu0 0.0
  %1969 = vmatprep.subr.mxu0 0.0
  %1970 = vmatpush1.msra.mxu0 0.0
  %1971 = vmatprep.subr.mxu0 0.0
  %1972 = vmatpush1.msra.mxu0 0.0
  %1973 = vmatprep.subr.mxu0 0.0
  %1974 = vmatpush1.msra.mxu0 0.0
  %1975 = vmatprep.subr.mxu0 0.0
  %1976 = vmatpush1.msra.mxu0 0.0
  %1977 = vmatprep.mubr.f32.mxu0 0.0
  %1978 = vmatmul.mubr.f32.gmra.mrb[0].mxu0 %v177
  %v1979 = vpop.f32.mrb[0].mxu0
  %v1980 = vadd.f32 %v168, %v1979
  %v1981 = vpop.f32.mrb[0].mxu0
  %v1982 = vadd.f32 %v168, %v1981
  %1983 = vmatprep.mubr.f32.mxu0 0.0
  %1984 = vmatmul.mubr.f32.gmra.mrb[0].mxu0 %v180
  %v1985 = vpop.f32.mrb[0].mxu0
  %v1986 = vadd.f32 %v173, %v1985
  %v1987 = vpop.f32.mrb[0].mxu0
  %v1988 = vadd.f32 %v173, %v1987
  %1989 = vdwg.mxu0
  %v1990 = vmax.f32 %v1980, 0.0
  %v1991 = vmax.f32 %v1982, 0.0
  %v1992 = vmax.f32 %v1986, 0.0
  %v1993 = vmax.f32 %v1988, 0.0
  %1998 = vrot.lane.b32.xlu0 %v1990, 1
  %v1999 = vpop.permute.xlu0 %1998
  %2000 = vrot.lane.b32.xlu0 %v1991, 1
  %v2001 = vpop.permute.xlu0 %2000
  %2002 = vrot.lane.b32.xlu0 %v1992, 1
  %v2003 = vpop.permute.xlu0 %2002
  %2004 = vrot.lane.b32.xlu0 %v1993, 1
  %v2005 = vpop.permute.xlu0 %2004
  %v2006 = vsel %vm150, %v1999, %v2001
  %v2007 = vsel %vm150, %v2003, %v2005
  %v2012 = vsel %vm150, 0.0, %v1999
  %v2013 = vsel %vm150, 0.0, %v2003
  %2014 = vrot.lane.b32.xlu0 %v1990, 127
  %v2015 = vpop.permute.xlu0 %2014
  %2016 = vrot.lane.b32.xlu0 %v1991, 127
  %v2017 = vpop.permute.xlu0 %2016
  %2018 = vrot.lane.b32.xlu0 %v1992, 127
  %v2019 = vpop.permute.xlu0 %2018
  %2020 = vrot.lane.b32.xlu0 %v1993, 127
  %v2021 = vpop.permute.xlu0 %2020
  %v2022 = vsel %vm159, %v2015, %v2017
  %v2023 = vsel %vm159, %v2019, %v2021
  %v2028 = vsel %vm163, %v2017, 0.0
  %v2029 = vsel %vm163, %v2021, 0.0
  %2030 = vmatprep.subr.mxu0 %v2006
  %2031 = vmatpush1.msra.mxu0 %v2012
  %2032 = vmatprep.subr.mxu0 %v2007
  %2033 = vmatpush1.msra.mxu0 %v2013
  %2034 = vmatprep.subr.mxu0 %v1991
  %2035 = vmatpush1.msra.mxu0 %v1990
  %2036 = vmatprep.subr.mxu0 %v1993
  %2037 = vmatpush1.msra.mxu0 %v1992
  %2038 = vmatprep.subr.mxu0 %v2028
  %2039 = vmatpush1.msra.mxu0 %v2022
  %2040 = vmatprep.subr.mxu0 %v2029
  %2041 = vmatpush1.msra.mxu0 %v2023
  %2042 = vmatprep.subr.mxu0 0.0
  %2043 = vmatpush1.msra.mxu0 0.0
  %2044 = vmatprep.subr.mxu0 0.0
  %2045 = vmatpush1.msra.mxu0 0.0
  %2046 = vmatprep.subr.mxu0 0.0
  %2047 = vmatpush1.msra.mxu0 0.0
  %2048 = vmatprep.subr.mxu0 0.0
  %2049 = vmatpush1.msra.mxu0 0.0
  %2050 = vmatprep.subr.mxu0 0.0
  %2051 = vmatpush1.msra.mxu0 0.0
  %2052 = vmatprep.subr.mxu0 0.0
  %2053 = vmatpush1.msra.mxu0 0.0
  %2054 = vmatprep.subr.mxu0 0.0
  %2055 = vmatpush1.msra.mxu0 0.0
  %2056 = vmatprep.subr.mxu0 0.0
  %2057 = vmatpush1.msra.mxu0 0.0
  %2058 = vmatprep.subr.mxu0 0.0
  %2059 = vmatpush1.msra.mxu0 0.0
  %2060 = vmatprep.subr.mxu0 0.0
  %2061 = vmatpush1.msra.mxu0 0.0
  %2062 = vmatprep.subr.mxu0 0.0
  %2063 = vmatpush1.msra.mxu0 0.0
  %2064 = vmatprep.subr.mxu0 0.0
  %2065 = vmatpush1.msra.mxu0 0.0
  %2066 = vmatprep.subr.mxu0 0.0
  %2067 = vmatpush1.msra.mxu0 0.0
  %2068 = vmatprep.subr.mxu0 0.0
  %2069 = vmatpush1.msra.mxu0 0.0
  %2070 = vmatprep.subr.mxu0 0.0
  %2071 = vmatpush1.msra.mxu0 0.0
  %2072 = vmatprep.subr.mxu0 0.0
  %2073 = vmatpush1.msra.mxu0 0.0
  %2074 = vmatprep.subr.mxu0 0.0
  %2075 = vmatpush1.msra.mxu0 0.0
  %2076 = vmatprep.subr.mxu0 0.0
  %2077 = vmatpush1.msra.mxu0 0.0
  %2078 = vmatprep.subr.mxu0 0.0
  %2079 = vmatpush1.msra.mxu0 0.0
  %2080 = vmatprep.subr.mxu0 0.0
  %2081 = vmatpush1.msra.mxu0 0.0
  %2082 = vmatprep.subr.mxu0 0.0
  %2083 = vmatpush1.msra.mxu0 0.0
  %2084 = vmatprep.subr.mxu0 0.0
  %2085 = vmatpush1.msra.mxu0 0.0
  %2086 = vmatprep.subr.mxu0 0.0
  %2087 = vmatpush1.msra.mxu0 0.0
  %2088 = vmatprep.subr.mxu0 0.0
  %2089 = vmatpush1.msra.mxu0 0.0
  %2090 = vmatprep.subr.mxu0 0.0
  %2091 = vmatpush1.msra.mxu0 0.0
  %2092 = vmatprep.subr.mxu0 0.0
  %2093 = vmatpush1.msra.mxu0 0.0
  %2094 = vmatprep.mubr.f32.mxu0 0.0
  %2095 = vmatmul.mubr.f32.gmra.mrb[0].mxu0 %v321
  %v2096 = vpop.f32.mrb[0].mxu0
  %v2097 = vadd.f32 %v302, %v2096
  %v2098 = vpop.f32.mrb[0].mxu0
  %v2099 = vadd.f32 %v302, %v2098
  %2100 = vmatprep.mubr.f32.mxu0 0.0
  %2101 = vmatmul.mubr.f32.gmra.mrb[0].mxu0 %v324
  %v2102 = vpop.f32.mrb[0].mxu0
  %v2103 = vadd.f32 %v307, %v2102
  %v2104 = vpop.f32.mrb[0].mxu0
  %v2105 = vadd.f32 %v307, %v2104
  %2106 = vmatprep.mubr.f32.mxu0 0.0
  %2107 = vmatmul.mubr.f32.gmra.mrb[0].mxu0 %v327
  %v2108 = vpop.f32.mrb[0].mxu0
  %v2109 = vadd.f32 %v312, %v2108
  %v2110 = vpop.f32.mrb[0].mxu0
  %v2111 = vadd.f32 %v312, %v2110
  %2112 = vmatprep.mubr.f32.mxu0 0.0
  %2113 = vmatmul.mubr.f32.gmra.mrb[0].mxu0 %v330
  %v2114 = vpop.f32.mrb[0].mxu0
  %v2115 = vadd.f32 %v317, %v2114
  %v2116 = vpop.f32.mrb[0].mxu0
  %v2117 = vadd.f32 %v317, %v2116
  %2118 = vdwg.mxu0
  %v2119 = vmax.f32 %v2097, 0.0
  %v2120 = vmax.f32 %v2099, 0.0
  %v2121 = vmax.f32 %v2103, 0.0
  %v2122 = vmax.f32 %v2105, 0.0
  %v2123 = vmax.f32 %v2109, 0.0
  %v2124 = vmax.f32 %v2111, 0.0
  %v2125 = vmax.f32 %v2115, 0.0
  %v2126 = vmax.f32 %v2117, 0.0
  %2135 = vrot.lane.b32.xlu0 %v2119, 127
  %v2136 = vpop.permute.xlu0 %2135
  %2137 = vrot.lane.b32.xlu0 %v2120, 127
  %v2138 = vpop.permute.xlu0 %2137
  %2139 = vrot.lane.b32.xlu0 %v2121, 127
  %v2140 = vpop.permute.xlu0 %2139
  %2141 = vrot.lane.b32.xlu0 %v2122, 127
  %v2142 = vpop.permute.xlu0 %2141
  %2143 = vrot.lane.b32.xlu0 %v2123, 127
  %v2144 = vpop.permute.xlu0 %2143
  %2145 = vrot.lane.b32.xlu0 %v2124, 127
  %v2146 = vpop.permute.xlu0 %2145
  %2147 = vrot.lane.b32.xlu0 %v2125, 127
  %v2148 = vpop.permute.xlu0 %2147
  %2149 = vrot.lane.b32.xlu0 %v2126, 127
  %v2150 = vpop.permute.xlu0 %2149
  %v2151 = vsel %vm159, %v2136, %v2138
  %v2152 = vsel %vm159, %v2140, %v2142
  %v2153 = vsel %vm159, %v2144, %v2146
  %v2154 = vsel %vm159, %v2148, %v2150
  %v2163 = vsel %vm163, %v2138, 0.0
  %v2164 = vsel %vm163, %v2142, 0.0
  %v2165 = vsel %vm163, %v2146, 0.0
  %v2166 = vsel %vm163, %v2150, 0.0
  %v2167 = vmax.f32 %v2119, %v2151
  %v2168 = vmax.f32 %v2120, %v2163
  %v2169 = vmax.f32 %v2121, %v2152
  %v2170 = vmax.f32 %v2122, %v2164
  %v2171 = vmax.f32 %v2123, %v2153
  %v2172 = vmax.f32 %v2124, %v2165
  %v2173 = vmax.f32 %v2125, %v2154
  %v2174 = vmax.f32 %v2126, %v2166
  %s2175 = scalar_lea.vmem %s0, 112
  %v2176 = vld [vmem:[%s2175] sm:$0xff]
  %v2177 = vld [vmem:[%s2175 + $0x8] sm:$0xff]
  %2180 = vrot.lane.b32.xlu0 %v2176, 1
  %v2181 = vpop.permute.xlu0 %2180
  %2182 = vrot.lane.b32.xlu0 %v2177, 1
  %v2183 = vpop.permute.xlu0 %2182
  %v2184 = vsel %vm150, %v2181, %v2183
  %v2187 = vsel %vm150, 0.0, %v2181
  %2188 = vrot.lane.b32.xlu0 %v2176, 127
  %v2189 = vpop.permute.xlu0 %2188
  %2190 = vrot.lane.b32.xlu0 %v2177, 127
  %v2191 = vpop.permute.xlu0 %2190
  %v2192 = vsel %vm159, %v2189, %v2191
  %v2195 = vsel %vm163, %v2191, 0.0
  %2196 = vmatprep.subr.mxu0 %v2184
  %2197 = vmatpush1.msra.mxu0 %v2187
  %2198 = vmatprep.subr.mxu0 %v2177
  %2199 = vmatpush1.msra.mxu0 %v2176
  %2200 = vmatprep.subr.mxu0 %v2195
  %2201 = vmatpush1.msra.mxu0 %v2192
  %2202 = vmatprep.subr.mxu0 0.0
  %2203 = vmatpush1.msra.mxu0 0.0
  %2204 = vmatprep.subr.mxu0 0.0
  %2205 = vmatpush1.msra.mxu0 0.0
  %2206 = vmatprep.subr.mxu0 0.0
  %2207 = vmatpush1.msra.mxu0 0.0
  %2208 = vmatprep.subr.mxu0 0.0
  %2209 = vmatpush1.msra.mxu0 0.0
  %2210 = vmatprep.subr.mxu0 0.0
  %2211 = vmatpush1.msra.mxu0 0.0
  %2212 = vmatprep.subr.mxu0 0.0
  %2213 = vmatpush1.msra.mxu0 0.0
  %2214 = vmatprep.subr.mxu0 0.0
  %2215 = vmatpush1.msra.mxu0 0.0
  %2216 = vmatprep.subr.mxu0 0.0
  %2217 = vmatpush1.msra.mxu0 0.0
  %2218 = vmatprep.subr.mxu0 0.0
  %2219 = vmatpush1.msra.mxu0 0.0
  %2220 = vmatprep.subr.mxu0 0.0
  %2221 = vmatpush1.msra.mxu0 0.0
  %2222 = vmatprep.subr.mxu0 0.0
  %2223 = vmatpush1.msra.mxu0 0.0
  %2224 = vmatprep.subr.mxu0 0.0
  %2225 = vmatpush1.msra.mxu0 0.0
  %2226 = vmatprep.subr.mxu0 0.0
  %2227 = vmatpush1.msra.mxu0 0.0
  %2228 = vmatprep.subr.mxu0 0.0
  %2229 = vmatpush1.msra.mxu0 0.0
  %2230 = vmatprep.subr.mxu0 0.0
  %2231 = vmatpush1.msra.mxu0 0.0
  %2232 = vmatprep.subr.mxu0 0.0
  %2233 = vmatpush1.msra.mxu0 0.0
  %2234 = vmatprep.subr.mxu0 0.0
  %2235 = vmatpush1.msra.mxu0 0.0
  %2236 = vmatprep.subr.mxu0 0.0
  %2237 = vmatpush1.msra.mxu0 0.0
  %2238 = vmatprep.subr.mxu0 0.0
  %2239 = vmatpush1.msra.mxu0 0.0
  %2240 = vmatprep.subr.mxu0 0.0
  %2241 = vmatpush1.msra.mxu0 0.0
  %2242 = vmatprep.subr.mxu0 0.0
  %2243 = vmatpush1.msra.mxu0 0.0
  %2244 = vmatprep.subr.mxu0 0.0
  %2245 = vmatpush1.msra.mxu0 0.0
  %2246 = vmatprep.subr.mxu0 0.0
  %2247 = vmatpush1.msra.mxu0 0.0
  %2248 = vmatprep.subr.mxu0 0.0
  %2249 = vmatpush1.msra.mxu0 0.0
  %2250 = vmatprep.subr.mxu0 0.0
  %2251 = vmatpush1.msra.mxu0 0.0
  %2252 = vmatprep.subr.mxu0 0.0
  %2253 = vmatpush1.msra.mxu0 0.0
  %2254 = vmatprep.subr.mxu0 0.0
  %2255 = vmatpush1.msra.mxu0 0.0
  %2256 = vmatprep.subr.mxu0 0.0
  %2257 = vmatpush1.msra.mxu0 0.0
  %2258 = vmatprep.subr.mxu0 0.0
  %2259 = vmatpush1.msra.mxu0 0.0
  %2260 = vmatprep.mubr.f32.mxu0 0.0
  %2261 = vmatmul.mubr.f32.gmra.mrb[0].mxu0 %v177
  %v2262 = vpop.f32.mrb[0].mxu0
  %v2263 = vadd.f32 %v168, %v2262
  %v2264 = vpop.f32.mrb[0].mxu0
  %v2265 = vadd.f32 %v168, %v2264
  %2266 = vmatprep.mubr.f32.mxu0 0.0
  %2267 = vmatmul.mubr.f32.gmra.mrb[0].mxu0 %v180
  %v2268 = vpop.f32.mrb[0].mxu0
  %v2269 = vadd.f32 %v173, %v2268
  %v2270 = vpop.f32.mrb[0].mxu0
  %v2271 = vadd.f32 %v173, %v2270
  %2272 = vdwg.mxu0
  %v2273 = vmax.f32 %v2263, 0.0
  %v2274 = vmax.f32 %v2265, 0.0
  %v2275 = vmax.f32 %v2269, 0.0
  %v2276 = vmax.f32 %v2271, 0.0
  %2281 = vrot.lane.b32.xlu0 %v2273, 1
  %v2282 = vpop.permute.xlu0 %2281
  %2283 = vrot.lane.b32.xlu0 %v2274, 1
  %v2284 = vpop.permute.xlu0 %2283
  %2285 = vrot.lane.b32.xlu0 %v2275, 1
  %v2286 = vpop.permute.xlu0 %2285
  %2287 = vrot.lane.b32.xlu0 %v2276, 1
  %v2288 = vpop.permute.xlu0 %2287
  %v2289 = vsel %vm150, %v2282, %v2284
  %v2290 = vsel %vm150, %v2286, %v2288
  %v2295 = vsel %vm150, 0.0, %v2282
  %v2296 = vsel %vm150, 0.0, %v2286
  %2297 = vrot.lane.b32.xlu0 %v2273, 127
  %v2298 = vpop.permute.xlu0 %2297
  %2299 = vrot.lane.b32.xlu0 %v2274, 127
  %v2300 = vpop.permute.xlu0 %2299
  %2301 = vrot.lane.b32.xlu0 %v2275, 127
  %v2302 = vpop.permute.xlu0 %2301
  %2303 = vrot.lane.b32.xlu0 %v2276, 127
  %v2304 = vpop.permute.xlu0 %2303
  %v2305 = vsel %vm159, %v2298, %v2300
  %v2306 = vsel %vm159, %v2302, %v2304
  %v2311 = vsel %vm163, %v2300, 0.0
  %v2312 = vsel %vm163, %v2304, 0.0
  %2313 = vmatprep.subr.mxu0 %v2289
  %2314 = vmatpush1.msra.mxu0 %v2295
  %2315 = vmatprep.subr.mxu0 %v2290
  %2316 = vmatpush1.msra.mxu0 %v2296
  %2317 = vmatprep.subr.mxu0 %v2274
  %2318 = vmatpush1.msra.mxu0 %v2273
  %2319 = vmatprep.subr.mxu0 %v2276
  %2320 = vmatpush1.msra.mxu0 %v2275
  %2321 = vmatprep.subr.mxu0 %v2311
  %2322 = vmatpush1.msra.mxu0 %v2305
  %2323 = vmatprep.subr.mxu0 %v2312
  %2324 = vmatpush1.msra.mxu0 %v2306
  %2325 = vmatprep.subr.mxu0 0.0
  %2326 = vmatpush1.msra.mxu0 0.0
  %2327 = vmatprep.subr.mxu0 0.0
  %2328 = vmatpush1.msra.mxu0 0.0
  %2329 = vmatprep.subr.mxu0 0.0
  %2330 = vmatpush1.msra.mxu0 0.0
  %2331 = vmatprep.subr.mxu0 0.0
  %2332 = vmatpush1.msra.mxu0 0.0
  %2333 = vmatprep.subr.mxu0 0.0
  %2334 = vmatpush1.msra.mxu0 0.0
  %2335 = vmatprep.subr.mxu0 0.0
  %2336 = vmatpush1.msra.mxu0 0.0
  %2337 = vmatprep.subr.mxu0 0.0
  %2338 = vmatpush1.msra.mxu0 0.0
  %2339 = vmatprep.subr.mxu0 0.0
  %2340 = vmatpush1.msra.mxu0 0.0
  %2341 = vmatprep.subr.mxu0 0.0
  %2342 = vmatpush1.msra.mxu0 0.0
  %2343 = vmatprep.subr.mxu0 0.0
  %2344 = vmatpush1.msra.mxu0 0.0
  %2345 = vmatprep.subr.mxu0 0.0
  %2346 = vmatpush1.msra.mxu0 0.0
  %2347 = vmatprep.subr.mxu0 0.0
  %2348 = vmatpush1.msra.mxu0 0.0
  %2349 = vmatprep.subr.mxu0 0.0
  %2350 = vmatpush1.msra.mxu0 0.0
  %2351 = vmatprep.subr.mxu0 0.0
  %2352 = vmatpush1.msra.mxu0 0.0
  %2353 = vmatprep.subr.mxu0 0.0
  %2354 = vmatpush1.msra.mxu0 0.0
  %2355 = vmatprep.subr.mxu0 0.0
  %2356 = vmatpush1.msra.mxu0 0.0
  %2357 = vmatprep.subr.mxu0 0.0
  %2358 = vmatpush1.msra.mxu0 0.0
  %2359 = vmatprep.subr.mxu0 0.0
  %2360 = vmatpush1.msra.mxu0 0.0
  %2361 = vmatprep.subr.mxu0 0.0
  %2362 = vmatpush1.msra.mxu0 0.0
  %2363 = vmatprep.subr.mxu0 0.0
  %2364 = vmatpush1.msra.mxu0 0.0
  %2365 = vmatprep.subr.mxu0 0.0
  %2366 = vmatpush1.msra.mxu0 0.0
  %2367 = vmatprep.subr.mxu0 0.0
  %2368 = vmatpush1.msra.mxu0 0.0
  %2369 = vmatprep.subr.mxu0 0.0
  %2370 = vmatpush1.msra.mxu0 0.0
  %2371 = vmatprep.subr.mxu0 0.0
  %2372 = vmatpush1.msra.mxu0 0.0
  %2373 = vmatprep.subr.mxu0 0.0
  %2374 = vmatpush1.msra.mxu0 0.0
  %2375 = vmatprep.subr.mxu0 0.0
  %2376 = vmatpush1.msra.mxu0 0.0
  %2377 = vmatprep.mubr.f32.mxu0 0.0
  %2378 = vmatmul.mubr.f32.gmra.mrb[0].mxu0 %v321
  %v2379 = vpop.f32.mrb[0].mxu0
  %v2380 = vadd.f32 %v302, %v2379
  %v2381 = vpop.f32.mrb[0].mxu0
  %v2382 = vadd.f32 %v302, %v2381
  %2383 = vmatprep.mubr.f32.mxu0 0.0
  %2384 = vmatmul.mubr.f32.gmra.mrb[0].mxu0 %v324
  %v2385 = vpop.f32.mrb[0].mxu0
  %v2386 = vadd.f32 %v307, %v2385
  %v2387 = vpop.f32.mrb[0].mxu0
  %v2388 = vadd.f32 %v307, %v2387
  %2389 = vmatprep.mubr.f32.mxu0 0.0
  %2390 = vmatmul.mubr.f32.gmra.mrb[0].mxu0 %v327
  %v2391 = vpop.f32.mrb[0].mxu0
  %v2392 = vadd.f32 %v312, %v2391
  %v2393 = vpop.f32.mrb[0].mxu0
  %v2394 = vadd.f32 %v312, %v2393
  %2395 = vmatprep.mubr.f32.mxu0 0.0
  %2396 = vmatmul.mubr.f32.gmra.mrb[0].mxu0 %v330
  %v2397 = vpop.f32.mrb[0].mxu0
  %v2398 = vadd.f32 %v317, %v2397
  %v2399 = vpop.f32.mrb[0].mxu0
  %v2400 = vadd.f32 %v317, %v2399
  %2401 = vdwg.mxu0
  %v2402 = vmax.f32 %v2380, 0.0
  %v2403 = vmax.f32 %v2382, 0.0
  %v2404 = vmax.f32 %v2386, 0.0
  %v2405 = vmax.f32 %v2388, 0.0
  %v2406 = vmax.f32 %v2392, 0.0
  %v2407 = vmax.f32 %v2394, 0.0
  %v2408 = vmax.f32 %v2398, 0.0
  %v2409 = vmax.f32 %v2400, 0.0
  %2418 = vrot.lane.b32.xlu0 %v2402, 127
  %v2419 = vpop.permute.xlu0 %2418
  %2420 = vrot.lane.b32.xlu0 %v2403, 127
  %v2421 = vpop.permute.xlu0 %2420
  %2422 = vrot.lane.b32.xlu0 %v2404, 127
  %v2423 = vpop.permute.xlu0 %2422
  %2424 = vrot.lane.b32.xlu0 %v2405, 127
  %v2425 = vpop.permute.xlu0 %2424
  %2426 = vrot.lane.b32.xlu0 %v2406, 127
  %v2427 = vpop.permute.xlu0 %2426
  %2428 = vrot.lane.b32.xlu0 %v2407, 127
  %v2429 = vpop.permute.xlu0 %2428
  %2430 = vrot.lane.b32.xlu0 %v2408, 127
  %v2431 = vpop.permute.xlu0 %2430
  %2432 = vrot.lane.b32.xlu0 %v2409, 127
  %v2433 = vpop.permute.xlu0 %2432
  %v2434 = vsel %vm159, %v2419, %v2421
  %v2435 = vsel %vm159, %v2423, %v2425
  %v2436 = vsel %vm159, %v2427, %v2429
  %v2437 = vsel %vm159, %v2431, %v2433
  %v2446 = vsel %vm163, %v2421, 0.0
  %v2447 = vsel %vm163, %v2425, 0.0
  %v2448 = vsel %vm163, %v2429, 0.0
  %v2449 = vsel %vm163, %v2433, 0.0
  %v2450 = vmax.f32 %v2402, %v2434
  %v2451 = vmax.f32 %v2403, %v2446
  %v2452 = vmax.f32 %v2404, %v2435
  %v2453 = vmax.f32 %v2405, %v2447
  %v2454 = vmax.f32 %v2406, %v2436
  %v2455 = vmax.f32 %v2407, %v2448
  %v2456 = vmax.f32 %v2408, %v2437
  %v2457 = vmax.f32 %v2409, %v2449
  %vm2458 = vcmask 654336
  %v2460 = vsel %vm2458, %v470, 0
  %v2463 = vsel %vm2458, %v472, 0
  %v2466 = vsel %vm2458, %v474, 0
  %v2469 = vsel %vm2458, %v476, 0
  %v2472 = vsel %vm2458, %v753, 0
  %v2475 = vsel %vm2458, %v755, 0
  %v2478 = vsel %vm2458, %v757, 0
  %v2481 = vsel %vm2458, %v759, 0
  %v2484 = vsel %vm2458, %v1036, 0
  %v2487 = vsel %vm2458, %v1038, 0
  %v2490 = vsel %vm2458, %v1040, 0
  %v2493 = vsel %vm2458, %v1042, 0
  %v2496 = vsel %vm2458, %v1319, 0
  %v2499 = vsel %vm2458, %v1321, 0
  %v2502 = vsel %vm2458, %v1323, 0
  %v2505 = vsel %vm2458, %v1325, 0
  %v2508 = vsel %vm2458, %v1602, 0
  %v2511 = vsel %vm2458, %v1604, 0
  %v2514 = vsel %vm2458, %v1606, 0
  %v2517 = vsel %vm2458, %v1608, 0
  %v2520 = vsel %vm2458, %v1885, 0
  %v2523 = vsel %vm2458, %v1887, 0
  %v2526 = vsel %vm2458, %v1889, 0
  %v2529 = vsel %vm2458, %v1891, 0
  %v2532 = vsel %vm2458, %v2168, 0
  %v2535 = vsel %vm2458, %v2170, 0
  %v2538 = vsel %vm2458, %v2172, 0
  %v2541 = vsel %vm2458, %v2174, 0
  %v2544 = vsel %vm2458, %v2451, 0
  %v2547 = vsel %vm2458, %v2453, 0
  %v2550 = vsel %vm2458, %v2455, 0
  %v2553 = vsel %vm2458, %v2457, 0
  %2555 = vmatprep.subr.mxu0 0.0
  %2556 = vmatpush1.msra.mxu0 %v95
  %2557 = vmatprep.subr.mxu0 0.0
  %2558 = vmatpush1.msra.mxu0 %v96
  %2559 = vmatprep.subr.mxu0 0.0
  %2560 = vmatpush1.msra.mxu0 %v97
  %2561 = vmatprep.subr.mxu0 0.0
  %2562 = vmatpush1.msra.mxu0 %v98
  %2563 = vmatprep.subr.mxu0 0.0
  %2564 = vmatpush1.msra.mxu0 %v99
  %2565 = vmatprep.subr.mxu0 0.0
  %2566 = vmatpush1.msra.mxu0 %v100
  %2567 = vmatprep.subr.mxu0 0.0
  %2568 = vmatpush1.msra.mxu0 %v101
  %2569 = vmatprep.subr.mxu0 0.0
  %2570 = vmatpush1.msra.mxu0 %v102
  %2571 = vmatprep.subr.mxu0 0.0
  %2572 = vmatpush1.msra.mxu0 %v103
  %2573 = vmatprep.subr.mxu0 0.0
  %2574 = vmatpush1.msra.mxu0 %v104
  %2575 = vmatprep.subr.mxu0 0.0
  %2576 = vmatpush1.msra.mxu0 %v105
  %2577 = vmatprep.subr.mxu0 0.0
  %2578 = vmatpush1.msra.mxu0 %v106
  %2579 = vmatprep.subr.mxu0 0.0
  %2580 = vmatpush1.msra.mxu0 %v107
  %2581 = vmatprep.subr.mxu0 0.0
  %2582 = vmatpush1.msra.mxu0 %v108
  %2583 = vmatprep.subr.mxu0 0.0
  %2584 = vmatpush1.msra.mxu0 %v109
  %2585 = vmatprep.subr.mxu0 0.0
  %2586 = vmatpush1.msra.mxu0 %v110
  %2587 = vmatprep.subr.mxu0 0.0
  %2588 = vmatpush1.msra.mxu0 %v111
  %2589 = vmatprep.subr.mxu0 0.0
  %2590 = vmatpush1.msra.mxu0 %v112
  %2591 = vmatprep.subr.mxu0 0.0
  %2592 = vmatpush1.msra.mxu0 %v113
  %2593 = vmatprep.subr.mxu0 0.0
  %2594 = vmatpush1.msra.mxu0 %v114
  %2595 = vmatprep.subr.mxu0 0.0
  %2596 = vmatpush1.msra.mxu0 %v115
  %2597 = vmatprep.subr.mxu0 0.0
  %2598 = vmatpush1.msra.mxu0 %v116
  %2599 = vmatprep.subr.mxu0 0.0
  %2600 = vmatpush1.msra.mxu0 %v117
  %2601 = vmatprep.subr.mxu0 0.0
  %2602 = vmatpush1.msra.mxu0 %v118
  %2603 = vmatprep.subr.mxu0 0.0
  %2604 = vmatpush1.msra.mxu0 %v119
  %2605 = vmatprep.subr.mxu0 0.0
  %2606 = vmatpush1.msra.mxu0 %v120
  %2607 = vmatprep.subr.mxu0 0.0
  %2608 = vmatpush1.msra.mxu0 0.0
  %2609 = vmatprep.subr.mxu0 0.0
  %2610 = vmatpush1.msra.mxu0 0.0
  %2611 = vmatprep.subr.mxu0 0.0
  %2612 = vmatpush1.msra.mxu0 0.0
  %2613 = vmatprep.subr.mxu0 0.0
  %2614 = vmatpush1.msra.mxu0 0.0
  %2615 = vmatprep.subr.mxu0 0.0
  %2616 = vmatpush1.msra.mxu0 0.0
  %2617 = vmatprep.subr.mxu0 0.0
  %2618 = vmatpush1.msra.mxu0 0.0
  %2619 = vmatprep.mubr.f32.mxu0 %v2460
  %2620 = vmatmul.mubr.f32.gmra.mrb[0].mxu0 %v469
  %v2621 = vpop.f32.mrb[0].mxu0
  %v2622 = vadd.f32 0.0, %v2621
  %v2623 = vpop.f32.mrb[0].mxu0
  %2624 = vmatprep.mubr.f32.mxu0 %v2463
  %2625 = vmatmul.mubr.f32.gmra.mrb[0].mxu0 %v471
  %v2626 = vpop.f32.mrb[0].mxu0
  %v2627 = vadd.f32 0.0, %v2626
  %v2628 = vpop.f32.mrb[0].mxu0
  %2629 = vmatprep.mubr.f32.mxu0 %v2466
  %2630 = vmatmul.mubr.f32.gmra.mrb[0].mxu0 %v473
  %v2631 = vpop.f32.mrb[0].mxu0
  %v2632 = vadd.f32 0.0, %v2631
  %v2633 = vpop.f32.mrb[0].mxu0
  %2634 = vmatprep.mubr.f32.mxu0 %v2469
  %2635 = vmatmul.mubr.f32.gmra.mrb[0].mxu0 %v475
  %v2636 = vpop.f32.mrb[0].mxu0
  %v2637 = vadd.f32 0.0, %v2636
  %v2638 = vpop.f32.mrb[0].mxu0
  %2639 = vmatprep.mubr.f32.mxu0 %v2472
  %2640 = vmatmul.mubr.f32.gmra.mrb[0].mxu0 %v752
  %v2641 = vpop.f32.mrb[0].mxu0
  %v2642 = vadd.f32 0.0, %v2641
  %v2643 = vpop.f32.mrb[0].mxu0
  %2644 = vmatprep.mubr.f32.mxu0 %v2475
  %2645 = vmatmul.mubr.f32.gmra.mrb[0].mxu0 %v754
  %v2646 = vpop.f32.mrb[0].mxu0
  %v2647 = vadd.f32 0.0, %v2646
  %v2648 = vpop.f32.mrb[0].mxu0
  %2649 = vmatprep.mubr.f32.mxu0 %v2478
  %2650 = vmatmul.mubr.f32.gmra.mrb[0].mxu0 %v756
  %v2651 = vpop.f32.mrb[0].mxu0
  %v2652 = vadd.f32 0.0, %v2651
  %v2653 = vpop.f32.mrb[0].mxu0
  %2654 = vmatprep.mubr.f32.mxu0 %v2481
  %2655 = vmatmul.mubr.f32.gmra.mrb[0].mxu0 %v758
  %v2656 = vpop.f32.mrb[0].mxu0
  %v2657 = vadd.f32 0.0, %v2656
  %v2658 = vpop.f32.mrb[0].mxu0
  %2659 = vmatprep.mubr.f32.mxu0 %v2484
  %2660 = vmatmul.mubr.f32.gmra.mrb[0].mxu0 %v1035
  %v2661 = vpop.f32.mrb[0].mxu0
  %v2662 = vadd.f32 0.0, %v2661
  %v2663 = vpop.f32.mrb[0].mxu0
  %2664 = vmatprep.mubr.f32.mxu0 %v2487
  %2665 = vmatmul.mubr.f32.gmra.mrb[0].mxu0 %v1037
  %v2666 = vpop.f32.mrb[0].mxu0
  %v2667 = vadd.f32 0.0, %v2666
  %v2668 = vpop.f32.mrb[0].mxu0
  %2669 = vmatprep.mubr.f32.mxu0 %v2490
  %2670 = vmatmul.mubr.f32.gmra.mrb[0].mxu0 %v1039
  %v2671 = vpop.f32.mrb[0].mxu0
  %v2672 = vadd.f32 0.0, %v2671
  %v2673 = vpop.f32.mrb[0].mxu0
  %2674 = vmatprep.mubr.f32.mxu0 %v2493
  %2675 = vmatmul.mubr.f32.gmra.mrb[0].mxu0 %v1041
  %v2676 = vpop.f32.mrb[0].mxu0
  %v2677 = vadd.f32 0.0, %v2676
  %v2678 = vpop.f32.mrb[0].mxu0
  %2679 = vmatprep.mubr.f32.mxu0 %v2496
  %2680 = vmatmul.mubr.f32.gmra.mrb[0].mxu0 %v1318
  %v2681 = vpop.f32.mrb[0].mxu0
  %v2682 = vadd.f32 0.0, %v2681
  %v2683 = vpop.f32.mrb[0].mxu0
  %2684 = vmatprep.mubr.f32.mxu0 %v2499
  %2685 = vmatmul.mubr.f32.gmra.mrb[0].mxu0 %v1320
  %v2686 = vpop.f32.mrb[0].mxu0
  %v2687 = vadd.f32 0.0, %v2686
  %v2688 = vpop.f32.mrb[0].mxu0
  %2689 = vmatprep.mubr.f32.mxu0 %v2502
  %2690 = vmatmul.mubr.f32.gmra.mrb[0].mxu0 %v1322
  %v2691 = vpop.f32.mrb[0].mxu0
  %v2692 = vadd.f32 0.0, %v2691
  %v2693 = vpop.f32.mrb[0].mxu0
  %2694 = vmatprep.mubr.f32.mxu0 %v2505
  %2695 = vmatmul.mubr.f32.gmra.mrb[0].mxu0 %v1324
  %v2696 = vpop.f32.mrb[0].mxu0
  %v2697 = vadd.f32 0.0, %v2696
  %v2698 = vpop.f32.mrb[0].mxu0
  %2699 = vmatprep.mubr.f32.mxu0 %v2508
  %2700 = vmatmul.mubr.f32.gmra.mrb[0].mxu0 %v1601
  %v2701 = vpop.f32.mrb[0].mxu0
  %v2702 = vadd.f32 0.0, %v2701
  %v2703 = vpop.f32.mrb[0].mxu0
  %2704 = vmatprep.mubr.f32.mxu0 %v2511
  %2705 = vmatmul.mubr.f32.gmra.mrb[0].mxu0 %v1603
  %v2706 = vpop.f32.mrb[0].mxu0
  %v2707 = vadd.f32 0.0, %v2706
  %v2708 = vpop.f32.mrb[0].mxu0
  %2709 = vmatprep.mubr.f32.mxu0 %v2514
  %2710 = vmatmul.mubr.f32.gmra.mrb[0].mxu0 %v1605
  %v2711 = vpop.f32.mrb[0].mxu0
  %v2712 = vadd.f32 0.0, %v2711
  %v2713 = vpop.f32.mrb[0].mxu0
  %2714 = vmatprep.mubr.f32.mxu0 %v2517
  %2715 = vmatmul.mubr.f32.gmra.mrb[0].mxu0 %v1607
  %v2716 = vpop.f32.mrb[0].mxu0
  %v2717 = vadd.f32 0.0, %v2716
  %v2718 = vpop.f32.mrb[0].mxu0
  %2719 = vmatprep.mubr.f32.mxu0 %v2520
  %2720 = vmatmul.mubr.f32.gmra.mrb[0].mxu0 %v1884
  %v2721 = vpop.f32.mrb[0].mxu0
  %v2722 = vadd.f32 0.0, %v2721
  %v2723 = vpop.f32.mrb[0].mxu0
  %2724 = vmatprep.mubr.f32.mxu0 %v2523
  %2725 = vmatmul.mubr.f32.gmra.mrb[0].mxu0 %v1886
  %v2726 = vpop.f32.mrb[0].mxu0
  %v2727 = vadd.f32 0.0, %v2726
  %v2728 = vpop.f32.mrb[0].mxu0
  %2729 = vmatprep.mubr.f32.mxu0 %v2526
  %2730 = vmatmul.mubr.f32.gmra.mrb[0].mxu0 %v1888
  %v2731 = vpop.f32.mrb[0].mxu0
  %v2732 = vadd.f32 0.0, %v2731
  %v2733 = vpop.f32.mrb[0].mxu0
  %2734 = vmatprep.mubr.f32.mxu0 %v2529
  %2735 = vmatmul.mubr.f32.gmra.mrb[0].mxu0 %v1890
  %v2736 = vpop.f32.mrb[0].mxu0
  %v2737 = vadd.f32 0.0, %v2736
  %v2738 = vpop.f32.mrb[0].mxu0
  %2739 = vmatprep.mubr.f32.mxu0 %v2532
  %2740 = vmatmul.mubr.f32.gmra.mrb[0].mxu0 %v2167
  %v2741 = vpop.f32.mrb[0].mxu0
  %v2742 = vadd.f32 0.0, %v2741
  %v2743 = vpop.f32.mrb[0].mxu0
  %2744 = vmatprep.mubr.f32.mxu0 %v2535
  %2745 = vmatmul.mubr.f32.gmra.mrb[0].mxu0 %v2169
  %v2746 = vpop.f32.mrb[0].mxu0
  %v2747 = vadd.f32 0.0, %v2746
  %v2748 = vpop.f32.mrb[0].mxu0
  %2749 = vmatprep.mubr.f32.mxu0 %v2538
  %2750 = vmatmul.mubr.f32.gmra.mrb[0].mxu0 %v2171
  %v2751 = vpop.f32.mrb[0].mxu0
  %v2752 = vadd.f32 0.0, %v2751
  %v2753 = vpop.f32.mrb[0].mxu0
  %2754 = vmatprep.mubr.f32.mxu0 %v2541
  %2755 = vmatmul.mubr.f32.gmra.mrb[0].mxu0 %v2173
  %v2756 = vpop.f32.mrb[0].mxu0
  %v2757 = vadd.f32 0.0, %v2756
  %v2758 = vpop.f32.mrb[0].mxu0
  %2759 = vmatprep.mubr.f32.mxu0 %v2544
  %2760 = vmatmul.mubr.f32.gmra.mrb[0].mxu0 %v2450
  %v2761 = vpop.f32.mrb[0].mxu0
  %v2762 = vadd.f32 0.0, %v2761
  %v2763 = vpop.f32.mrb[0].mxu0
  %2764 = vmatprep.mubr.f32.mxu0 %v2547
  %2765 = vmatmul.mubr.f32.gmra.mrb[0].mxu0 %v2452
  %v2766 = vpop.f32.mrb[0].mxu0
  %v2767 = vadd.f32 0.0, %v2766
  %v2768 = vpop.f32.mrb[0].mxu0
  %2769 = vmatprep.mubr.f32.mxu0 %v2550
  %2770 = vmatmul.mubr.f32.gmra.mrb[0].mxu0 %v2454
  %v2771 = vpop.f32.mrb[0].mxu0
  %v2772 = vadd.f32 0.0, %v2771
  %v2773 = vpop.f32.mrb[0].mxu0
  %2774 = vmatprep.mubr.f32.mxu0 %v2553
  %2775 = vmatmul.mubr.f32.gmra.mrb[0].mxu0 %v2456
  %v2776 = vpop.f32.mrb[0].mxu0
  %v2777 = vadd.f32 0.0, %v2776
  %v2778 = vpop.f32.mrb[0].mxu0
  %2779 = vdwg.mxu0
  %2784 = vrot.lane.b32.xlu0 %v2622, 1
  %v2785 = vpop.permute.xlu0 %2784
  %2786 = vrot.lane.b32.xlu0 %v2627, 1
  %v2787 = vpop.permute.xlu0 %2786
  %2788 = vrot.lane.b32.xlu0 %v2632, 1
  %v2789 = vpop.permute.xlu0 %2788
  %2790 = vrot.lane.b32.xlu0 %v2637, 1
  %v2791 = vpop.permute.xlu0 %2790
  %v2796 = vsel %vm150, 0.0, %v2785
  %v2797 = vsel %vm150, 0.0, %v2787
  %v2798 = vsel %vm150, 0.0, %v2789
  %v2799 = vsel %vm150, 0.0, %v2791
  %2800 = vrot.lane.b32.xlu0 %v2622, 127
  %v2801 = vpop.permute.xlu0 %2800
  %2802 = vrot.lane.b32.xlu0 %v2627, 127
  %v2803 = vpop.permute.xlu0 %2802
  %2804 = vrot.lane.b32.xlu0 %v2632, 127
  %v2805 = vpop.permute.xlu0 %2804
  %2806 = vrot.lane.b32.xlu0 %v2637, 127
  %v2807 = vpop.permute.xlu0 %2806
  %vm2812 = vcmask 842752
  %v2813 = vsel %vm2812, %v2801, 0.0
  %v2814 = vsel %vm2812, %v2803, 0.0
  %v2815 = vsel %vm2812, %v2805, 0.0
  %v2816 = vsel %vm2812, %v2807, 0.0
  %2818 = vset.pattern.permute.xlu0 0
  %2819 = vperm.xlu0 %2818, %v66
  %v2820 = vpop.permute.xlu0 %2819
  %2823 = vset.pattern.permute.xlu0 0
  %2824 = vperm.xlu0 %2823, %v67
  %v2825 = vpop.permute.xlu0 %2824
  %2828 = vset.pattern.permute.xlu0 0
  %2829 = vperm.xlu0 %2828, %v68
  %v2830 = vpop.permute.xlu0 %2829
  %2833 = vset.pattern.permute.xlu0 0
  %2834 = vperm.xlu0 %2833, %v69
  %v2835 = vpop.permute.xlu0 %2834
  %2838 = vset.pattern.permute.xlu0 0
  %2839 = vperm.xlu0 %2838, %v70
  %v2840 = vpop.permute.xlu0 %2839
  %2843 = vset.pattern.permute.xlu0 0
  %2844 = vperm.xlu0 %2843, %v71
  %v2845 = vpop.permute.xlu0 %2844
  %2848 = vset.pattern.permute.xlu0 0
  %2849 = vperm.xlu0 %2848, %v72
  %v2850 = vpop.permute.xlu0 %2849
  %2853 = vset.pattern.permute.xlu0 0
  %2854 = vperm.xlu0 %2853, %v73
  %v2855 = vpop.permute.xlu0 %2854
  %vm2857 = vcmask 785408
  %v2859 = vsel %vm2857, %v58, 0
  %v2862 = vsel %vm2857, %v59, 0
  %v2865 = vsel %vm2857, %v60, 0
  %v2868 = vsel %vm2857, %v61, 0
  %v2871 = vsel %vm2857, %v62, 0
  %v2874 = vsel %vm2857, %v63, 0
  %v2877 = vsel %vm2857, %v64, 0
  %v2880 = vsel %vm2857, %v65, 0
  %2882 = vmatprep.subr.mxu0 0.0
  %2883 = vmatpush1.msra.mxu0 %v2796
  %2884 = vmatprep.subr.mxu0 0.0
  %2885 = vmatpush1.msra.mxu0 %v2797
  %2886 = vmatprep.subr.mxu0 0.0
  %2887 = vmatpush1.msra.mxu0 %v2798
  %2888 = vmatprep.subr.mxu0 0.0
  %2889 = vmatpush1.msra.mxu0 %v2799
  %2890 = vmatprep.subr.mxu0 0.0
  %2891 = vmatpush1.msra.mxu0 %v2622
  %2892 = vmatprep.subr.mxu0 0.0
  %2893 = vmatpush1.msra.mxu0 %v2627
  %2894 = vmatprep.subr.mxu0 0.0
  %2895 = vmatpush1.msra.mxu0 %v2632
  %2896 = vmatprep.subr.mxu0 0.0
  %2897 = vmatpush1.msra.mxu0 %v2637
  %2898 = vmatprep.subr.mxu0 0.0
  %2899 = vmatpush1.msra.mxu0 %v2813
  %2900 = vmatprep.subr.mxu0 0.0
  %2901 = vmatpush1.msra.mxu0 %v2814
  %2902 = vmatprep.subr.mxu0 0.0
  %2903 = vmatpush1.msra.mxu0 %v2815
  %2904 = vmatprep.subr.mxu0 0.0
  %2905 = vmatpush1.msra.mxu0 %v2816
  %2906 = vmatprep.subr.mxu0 0.0
  %2907 = vmatpush1.msra.mxu0 0.0
  %2908 = vmatprep.subr.mxu0 0.0
  %2909 = vmatpush1.msra.mxu0 0.0
  %2910 = vmatprep.subr.mxu0 0.0
  %2911 = vmatpush1.msra.mxu0 0.0
  %2912 = vmatprep.subr.mxu0 0.0
  %2913 = vmatpush1.msra.mxu0 0.0
  %2914 = vmatprep.subr.mxu0 0.0
  %2915 = vmatpush1.msra.mxu0 0.0
  %2916 = vmatprep.subr.mxu0 0.0
  %2917 = vmatpush1.msra.mxu0 0.0
  %2918 = vmatprep.subr.mxu0 0.0
  %2919 = vmatpush1.msra.mxu0 0.0
  %2920 = vmatprep.subr.mxu0 0.0
  %2921 = vmatpush1.msra.mxu0 0.0
  %2922 = vmatprep.subr.mxu0 0.0
  %2923 = vmatpush1.msra.mxu0 0.0
  %2924 = vmatprep.subr.mxu0 0.0
  %2925 = vmatpush1.msra.mxu0 0.0
  %2926 = vmatprep.subr.mxu0 0.0
  %2927 = vmatpush1.msra.mxu0 0.0
  %2928 = vmatprep.subr.mxu0 0.0
  %2929 = vmatpush1.msra.mxu0 0.0
  %2930 = vmatprep.subr.mxu0 0.0
  %2931 = vmatpush1.msra.mxu0 0.0
  %2932 = vmatprep.subr.mxu0 0.0
  %2933 = vmatpush1.msra.mxu0 0.0
  %2934 = vmatprep.subr.mxu0 0.0
  %2935 = vmatpush1.msra.mxu0 0.0
  %2936 = vmatprep.subr.mxu0 0.0
  %2937 = vmatpush1.msra.mxu0 0.0
  %2938 = vmatprep.subr.mxu0 0.0
  %2939 = vmatpush1.msra.mxu0 0.0
  %2940 = vmatprep.subr.mxu0 0.0
  %2941 = vmatpush1.msra.mxu0 0.0
  %2942 = vmatprep.subr.mxu0 0.0
  %2943 = vmatpush1.msra.mxu0 0.0
  %2944 = vmatprep.subr.mxu0 0.0
  %2945 = vmatpush1.msra.mxu0 0.0
  %2946 = vmatprep.mubr.f32.mxu0 0.0
  %2947 = vmatmul.mubr.f32.gmra.mrb[0].mxu0 %v2859
  %v2948 = vpop.f32.mrb[0].mxu0
  %v2949 = vadd.f32 %v2820, %v2948
  %v2950 = vpop.f32.mrb[0].mxu0
  %2951 = vmatprep.mubr.f32.mxu0 0.0
  %2952 = vmatmul.mubr.f32.gmra.mrb[0].mxu0 %v2862
  %v2953 = vpop.f32.mrb[0].mxu0
  %v2954 = vadd.f32 %v2825, %v2953
  %v2955 = vpop.f32.mrb[0].mxu0
  %2956 = vmatprep.mubr.f32.mxu0 0.0
  %2957 = vmatmul.mubr.f32.gmra.mrb[0].mxu0 %v2865
  %v2958 = vpop.f32.mrb[0].mxu0
  %v2959 = vadd.f32 %v2830, %v2958
  %v2960 = vpop.f32.mrb[0].mxu0
  %2961 = vmatprep.mubr.f32.mxu0 0.0
  %2962 = vmatmul.mubr.f32.gmra.mrb[0].mxu0 %v2868
  %v2963 = vpop.f32.mrb[0].mxu0
  %v2964 = vadd.f32 %v2835, %v2963
  %v2965 = vpop.f32.mrb[0].mxu0
  %2966 = vmatprep.mubr.f32.mxu0 0.0
  %2967 = vmatmul.mubr.f32.gmra.mrb[0].mxu0 %v2871
  %v2968 = vpop.f32.mrb[0].mxu0
  %v2969 = vadd.f32 %v2840, %v2968
  %v2970 = vpop.f32.mrb[0].mxu0
  %2971 = vmatprep.mubr.f32.mxu0 0.0
  %2972 = vmatmul.mubr.f32.gmra.mrb[0].mxu0 %v2874
  %v2973 = vpop.f32.mrb[0].mxu0
  %v2974 = vadd.f32 %v2845, %v2973
  %v2975 = vpop.f32.mrb[0].mxu0
  %2976 = vmatprep.mubr.f32.mxu0 0.0
  %2977 = vmatmul.mubr.f32.gmra.mrb[0].mxu0 %v2877
  %v2978 = vpop.f32.mrb[0].mxu0
  %v2979 = vadd.f32 %v2850, %v2978
  %v2980 = vpop.f32.mrb[0].mxu0
  %2981 = vmatprep.mubr.f32.mxu0 0.0
  %2982 = vmatmul.mubr.f32.gmra.mrb[0].mxu0 %v2880
  %v2983 = vpop.f32.mrb[0].mxu0
  %v2984 = vadd.f32 %v2855, %v2983
  %v2985 = vpop.f32.mrb[0].mxu0
  %2986 = vdwg.mxu0
  %v2987 = vmax.f32 %v2949, 0.0
  %v2988 = vmax.f32 %v2954, 0.0
  %v2989 = vmax.f32 %v2959, 0.0
  %v2990 = vmax.f32 %v2964, 0.0
  %v2991 = vmax.f32 %v2969, 0.0
  %v2992 = vmax.f32 %v2974, 0.0
  %v2993 = vmax.f32 %v2979, 0.0
  %v2994 = vmax.f32 %v2984, 0.0
  %3003 = vrot.lane.b32.xlu0 %v2987, 1
  %v3004 = vpop.permute.xlu0 %3003
  %3005 = vrot.lane.b32.xlu0 %v2988, 1
  %v3006 = vpop.permute.xlu0 %3005
  %3007 = vrot.lane.b32.xlu0 %v2989, 1
  %v3008 = vpop.permute.xlu0 %3007
  %3009 = vrot.lane.b32.xlu0 %v2990, 1
  %v3010 = vpop.permute.xlu0 %3009
  %3011 = vrot.lane.b32.xlu0 %v2991, 1
  %v3012 = vpop.permute.xlu0 %3011
  %3013 = vrot.lane.b32.xlu0 %v2992, 1
  %v3014 = vpop.permute.xlu0 %3013
  %3015 = vrot.lane.b32.xlu0 %v2993, 1
  %v3016 = vpop.permute.xlu0 %3015
  %3017 = vrot.lane.b32.xlu0 %v2994, 1
  %v3018 = vpop.permute.xlu0 %3017
  %v3027 = vsel %vm150, 0.0, %v3004
  %v3028 = vsel %vm150, 0.0, %v3006
  %v3029 = vsel %vm150, 0.0, %v3008
  %v3030 = vsel %vm150, 0.0, %v3010
  %v3031 = vsel %vm150, 0.0, %v3012
  %v3032 = vsel %vm150, 0.0, %v3014
  %v3033 = vsel %vm150, 0.0, %v3016
  %v3034 = vsel %vm150, 0.0, %v3018
  %3035 = vrot.lane.b32.xlu0 %v2987, 125
  %v3036 = vpop.permute.xlu0 %3035
  %3037 = vrot.lane.b32.xlu0 %v2988, 125
  %v3038 = vpop.permute.xlu0 %3037
  %3039 = vrot.lane.b32.xlu0 %v2989, 125
  %v3040 = vpop.permute.xlu0 %3039
  %3041 = vrot.lane.b32.xlu0 %v2990, 125
  %v3042 = vpop.permute.xlu0 %3041
  %3043 = vrot.lane.b32.xlu0 %v2991, 125
  %v3044 = vpop.permute.xlu0 %3043
  %3045 = vrot.lane.b32.xlu0 %v2992, 125
  %v3046 = vpop.permute.xlu0 %3045
  %3047 = vrot.lane.b32.xlu0 %v2993, 125
  %v3048 = vpop.permute.xlu0 %3047
  %3049 = vrot.lane.b32.xlu0 %v2994, 125
  %v3050 = vpop.permute.xlu0 %3049
  %vm3059 = vcmask 826368
  %v3060 = vsel %vm3059, %v3036, 0.0
  %v3061 = vsel %vm3059, %v3038, 0.0
  %v3062 = vsel %vm3059, %v3040, 0.0
  %v3063 = vsel %vm3059, %v3042, 0.0
  %v3064 = vsel %vm3059, %v3044, 0.0
  %v3065 = vsel %vm3059, %v3046, 0.0
  %v3066 = vsel %vm3059, %v3048, 0.0
  %v3067 = vsel %vm3059, %v3050, 0.0
  %3068 = vrot.lane.b32.xlu0 %v2987, 127
  %v3069 = vpop.permute.xlu0 %3068
  %3070 = vrot.lane.b32.xlu0 %v2988, 127
  %v3071 = vpop.permute.xlu0 %3070
  %3072 = vrot.lane.b32.xlu0 %v2989, 127
  %v3073 = vpop.permute.xlu0 %3072
  %3074 = vrot.lane.b32.xlu0 %v2990, 127
  %v3075 = vpop.permute.xlu0 %3074
  %3076 = vrot.lane.b32.xlu0 %v2991, 127
  %v3077 = vpop.permute.xlu0 %3076
  %3078 = vrot.lane.b32.xlu0 %v2992, 127
  %v3079 = vpop.permute.xlu0 %3078
  %3080 = vrot.lane.b32.xlu0 %v2993, 127
  %v3081 = vpop.permute.xlu0 %3080
  %3082 = vrot.lane.b32.xlu0 %v2994, 127
  %v3083 = vpop.permute.xlu0 %3082
  %3092 = vrot.lane.b32.xlu0 %v2987, 126
  %v3093 = vpop.permute.xlu0 %3092
  %3094 = vrot.lane.b32.xlu0 %v2988, 126
  %v3095 = vpop.permute.xlu0 %3094
  %3096 = vrot.lane.b32.xlu0 %v2989, 126
  %v3097 = vpop.permute.xlu0 %3096
  %3098 = vrot.lane.b32.xlu0 %v2990, 126
  %v3099 = vpop.permute.xlu0 %3098
  %3100 = vrot.lane.b32.xlu0 %v2991, 126
  %v3101 = vpop.permute.xlu0 %3100
  %3102 = vrot.lane.b32.xlu0 %v2992, 126
  %v3103 = vpop.permute.xlu0 %3102
  %3104 = vrot.lane.b32.xlu0 %v2993, 126
  %v3105 = vpop.permute.xlu0 %3104
  %3106 = vrot.lane.b32.xlu0 %v2994, 126
  %v3107 = vpop.permute.xlu0 %3106
  %3120 = vrot.lane.b32.xlu0 %v2642, 1
  %v3121 = vpop.permute.xlu0 %3120
  %3122 = vrot.lane.b32.xlu0 %v2647, 1
  %v3123 = vpop.permute.xlu0 %3122
  %3124 = vrot.lane.b32.xlu0 %v2652, 1
  %v3125 = vpop.permute.xlu0 %3124
  %3126 = vrot.lane.b32.xlu0 %v2657, 1
  %v3127 = vpop.permute.xlu0 %3126
  %v3132 = vsel %vm150, 0.0, %v3121
  %v3133 = vsel %vm150, 0.0, %v3123
  %v3134 = vsel %vm150, 0.0, %v3125
  %v3135 = vsel %vm150, 0.0, %v3127
  %3136 = vrot.lane.b32.xlu0 %v2642, 127
  %v3137 = vpop.permute.xlu0 %3136
  %3138 = vrot.lane.b32.xlu0 %v2647, 127
  %v3139 = vpop.permute.xlu0 %3138
  %3140 = vrot.lane.b32.xlu0 %v2652, 127
  %v3141 = vpop.permute.xlu0 %3140
  %3142 = vrot.lane.b32.xlu0 %v2657, 127
  %v3143 = vpop.permute.xlu0 %3142
  %v3148 = vsel %vm2812, %v3137, 0.0
  %v3149 = vsel %vm2812, %v3139, 0.0
  %v3150 = vsel %vm2812, %v3141, 0.0
  %v3151 = vsel %vm2812, %v3143, 0.0
  %3152 = vmatprep.subr.mxu0 0.0
  %3153 = vmatpush1.msra.mxu0 %v3132
  %3154 = vmatprep.subr.mxu0 0.0
  %3155 = vmatpush1.msra.mxu0 %v3133
  %3156 = vmatprep.subr.mxu0 0.0
  %3157 = vmatpush1.msra.mxu0 %v3134
  %3158 = vmatprep.subr.mxu0 0.0
  %3159 = vmatpush1.msra.mxu0 %v3135
  %3160 = vmatprep.subr.mxu0 0.0
  %3161 = vmatpush1.msra.mxu0 %v2642
  %3162 = vmatprep.subr.mxu0 0.0
  %3163 = vmatpush1.msra.mxu0 %v2647
  %3164 = vmatprep.subr.mxu0 0.0
  %3165 = vmatpush1.msra.mxu0 %v2652
  %3166 = vmatprep.subr.mxu0 0.0
  %3167 = vmatpush1.msra.mxu0 %v2657
  %3168 = vmatprep.subr.mxu0 0.0
  %3169 = vmatpush1.msra.mxu0 %v3148
  %3170 = vmatprep.subr.mxu0 0.0
  %3171 = vmatpush1.msra.mxu0 %v3149
  %3172 = vmatprep.subr.mxu0 0.0
  %3173 = vmatpush1.msra.mxu0 %v3150
  %3174 = vmatprep.subr.mxu0 0.0
  %3175 = vmatpush1.msra.mxu0 %v3151
  %3176 = vmatprep.subr.mxu0 0.0
  %3177 = vmatpush1.msra.mxu0 0.0
  %3178 = vmatprep.subr.mxu0 0.0
  %3179 = vmatpush1.msra.mxu0 0.0
  %3180 = vmatprep.subr.mxu0 0.0
  %3181 = vmatpush1.msra.mxu0 0.0
  %3182 = vmatprep.subr.mxu0 0.0
  %3183 = vmatpush1.msra.mxu0 0.0
  %3184 = vmatprep.subr.mxu0 0.0
  %3185 = vmatpush1.msra.mxu0 0.0
  %3186 = vmatprep.subr.mxu0 0.0
  %3187 = vmatpush1.msra.mxu0 0.0
  %3188 = vmatprep.subr.mxu0 0.0
  %3189 = vmatpush1.msra.mxu0 0.0
  %3190 = vmatprep.subr.mxu0 0.0
  %3191 = vmatpush1.msra.mxu0 0.0
  %3192 = vmatprep.subr.mxu0 0.0
  %3193 = vmatpush1.msra.mxu0 0.0
  %3194 = vmatprep.subr.mxu0 0.0
  %3195 = vmatpush1.msra.mxu0 0.0
  %3196 = vmatprep.subr.mxu0 0.0
  %3197 = vmatpush1.msra.mxu0 0.0
  %3198 = vmatprep.subr.mxu0 0.0
  %3199 = vmatpush1.msra.mxu0 0.0
  %3200 = vmatprep.subr.mxu0 0.0
  %3201 = vmatpush1.msra.mxu0 0.0
  %3202 = vmatprep.subr.mxu0 0.0
  %3203 = vmatpush1.msra.mxu0 0.0
  %3204 = vmatprep.subr.mxu0 0.0
  %3205 = vmatpush1.msra.mxu0 0.0
  %3206 = vmatprep.subr.mxu0 0.0
  %3207 = vmatpush1.msra.mxu0 0.0
  %3208 = vmatprep.subr.mxu0 0.0
  %3209 = vmatpush1.msra.mxu0 0.0
  %3210 = vmatprep.subr.mxu0 0.0
  %3211 = vmatpush1.msra.mxu0 0.0
  %3212 = vmatprep.subr.mxu0 0.0
  %3213 = vmatpush1.msra.mxu0 0.0
  %3214 = vmatprep.subr.mxu0 0.0
  %3215 = vmatpush1.msra.mxu0 0.0
  %3216 = vmatprep.mubr.f32.mxu0 0.0
  %3217 = vmatmul.mubr.f32.gmra.mrb[0].mxu0 %v2859
  %v3218 = vpop.f32.mrb[0].mxu0
  %v3219 = vadd.f32 %v2820, %v3218
  %v3220 = vpop.f32.mrb[0].mxu0
  %3221 = vmatprep.mubr.f32.mxu0 0.0
  %3222 = vmatmul.mubr.f32.gmra.mrb[0].mxu0 %v2862
  %v3223 = vpop.f32.mrb[0].mxu0
  %v3224 = vadd.f32 %v2825, %v3223
  %v3225 = vpop.f32.mrb[0].mxu0
  %3226 = vmatprep.mubr.f32.mxu0 0.0
  %3227 = vmatmul.mubr.f32.gmra.mrb[0].mxu0 %v2865
  %v3228 = vpop.f32.mrb[0].mxu0
  %v3229 = vadd.f32 %v2830, %v3228
  %v3230 = vpop.f32.mrb[0].mxu0
  %3231 = vmatprep.mubr.f32.mxu0 0.0
  %3232 = vmatmul.mubr.f32.gmra.mrb[0].mxu0 %v2868
  %v3233 = vpop.f32.mrb[0].mxu0
  %v3234 = vadd.f32 %v2835, %v3233
  %v3235 = vpop.f32.mrb[0].mxu0
  %3236 = vmatprep.mubr.f32.mxu0 0.0
  %3237 = vmatmul.mubr.f32.gmra.mrb[0].mxu0 %v2871
  %v3238 = vpop.f32.mrb[0].mxu0
  %v3239 = vadd.f32 %v2840, %v3238
  %v3240 = vpop.f32.mrb[0].mxu0
  %3241 = vmatprep.mubr.f32.mxu0 0.0
  %3242 = vmatmul.mubr.f32.gmra.mrb[0].mxu0 %v2874
  %v3243 = vpop.f32.mrb[0].mxu0
  %v3244 = vadd.f32 %v2845, %v3243
  %v3245 = vpop.f32.mrb[0].mxu0
  %3246 = vmatprep.mubr.f32.mxu0 0.0
  %3247 = vmatmul.mubr.f32.gmra.mrb[0].mxu0 %v2877
  %v3248 = vpop.f32.mrb[0].mxu0
  %v3249 = vadd.f32 %v2850, %v3248
  %v3250 = vpop.f32.mrb[0].mxu0
  %3251 = vmatprep.mubr.f32.mxu0 0.0
  %3252 = vmatmul.mubr.f32.gmra.mrb[0].mxu0 %v2880
  %v3253 = vpop.f32.mrb[0].mxu0
  %v3254 = vadd.f32 %v2855, %v3253
  %v3255 = vpop.f32.mrb[0].mxu0
  %3256 = vdwg.mxu0
  %v3257 = vmax.f32 %v3219, 0.0
  %v3258 = vmax.f32 %v3224, 0.0
  %v3259 = vmax.f32 %v3229, 0.0
  %v3260 = vmax.f32 %v3234, 0.0
  %v3261 = vmax.f32 %v3239, 0.0
  %v3262 = vmax.f32 %v3244, 0.0
  %v3263 = vmax.f32 %v3249, 0.0
  %v3264 = vmax.f32 %v3254, 0.0
  %3273 = vrot.lane.b32.xlu0 %v3257, 1
  %v3274 = vpop.permute.xlu0 %3273
  %3275 = vrot.lane.b32.xlu0 %v3258, 1
  %v3276 = vpop.permute.xlu0 %3275
  %3277 = vrot.lane.b32.xlu0 %v3259, 1
  %v3278 = vpop.permute.xlu0 %3277
  %3279 = vrot.lane.b32.xlu0 %v3260, 1
  %v3280 = vpop.permute.xlu0 %3279
  %3281 = vrot.lane.b32.xlu0 %v3261, 1
  %v3282 = vpop.permute.xlu0 %3281
  %3283 = vrot.lane.b32.xlu0 %v3262, 1
  %v3284 = vpop.permute.xlu0 %3283
  %3285 = vrot.lane.b32.xlu0 %v3263, 1
  %v3286 = vpop.permute.xlu0 %3285
  %3287 = vrot.lane.b32.xlu0 %v3264, 1
  %v3288 = vpop.permute.xlu0 %3287
  %v3297 = vsel %vm150, 0.0, %v3274
  %v3298 = vsel %vm150, 0.0, %v3276
  %v3299 = vsel %vm150, 0.0, %v3278
  %v3300 = vsel %vm150, 0.0, %v3280
  %v3301 = vsel %vm150, 0.0, %v3282
  %v3302 = vsel %vm150, 0.0, %v3284
  %v3303 = vsel %vm150, 0.0, %v3286
  %v3304 = vsel %vm150, 0.0, %v3288
  %3305 = vrot.lane.b32.xlu0 %v3257, 125
  %v3306 = vpop.permute.xlu0 %3305
  %3307 = vrot.lane.b32.xlu0 %v3258, 125
  %v3308 = vpop.permute.xlu0 %3307
  %3309 = vrot.lane.b32.xlu0 %v3259, 125
  %v3310 = vpop.permute.xlu0 %3309
  %3311 = vrot.lane.b32.xlu0 %v3260, 125
  %v3312 = vpop.permute.xlu0 %3311
  %3313 = vrot.lane.b32.xlu0 %v3261, 125
  %v3314 = vpop.permute.xlu0 %3313
  %3315 = vrot.lane.b32.xlu0 %v3262, 125
  %v3316 = vpop.permute.xlu0 %3315
  %3317 = vrot.lane.b32.xlu0 %v3263, 125
  %v3318 = vpop.permute.xlu0 %3317
  %3319 = vrot.lane.b32.xlu0 %v3264, 125
  %v3320 = vpop.permute.xlu0 %3319
  %v3329 = vsel %vm3059, %v3306, 0.0
  %v3330 = vsel %vm3059, %v3308, 0.0
  %v3331 = vsel %vm3059, %v3310, 0.0
  %v3332 = vsel %vm3059, %v3312, 0.0
  %v3333 = vsel %vm3059, %v3314, 0.0
  %v3334 = vsel %vm3059, %v3316, 0.0
  %v3335 = vsel %vm3059, %v3318, 0.0
  %v3336 = vsel %vm3059, %v3320, 0.0
  %3337 = vrot.lane.b32.xlu0 %v3257, 127
  %v3338 = vpop.permute.xlu0 %3337
  %3339 = vrot.lane.b32.xlu0 %v3258, 127
  %v3340 = vpop.permute.xlu0 %3339
  %3341 = vrot.lane.b32.xlu0 %v3259, 127
  %v3342 = vpop.permute.xlu0 %3341
  %3343 = vrot.lane.b32.xlu0 %v3260, 127
  %v3344 = vpop.permute.xlu0 %3343
  %3345 = vrot.lane.b32.xlu0 %v3261, 127
  %v3346 = vpop.permute.xlu0 %3345
  %3347 = vrot.lane.b32.xlu0 %v3262, 127
  %v3348 = vpop.permute.xlu0 %3347
  %3349 = vrot.lane.b32.xlu0 %v3263, 127
  %v3350 = vpop.permute.xlu0 %3349
  %3351 = vrot.lane.b32.xlu0 %v3264, 127
  %v3352 = vpop.permute.xlu0 %3351
  %3361 = vrot.lane.b32.xlu0 %v3257, 126
  %v3362 = vpop.permute.xlu0 %3361
  %3363 = vrot.lane.b32.xlu0 %v3258, 126
  %v3364 = vpop.permute.xlu0 %3363
  %3365 = vrot.lane.b32.xlu0 %v3259, 126
  %v3366 = vpop.permute.xlu0 %3365
  %3367 = vrot.lane.b32.xlu0 %v3260, 126
  %v3368 = vpop.permute.xlu0 %3367
  %3369 = vrot.lane.b32.xlu0 %v3261, 126
  %v3370 = vpop.permute.xlu0 %3369
  %3371 = vrot.lane.b32.xlu0 %v3262, 126
  %v3372 = vpop.permute.xlu0 %3371
  %3373 = vrot.lane.b32.xlu0 %v3263, 126
  %v3374 = vpop.permute.xlu0 %3373
  %3375 = vrot.lane.b32.xlu0 %v3264, 126
  %v3376 = vpop.permute.xlu0 %3375
  %3389 = vrot.lane.b32.xlu0 %v2662, 1
  %v3390 = vpop.permute.xlu0 %3389
  %3391 = vrot.lane.b32.xlu0 %v2667, 1
  %v3392 = vpop.permute.xlu0 %3391
  %3393 = vrot.lane.b32.xlu0 %v2672, 1
  %v3394 = vpop.permute.xlu0 %3393
  %3395 = vrot.lane.b32.xlu0 %v2677, 1
  %v3396 = vpop.permute.xlu0 %3395
  %v3401 = vsel %vm150, 0.0, %v3390
  %v3402 = vsel %vm150, 0.0, %v3392
  %v3403 = vsel %vm150, 0.0, %v3394
  %v3404 = vsel %vm150, 0.0, %v3396
  %3405 = vrot.lane.b32.xlu0 %v2662, 127
  %v3406 = vpop.permute.xlu0 %3405
  %3407 = vrot.lane.b32.xlu0 %v2667, 127
  %v3408 = vpop.permute.xlu0 %3407
  %3409 = vrot.lane.b32.xlu0 %v2672, 127
  %v3410 = vpop.permute.xlu0 %3409
  %3411 = vrot.lane.b32.xlu0 %v2677, 127
  %v3412 = vpop.permute.xlu0 %3411
  %v3417 = vsel %vm2812, %v3406, 0.0
  %v3418 = vsel %vm2812, %v3408, 0.0
  %v3419 = vsel %vm2812, %v3410, 0.0
  %v3420 = vsel %vm2812, %v3412, 0.0
  %3421 = vmatprep.subr.mxu0 0.0
  %3422 = vmatpush1.msra.mxu0 %v3401
  %3423 = vmatprep.subr.mxu0 0.0
  %3424 = vmatpush1.msra.mxu0 %v3402
  %3425 = vmatprep.subr.mxu0 0.0
  %3426 = vmatpush1.msra.mxu0 %v3403
  %3427 = vmatprep.subr.mxu0 0.0
  %3428 = vmatpush1.msra.mxu0 %v3404
  %3429 = vmatprep.subr.mxu0 0.0
  %3430 = vmatpush1.msra.mxu0 %v2662
  %3431 = vmatprep.subr.mxu0 0.0
  %3432 = vmatpush1.msra.mxu0 %v2667
  %3433 = vmatprep.subr.mxu0 0.0
  %3434 = vmatpush1.msra.mxu0 %v2672
  %3435 = vmatprep.subr.mxu0 0.0
  %3436 = vmatpush1.msra.mxu0 %v2677
  %3437 = vmatprep.subr.mxu0 0.0
  %3438 = vmatpush1.msra.mxu0 %v3417
  %3439 = vmatprep.subr.mxu0 0.0
  %3440 = vmatpush1.msra.mxu0 %v3418
  %3441 = vmatprep.subr.mxu0 0.0
  %3442 = vmatpush1.msra.mxu0 %v3419
  %3443 = vmatprep.subr.mxu0 0.0
  %3444 = vmatpush1.msra.mxu0 %v3420
  %3445 = vmatprep.subr.mxu0 0.0
  %3446 = vmatpush1.msra.mxu0 0.0
  %3447 = vmatprep.subr.mxu0 0.0
  %3448 = vmatpush1.msra.mxu0 0.0
  %3449 = vmatprep.subr.mxu0 0.0
  %3450 = vmatpush1.msra.mxu0 0.0
  %3451 = vmatprep.subr.mxu0 0.0
  %3452 = vmatpush1.msra.mxu0 0.0
  %3453 = vmatprep.subr.mxu0 0.0
  %3454 = vmatpush1.msra.mxu0 0.0
  %3455 = vmatprep.subr.mxu0 0.0
  %3456 = vmatpush1.msra.mxu0 0.0
  %3457 = vmatprep.subr.mxu0 0.0
  %3458 = vmatpush1.msra.mxu0 0.0
  %3459 = vmatprep.subr.mxu0 0.0
  %3460 = vmatpush1.msra.mxu0 0.0
  %3461 = vmatprep.subr.mxu0 0.0
  %3462 = vmatpush1.msra.mxu0 0.0
  %3463 = vmatprep.subr.mxu0 0.0
  %3464 = vmatpush1.msra.mxu0 0.0
  %3465 = vmatprep.subr.mxu0 0.0
  %3466 = vmatpush1.msra.mxu0 0.0
  %3467 = vmatprep.subr.mxu0 0.0
  %3468 = vmatpush1.msra.mxu0 0.0
  %3469 = vmatprep.subr.mxu0 0.0
  %3470 = vmatpush1.msra.mxu0 0.0
  %3471 = vmatprep.subr.mxu0 0.0
  %3472 = vmatpush1.msra.mxu0 0.0
  %3473 = vmatprep.subr.mxu0 0.0
  %3474 = vmatpush1.msra.mxu0 0.0
  %3475 = vmatprep.subr.mxu0 0.0
  %3476 = vmatpush1.msra.mxu0 0.0
  %3477 = vmatprep.subr.mxu0 0.0
  %3478 = vmatpush1.msra.mxu0 0.0
  %3479 = vmatprep.subr.mxu0 0.0
  %3480 = vmatpush1.msra.mxu0 0.0
  %3481 = vmatprep.subr.mxu0 0.0
  %3482 = vmatpush1.msra.mxu0 0.0
  %3483 = vmatprep.subr.mxu0 0.0
  %3484 = vmatpush1.msra.mxu0 0.0
  %3485 = vmatprep.mubr.f32.mxu0 0.0
  %3486 = vmatmul.mubr.f32.gmra.mrb[0].mxu0 %v2859
  %v3487 = vpop.f32.mrb[0].mxu0
  %v3488 = vadd.f32 %v2820, %v3487
  %v3489 = vpop.f32.mrb[0].mxu0
  %3490 = vmatprep.mubr.f32.mxu0 0.0
  %3491 = vmatmul.mubr.f32.gmra.mrb[0].mxu0 %v2862
  %v3492 = vpop.f32.mrb[0].mxu0
  %v3493 = vadd.f32 %v2825, %v3492
  %v3494 = vpop.f32.mrb[0].mxu0
  %3495 = vmatprep.mubr.f32.mxu0 0.0
  %3496 = vmatmul.mubr.f32.gmra.mrb[0].mxu0 %v2865
  %v3497 = vpop.f32.mrb[0].mxu0
  %v3498 = vadd.f32 %v2830, %v3497
  %v3499 = vpop.f32.mrb[0].mxu0
  %3500 = vmatprep.mubr.f32.mxu0 0.0
  %3501 = vmatmul.mubr.f32.gmra.mrb[0].mxu0 %v2868
  %v3502 = vpop.f32.mrb[0].mxu0
  %v3503 = vadd.f32 %v2835, %v3502
  %v3504 = vpop.f32.mrb[0].mxu0
  %3505 = vmatprep.mubr.f32.mxu0 0.0
  %3506 = vmatmul.mubr.f32.gmra.mrb[0].mxu0 %v2871
  %v3507 = vpop.f32.mrb[0].mxu0
  %v3508 = vadd.f32 %v2840, %v3507
  %v3509 = vpop.f32.mrb[0].mxu0
  %3510 = vmatprep.mubr.f32.mxu0 0.0
  %3511 = vmatmul.mubr.f32.gmra.mrb[0].mxu0 %v2874
  %v3512 = vpop.f32.mrb[0].mxu0
  %v3513 = vadd.f32 %v2845, %v3512
  %v3514 = vpop.f32.mrb[0].mxu0
  %3515 = vmatprep.mubr.f32.mxu0 0.0
  %3516 = vmatmul.mubr.f32.gmra.mrb[0].mxu0 %v2877
  %v3517 = vpop.f32.mrb[0].mxu0
  %v3518 = vadd.f32 %v2850, %v3517
  %v3519 = vpop.f32.mrb[0].mxu0
  %3520 = vmatprep.mubr.f32.mxu0 0.0
  %3521 = vmatmul.mubr.f32.gmra.mrb[0].mxu0 %v2880
  %v3522 = vpop.f32.mrb[0].mxu0
  %v3523 = vadd.f32 %v2855, %v3522
  %v3524 = vpop.f32.mrb[0].mxu0
  %3525 = vdwg.mxu0
  %v3526 = vmax.f32 %v3488, 0.0
  %v3527 = vmax.f32 %v3493, 0.0
  %v3528 = vmax.f32 %v3498, 0.0
  %v3529 = vmax.f32 %v3503, 0.0
  %v3530 = vmax.f32 %v3508, 0.0
  %v3531 = vmax.f32 %v3513, 0.0
  %v3532 = vmax.f32 %v3518, 0.0
  %v3533 = vmax.f32 %v3523, 0.0
  %3542 = vrot.lane.b32.xlu0 %v3526, 1
  %v3543 = vpop.permute.xlu0 %3542
  %3544 = vrot.lane.b32.xlu0 %v3527, 1
  %v3545 = vpop.permute.xlu0 %3544
  %3546 = vrot.lane.b32.xlu0 %v3528, 1
  %v3547 = vpop.permute.xlu0 %3546
  %3548 = vrot.lane.b32.xlu0 %v3529, 1
  %v3549 = vpop.permute.xlu0 %3548
  %3550 = vrot.lane.b32.xlu0 %v3530, 1
  %v3551 = vpop.permute.xlu0 %3550
  %3552 = vrot.lane.b32.xlu0 %v3531, 1
  %v3553 = vpop.permute.xlu0 %3552
  %3554 = vrot.lane.b32.xlu0 %v3532, 1
  %v3555 = vpop.permute.xlu0 %3554
  %3556 = vrot.lane.b32.xlu0 %v3533, 1
  %v3557 = vpop.permute.xlu0 %3556
  %v3566 = vsel %vm150, 0.0, %v3543
  %v3567 = vsel %vm150, 0.0, %v3545
  %v3568 = vsel %vm150, 0.0, %v3547
  %v3569 = vsel %vm150, 0.0, %v3549
  %v3570 = vsel %vm150, 0.0, %v3551
  %v3571 = vsel %vm150, 0.0, %v3553
  %v3572 = vsel %vm150, 0.0, %v3555
  %v3573 = vsel %vm150, 0.0, %v3557
  %3574 = vrot.lane.b32.xlu0 %v3526, 125
  %v3575 = vpop.permute.xlu0 %3574
  %3576 = vrot.lane.b32.xlu0 %v3527, 125
  %v3577 = vpop.permute.xlu0 %3576
  %3578 = vrot.lane.b32.xlu0 %v3528, 125
  %v3579 = vpop.permute.xlu0 %3578
  %3580 = vrot.lane.b32.xlu0 %v3529, 125
  %v3581 = vpop.permute.xlu0 %3580
  %3582 = vrot.lane.b32.xlu0 %v3530, 125
  %v3583 = vpop.permute.xlu0 %3582
  %3584 = vrot.lane.b32.xlu0 %v3531, 125
  %v3585 = vpop.permute.xlu0 %3584
  %3586 = vrot.lane.b32.xlu0 %v3532, 125
  %v3587 = vpop.permute.xlu0 %3586
  %3588 = vrot.lane.b32.xlu0 %v3533, 125
  %v3589 = vpop.permute.xlu0 %3588
  %v3598 = vsel %vm3059, %v3575, 0.0
  %v3599 = vsel %vm3059, %v3577, 0.0
  %v3600 = vsel %vm3059, %v3579, 0.0
  %v3601 = vsel %vm3059, %v3581, 0.0
  %v3602 = vsel %vm3059, %v3583, 0.0
  %v3603 = vsel %vm3059, %v3585, 0.0
  %v3604 = vsel %vm3059, %v3587, 0.0
  %v3605 = vsel %vm3059, %v3589, 0.0
  %3606 = vrot.lane.b32.xlu0 %v3526, 127
  %v3607 = vpop.permute.xlu0 %3606
  %3608 = vrot.lane.b32.xlu0 %v3527, 127
  %v3609 = vpop.permute.xlu0 %3608
  %3610 = vrot.lane.b32.xlu0 %v3528, 127
  %v3611 = vpop.permute.xlu0 %3610
  %3612 = vrot.lane.b32.xlu0 %v3529, 127
  %v3613 = vpop.permute.xlu0 %3612
  %3614 = vrot.lane.b32.xlu0 %v3530, 127
  %v3615 = vpop.permute.xlu0 %3614
  %3616 = vrot.lane.b32.xlu0 %v3531, 127
  %v3617 = vpop.permute.xlu0 %3616
  %3618 = vrot.lane.b32.xlu0 %v3532, 127
  %v3619 = vpop.permute.xlu0 %3618
  %3620 = vrot.lane.b32.xlu0 %v3533, 127
  %v3621 = vpop.permute.xlu0 %3620
  %3630 = vrot.lane.b32.xlu0 %v3526, 126
  %v3631 = vpop.permute.xlu0 %3630
  %3632 = vrot.lane.b32.xlu0 %v3527, 126
  %v3633 = vpop.permute.xlu0 %3632
  %3634 = vrot.lane.b32.xlu0 %v3528, 126
  %v3635 = vpop.permute.xlu0 %3634
  %3636 = vrot.lane.b32.xlu0 %v3529, 126
  %v3637 = vpop.permute.xlu0 %3636
  %3638 = vrot.lane.b32.xlu0 %v3530, 126
  %v3639 = vpop.permute.xlu0 %3638
  %3640 = vrot.lane.b32.xlu0 %v3531, 126
  %v3641 = vpop.permute.xlu0 %3640
  %3642 = vrot.lane.b32.xlu0 %v3532, 126
  %v3643 = vpop.permute.xlu0 %3642
  %3644 = vrot.lane.b32.xlu0 %v3533, 126
  %v3645 = vpop.permute.xlu0 %3644
  %3658 = vrot.lane.b32.xlu0 %v2682, 1
  %v3659 = vpop.permute.xlu0 %3658
  %3660 = vrot.lane.b32.xlu0 %v2687, 1
  %v3661 = vpop.permute.xlu0 %3660
  %3662 = vrot.lane.b32.xlu0 %v2692, 1
  %v3663 = vpop.permute.xlu0 %3662
  %3664 = vrot.lane.b32.xlu0 %v2697, 1
  %v3665 = vpop.permute.xlu0 %3664
  %v3670 = vsel %vm150, 0.0, %v3659
  %v3671 = vsel %vm150, 0.0, %v3661
  %v3672 = vsel %vm150, 0.0, %v3663
  %v3673 = vsel %vm150, 0.0, %v3665
  %3674 = vrot.lane.b32.xlu0 %v2682, 127
  %v3675 = vpop.permute.xlu0 %3674
  %3676 = vrot.lane.b32.xlu0 %v2687, 127
  %v3677 = vpop.permute.xlu0 %3676
  %3678 = vrot.lane.b32.xlu0 %v2692, 127
  %v3679 = vpop.permute.xlu0 %3678
  %3680 = vrot.lane.b32.xlu0 %v2697, 127
  %v3681 = vpop.permute.xlu0 %3680
  %v3686 = vsel %vm2812, %v3675, 0.0
  %v3687 = vsel %vm2812, %v3677, 0.0
  %v3688 = vsel %vm2812, %v3679, 0.0
  %v3689 = vsel %vm2812, %v3681, 0.0
  %3690 = vmatprep.subr.mxu0 0.0
  %3691 = vmatpush1.msra.mxu0 %v3670
  %3692 = vmatprep.subr.mxu0 0.0
  %3693 = vmatpush1.msra.mxu0 %v3671
  %3694 = vmatprep.subr.mxu0 0.0
  %3695 = vmatpush1.msra.mxu0 %v3672
  %3696 = vmatprep.subr.mxu0 0.0
  %3697 = vmatpush1.msra.mxu0 %v3673
  %3698 = vmatprep.subr.mxu0 0.0
  %3699 = vmatpush1.msra.mxu0 %v2682
  %3700 = vmatprep.subr.mxu0 0.0
  %3701 = vmatpush1.msra.mxu0 %v2687
  %3702 = vmatprep.subr.mxu0 0.0
  %3703 = vmatpush1.msra.mxu0 %v2692
  %3704 = vmatprep.subr.mxu0 0.0
  %3705 = vmatpush1.msra.mxu0 %v2697
  %3706 = vmatprep.subr.mxu0 0.0
  %3707 = vmatpush1.msra.mxu0 %v3686
  %3708 = vmatprep.subr.mxu0 0.0
  %3709 = vmatpush1.msra.mxu0 %v3687
  %3710 = vmatprep.subr.mxu0 0.0
  %3711 = vmatpush1.msra.mxu0 %v3688
  %3712 = vmatprep.subr.mxu0 0.0
  %3713 = vmatpush1.msra.mxu0 %v3689
  %3714 = vmatprep.subr.mxu0 0.0
  %3715 = vmatpush1.msra.mxu0 0.0
  %3716 = vmatprep.subr.mxu0 0.0
  %3717 = vmatpush1.msra.mxu0 0.0
  %3718 = vmatprep.subr.mxu0 0.0
  %3719 = vmatpush1.msra.mxu0 0.0
  %3720 = vmatprep.subr.mxu0 0.0
  %3721 = vmatpush1.msra.mxu0 0.0
  %3722 = vmatprep.subr.mxu0 0.0
  %3723 = vmatpush1.msra.mxu0 0.0
  %3724 = vmatprep.subr.mxu0 0.0
  %3725 = vmatpush1.msra.mxu0 0.0
  %3726 = vmatprep.subr.mxu0 0.0
  %3727 = vmatpush1.msra.mxu0 0.0
  %3728 = vmatprep.subr.mxu0 0.0
  %3729 = vmatpush1.msra.mxu0 0.0
  %3730 = vmatprep.subr.mxu0 0.0
  %3731 = vmatpush1.msra.mxu0 0.0
  %3732 = vmatprep.subr.mxu0 0.0
  %3733 = vmatpush1.msra.mxu0 0.0
  %3734 = vmatprep.subr.mxu0 0.0
  %3735 = vmatpush1.msra.mxu0 0.0
  %3736 = vmatprep.subr.mxu0 0.0
  %3737 = vmatpush1.msra.mxu0 0.0
  %3738 = vmatprep.subr.mxu0 0.0
  %3739 = vmatpush1.msra.mxu0 0.0
  %3740 = vmatprep.subr.mxu0 0.0
  %3741 = vmatpush1.msra.mxu0 0.0
  %3742 = vmatprep.subr.mxu0 0.0
  %3743 = vmatpush1.msra.mxu0 0.0
  %3744 = vmatprep.subr.mxu0 0.0
  %3745 = vmatpush1.msra.mxu0 0.0
  %3746 = vmatprep.subr.mxu0 0.0
  %3747 = vmatpush1.msra.mxu0 0.0
  %3748 = vmatprep.subr.mxu0 0.0
  %3749 = vmatpush1.msra.mxu0 0.0
  %3750 = vmatprep.subr.mxu0 0.0
  %3751 = vmatpush1.msra.mxu0 0.0
  %3752 = vmatprep.subr.mxu0 0.0
  %3753 = vmatpush1.msra.mxu0 0.0
  %3754 = vmatprep.mubr.f32.mxu0 0.0
  %3755 = vmatmul.mubr.f32.gmra.mrb[0].mxu0 %v2859
  %v3756 = vpop.f32.mrb[0].mxu0
  %v3757 = vadd.f32 %v2820, %v3756
  %v3758 = vpop.f32.mrb[0].mxu0
  %3759 = vmatprep.mubr.f32.mxu0 0.0
  %3760 = vmatmul.mubr.f32.gmra.mrb[0].mxu0 %v2862
  %v3761 = vpop.f32.mrb[0].mxu0
  %v3762 = vadd.f32 %v2825, %v3761
  %v3763 = vpop.f32.mrb[0].mxu0
  %3764 = vmatprep.mubr.f32.mxu0 0.0
  %3765 = vmatmul.mubr.f32.gmra.mrb[0].mxu0 %v2865
  %v3766 = vpop.f32.mrb[0].mxu0
  %v3767 = vadd.f32 %v2830, %v3766
  %v3768 = vpop.f32.mrb[0].mxu0
  %3769 = vmatprep.mubr.f32.mxu0 0.0
  %3770 = vmatmul.mubr.f32.gmra.mrb[0].mxu0 %v2868
  %v3771 = vpop.f32.mrb[0].mxu0
  %v3772 = vadd.f32 %v2835, %v3771
  %v3773 = vpop.f32.mrb[0].mxu0
  %3774 = vmatprep.mubr.f32.mxu0 0.0
  %3775 = vmatmul.mubr.f32.gmra.mrb[0].mxu0 %v2871
  %v3776 = vpop.f32.mrb[0].mxu0
  %v3777 = vadd.f32 %v2840, %v3776
  %v3778 = vpop.f32.mrb[0].mxu0
  %3779 = vmatprep.mubr.f32.mxu0 0.0
  %3780 = vmatmul.mubr.f32.gmra.mrb[0].mxu0 %v2874
  %v3781 = vpop.f32.mrb[0].mxu0
  %v3782 = vadd.f32 %v2845, %v3781
  %v3783 = vpop.f32.mrb[0].mxu0
  %3784 = vmatprep.mubr.f32.mxu0 0.0
  %3785 = vmatmul.mubr.f32.gmra.mrb[0].mxu0 %v2877
  %v3786 = vpop.f32.mrb[0].mxu0
  %v3787 = vadd.f32 %v2850, %v3786
  %v3788 = vpop.f32.mrb[0].mxu0
  %3789 = vmatprep.mubr.f32.mxu0 0.0
  %3790 = vmatmul.mubr.f32.gmra.mrb[0].mxu0 %v2880
  %v3791 = vpop.f32.mrb[0].mxu0
  %v3792 = vadd.f32 %v2855, %v3791
  %v3793 = vpop.f32.mrb[0].mxu0
  %3794 = vdwg.mxu0
  %v3795 = vmax.f32 %v3757, 0.0
  %v3796 = vmax.f32 %v3762, 0.0
  %v3797 = vmax.f32 %v3767, 0.0
  %v3798 = vmax.f32 %v3772, 0.0
  %v3799 = vmax.f32 %v3777, 0.0
  %v3800 = vmax.f32 %v3782, 0.0
  %v3801 = vmax.f32 %v3787, 0.0
  %v3802 = vmax.f32 %v3792, 0.0
  %3811 = vrot.lane.b32.xlu0 %v3795, 1
  %v3812 = vpop.permute.xlu0 %3811
  %3813 = vrot.lane.b32.xlu0 %v3796, 1
  %v3814 = vpop.permute.xlu0 %3813
  %3815 = vrot.lane.b32.xlu0 %v3797, 1
  %v3816 = vpop.permute.xlu0 %3815
  %3817 = vrot.lane.b32.xlu0 %v3798, 1
  %v3818 = vpop.permute.xlu0 %3817
  %3819 = vrot.lane.b32.xlu0 %v3799, 1
  %v3820 = vpop.permute.xlu0 %3819
  %3821 = vrot.lane.b32.xlu0 %v3800, 1
  %v3822 = vpop.permute.xlu0 %3821
  %3823 = vrot.lane.b32.xlu0 %v3801, 1
  %v3824 = vpop.permute.xlu0 %3823
  %3825 = vrot.lane.b32.xlu0 %v3802, 1
  %v3826 = vpop.permute.xlu0 %3825
  %v3835 = vsel %vm150, 0.0, %v3812
  %v3836 = vsel %vm150, 0.0, %v3814
  %v3837 = vsel %vm150, 0.0, %v3816
  %v3838 = vsel %vm150, 0.0, %v3818
  %v3839 = vsel %vm150, 0.0, %v3820
  %v3840 = vsel %vm150, 0.0, %v3822
  %v3841 = vsel %vm150, 0.0, %v3824
  %v3842 = vsel %vm150, 0.0, %v3826
  %3843 = vrot.lane.b32.xlu0 %v3795, 125
  %v3844 = vpop.permute.xlu0 %3843
  %3845 = vrot.lane.b32.xlu0 %v3796, 125
  %v3846 = vpop.permute.xlu0 %3845
  %3847 = vrot.lane.b32.xlu0 %v3797, 125
  %v3848 = vpop.permute.xlu0 %3847
  %3849 = vrot.lane.b32.xlu0 %v3798, 125
  %v3850 = vpop.permute.xlu0 %3849
  %3851 = vrot.lane.b32.xlu0 %v3799, 125
  %v3852 = vpop.permute.xlu0 %3851
  %3853 = vrot.lane.b32.xlu0 %v3800, 125
  %v3854 = vpop.permute.xlu0 %3853
  %3855 = vrot.lane.b32.xlu0 %v3801, 125
  %v3856 = vpop.permute.xlu0 %3855
  %3857 = vrot.lane.b32.xlu0 %v3802, 125
  %v3858 = vpop.permute.xlu0 %3857
  %v3867 = vsel %vm3059, %v3844, 0.0
  %v3868 = vsel %vm3059, %v3846, 0.0
  %v3869 = vsel %vm3059, %v3848, 0.0
  %v3870 = vsel %vm3059, %v3850, 0.0
  %v3871 = vsel %vm3059, %v3852, 0.0
  %v3872 = vsel %vm3059, %v3854, 0.0
  %v3873 = vsel %vm3059, %v3856, 0.0
  %v3874 = vsel %vm3059, %v3858, 0.0
  %3875 = vrot.lane.b32.xlu0 %v3795, 127
  %v3876 = vpop.permute.xlu0 %3875
  %3877 = vrot.lane.b32.xlu0 %v3796, 127
  %v3878 = vpop.permute.xlu0 %3877
  %3879 = vrot.lane.b32.xlu0 %v3797, 127
  %v3880 = vpop.permute.xlu0 %3879
  %3881 = vrot.lane.b32.xlu0 %v3798, 127
  %v3882 = vpop.permute.xlu0 %3881
  %3883 = vrot.lane.b32.xlu0 %v3799, 127
  %v3884 = vpop.permute.xlu0 %3883
  %3885 = vrot.lane.b32.xlu0 %v3800, 127
  %v3886 = vpop.permute.xlu0 %3885
  %3887 = vrot.lane.b32.xlu0 %v3801, 127
  %v3888 = vpop.permute.xlu0 %3887
  %3889 = vrot.lane.b32.xlu0 %v3802, 127
  %v3890 = vpop.permute.xlu0 %3889
  %3899 = vrot.lane.b32.xlu0 %v3795, 126
  %v3900 = vpop.permute.xlu0 %3899
  %3901 = vrot.lane.b32.xlu0 %v3796, 126
  %v3902 = vpop.permute.xlu0 %3901
  %3903 = vrot.lane.b32.xlu0 %v3797, 126
  %v3904 = vpop.permute.xlu0 %3903
  %3905 = vrot.lane.b32.xlu0 %v3798, 126
  %v3906 = vpop.permute.xlu0 %3905
  %3907 = vrot.lane.b32.xlu0 %v3799, 126
  %v3908 = vpop.permute.xlu0 %3907
  %3909 = vrot.lane.b32.xlu0 %v3800, 126
  %v3910 = vpop.permute.xlu0 %3909
  %3911 = vrot.lane.b32.xlu0 %v3801, 126
  %v3912 = vpop.permute.xlu0 %3911
  %3913 = vrot.lane.b32.xlu0 %v3802, 126
  %v3914 = vpop.permute.xlu0 %3913
  %3927 = vrot.lane.b32.xlu0 %v2702, 1
  %v3928 = vpop.permute.xlu0 %3927
  %3929 = vrot.lane.b32.xlu0 %v2707, 1
  %v3930 = vpop.permute.xlu0 %3929
  %3931 = vrot.lane.b32.xlu0 %v2712, 1
  %v3932 = vpop.permute.xlu0 %3931
  %3933 = vrot.lane.b32.xlu0 %v2717, 1
  %v3934 = vpop.permute.xlu0 %3933
  %v3939 = vsel %vm150, 0.0, %v3928
  %v3940 = vsel %vm150, 0.0, %v3930
  %v3941 = vsel %vm150, 0.0, %v3932
  %v3942 = vsel %vm150, 0.0, %v3934
  %3943 = vrot.lane.b32.xlu0 %v2702, 127
  %v3944 = vpop.permute.xlu0 %3943
  %3945 = vrot.lane.b32.xlu0 %v2707, 127
  %v3946 = vpop.permute.xlu0 %3945
  %3947 = vrot.lane.b32.xlu0 %v2712, 127
  %v3948 = vpop.permute.xlu0 %3947
  %3949 = vrot.lane.b32.xlu0 %v2717, 127
  %v3950 = vpop.permute.xlu0 %3949
  %v3955 = vsel %vm2812, %v3944, 0.0
  %v3956 = vsel %vm2812, %v3946, 0.0
  %v3957 = vsel %vm2812, %v3948, 0.0
  %v3958 = vsel %vm2812, %v3950, 0.0
  %3959 = vmatprep.subr.mxu0 0.0
  %3960 = vmatpush1.msra.mxu0 %v3939
  %3961 = vmatprep.subr.mxu0 0.0
  %3962 = vmatpush1.msra.mxu0 %v3940
  %3963 = vmatprep.subr.mxu0 0.0
  %3964 = vmatpush1.msra.mxu0 %v3941
  %3965 = vmatprep.subr.mxu0 0.0
  %3966 = vmatpush1.msra.mxu0 %v3942
  %3967 = vmatprep.subr.mxu0 0.0
  %3968 = vmatpush1.msra.mxu0 %v2702
  %3969 = vmatprep.subr.mxu0 0.0
  %3970 = vmatpush1.msra.mxu0 %v2707
  %3971 = vmatprep.subr.mxu0 0.0
  %3972 = vmatpush1.msra.mxu0 %v2712
  %3973 = vmatprep.subr.mxu0 0.0
  %3974 = vmatpush1.msra.mxu0 %v2717
  %3975 = vmatprep.subr.mxu0 0.0
  %3976 = vmatpush1.msra.mxu0 %v3955
  %3977 = vmatprep.subr.mxu0 0.0
  %3978 = vmatpush1.msra.mxu0 %v3956
  %3979 = vmatprep.subr.mxu0 0.0
  %3980 = vmatpush1.msra.mxu0 %v3957
  %3981 = vmatprep.subr.mxu0 0.0
  %3982 = vmatpush1.msra.mxu0 %v3958
  %3983 = vmatprep.subr.mxu0 0.0
  %3984 = vmatpush1.msra.mxu0 0.0
  %3985 = vmatprep.subr.mxu0 0.0
  %3986 = vmatpush1.msra.mxu0 0.0
  %3987 = vmatprep.subr.mxu0 0.0
  %3988 = vmatpush1.msra.mxu0 0.0
  %3989 = vmatprep.subr.mxu0 0.0
  %3990 = vmatpush1.msra.mxu0 0.0
  %3991 = vmatprep.subr.mxu0 0.0
  %3992 = vmatpush1.msra.mxu0 0.0
  %3993 = vmatprep.subr.mxu0 0.0
  %3994 = vmatpush1.msra.mxu0 0.0
  %3995 = vmatprep.subr.mxu0 0.0
  %3996 = vmatpush1.msra.mxu0 0.0
  %3997 = vmatprep.subr.mxu0 0.0
  %3998 = vmatpush1.msra.mxu0 0.0
  %3999 = vmatprep.subr.mxu0 0.0
  %4000 = vmatpush1.msra.mxu0 0.0
  %4001 = vmatprep.subr.mxu0 0.0
  %4002 = vmatpush1.msra.mxu0 0.0
  %4003 = vmatprep.subr.mxu0 0.0
  %4004 = vmatpush1.msra.mxu0 0.0
  %4005 = vmatprep.subr.mxu0 0.0
  %4006 = vmatpush1.msra.mxu0 0.0
  %4007 = vmatprep.subr.mxu0 0.0
  %4008 = vmatpush1.msra.mxu0 0.0
  %4009 = vmatprep.subr.mxu0 0.0
  %4010 = vmatpush1.msra.mxu0 0.0
  %4011 = vmatprep.subr.mxu0 0.0
  %4012 = vmatpush1.msra.mxu0 0.0
  %4013 = vmatprep.subr.mxu0 0.0
  %4014 = vmatpush1.msra.mxu0 0.0
  %4015 = vmatprep.subr.mxu0 0.0
  %4016 = vmatpush1.msra.mxu0 0.0
  %4017 = vmatprep.subr.mxu0 0.0
  %4018 = vmatpush1.msra.mxu0 0.0
  %4019 = vmatprep.subr.mxu0 0.0
  %4020 = vmatpush1.msra.mxu0 0.0
  %4021 = vmatprep.subr.mxu0 0.0
  %4022 = vmatpush1.msra.mxu0 0.0
  %4023 = vmatprep.mubr.f32.mxu0 0.0
  %4024 = vmatmul.mubr.f32.gmra.mrb[0].mxu0 %v2859
  %v4025 = vpop.f32.mrb[0].mxu0
  %v4026 = vadd.f32 %v2820, %v4025
  %v4027 = vpop.f32.mrb[0].mxu0
  %4028 = vmatprep.mubr.f32.mxu0 0.0
  %4029 = vmatmul.mubr.f32.gmra.mrb[0].mxu0 %v2862
  %v4030 = vpop.f32.mrb[0].mxu0
  %v4031 = vadd.f32 %v2825, %v4030
  %v4032 = vpop.f32.mrb[0].mxu0
  %4033 = vmatprep.mubr.f32.mxu0 0.0
  %4034 = vmatmul.mubr.f32.gmra.mrb[0].mxu0 %v2865
  %v4035 = vpop.f32.mrb[0].mxu0
  %v4036 = vadd.f32 %v2830, %v4035
  %v4037 = vpop.f32.mrb[0].mxu0
  %4038 = vmatprep.mubr.f32.mxu0 0.0
  %4039 = vmatmul.mubr.f32.gmra.mrb[0].mxu0 %v2868
  %v4040 = vpop.f32.mrb[0].mxu0
  %v4041 = vadd.f32 %v2835, %v4040
  %v4042 = vpop.f32.mrb[0].mxu0
  %4043 = vmatprep.mubr.f32.mxu0 0.0
  %4044 = vmatmul.mubr.f32.gmra.mrb[0].mxu0 %v2871
  %v4045 = vpop.f32.mrb[0].mxu0
  %v4046 = vadd.f32 %v2840, %v4045
  %v4047 = vpop.f32.mrb[0].mxu0
  %4048 = vmatprep.mubr.f32.mxu0 0.0
  %4049 = vmatmul.mubr.f32.gmra.mrb[0].mxu0 %v2874
  %v4050 = vpop.f32.mrb[0].mxu0
  %v4051 = vadd.f32 %v2845, %v4050
  %v4052 = vpop.f32.mrb[0].mxu0
  %4053 = vmatprep.mubr.f32.mxu0 0.0
  %4054 = vmatmul.mubr.f32.gmra.mrb[0].mxu0 %v2877
  %v4055 = vpop.f32.mrb[0].mxu0
  %v4056 = vadd.f32 %v2850, %v4055
  %v4057 = vpop.f32.mrb[0].mxu0
  %4058 = vmatprep.mubr.f32.mxu0 0.0
  %4059 = vmatmul.mubr.f32.gmra.mrb[0].mxu0 %v2880
  %v4060 = vpop.f32.mrb[0].mxu0
  %v4061 = vadd.f32 %v2855, %v4060
  %v4062 = vpop.f32.mrb[0].mxu0
  %4063 = vdwg.mxu0
  %v4064 = vmax.f32 %v4026, 0.0
  %v4065 = vmax.f32 %v4031, 0.0
  %v4066 = vmax.f32 %v4036, 0.0
  %v4067 = vmax.f32 %v4041, 0.0
  %v4068 = vmax.f32 %v4046, 0.0
  %v4069 = vmax.f32 %v4051, 0.0
  %v4070 = vmax.f32 %v4056, 0.0
  %v4071 = vmax.f32 %v4061, 0.0
  %4080 = vrot.lane.b32.xlu0 %v4064, 1
  %v4081 = vpop.permute.xlu0 %4080
  %4082 = vrot.lane.b32.xlu0 %v4065, 1
  %v4083 = vpop.permute.xlu0 %4082
  %4084 = vrot.lane.b32.xlu0 %v4066, 1
  %v4085 = vpop.permute.xlu0 %4084
  %4086 = vrot.lane.b32.xlu0 %v4067, 1
  %v4087 = vpop.permute.xlu0 %4086
  %4088 = vrot.lane.b32.xlu0 %v4068, 1
  %v4089 = vpop.permute.xlu0 %4088
  %4090 = vrot.lane.b32.xlu0 %v4069, 1
  %v4091 = vpop.permute.xlu0 %4090
  %4092 = vrot.lane.b32.xlu0 %v4070, 1
  %v4093 = vpop.permute.xlu0 %4092
  %4094 = vrot.lane.b32.xlu0 %v4071, 1
  %v4095 = vpop.permute.xlu0 %4094
  %v4104 = vsel %vm150, 0.0, %v4081
  %v4105 = vsel %vm150, 0.0, %v4083
  %v4106 = vsel %vm150, 0.0, %v4085
  %v4107 = vsel %vm150, 0.0, %v4087
  %v4108 = vsel %vm150, 0.0, %v4089
  %v4109 = vsel %vm150, 0.0, %v4091
  %v4110 = vsel %vm150, 0.0, %v4093
  %v4111 = vsel %vm150, 0.0, %v4095
  %4112 = vrot.lane.b32.xlu0 %v4064, 125
  %v4113 = vpop.permute.xlu0 %4112
  %4114 = vrot.lane.b32.xlu0 %v4065, 125
  %v4115 = vpop.permute.xlu0 %4114
  %4116 = vrot.lane.b32.xlu0 %v4066, 125
  %v4117 = vpop.permute.xlu0 %4116
  %4118 = vrot.lane.b32.xlu0 %v4067, 125
  %v4119 = vpop.permute.xlu0 %4118
  %4120 = vrot.lane.b32.xlu0 %v4068, 125
  %v4121 = vpop.permute.xlu0 %4120
  %4122 = vrot.lane.b32.xlu0 %v4069, 125
  %v4123 = vpop.permute.xlu0 %4122
  %4124 = vrot.lane.b32.xlu0 %v4070, 125
  %v4125 = vpop.permute.xlu0 %4124
  %4126 = vrot.lane.b32.xlu0 %v4071, 125
  %v4127 = vpop.permute.xlu0 %4126
  %v4136 = vsel %vm3059, %v4113, 0.0
  %v4137 = vsel %vm3059, %v4115, 0.0
  %v4138 = vsel %vm3059, %v4117, 0.0
  %v4139 = vsel %vm3059, %v4119, 0.0
  %v4140 = vsel %vm3059, %v4121, 0.0
  %v4141 = vsel %vm3059, %v4123, 0.0
  %v4142 = vsel %vm3059, %v4125, 0.0
  %v4143 = vsel %vm3059, %v4127, 0.0
  %4144 = vrot.lane.b32.xlu0 %v4064, 127
  %v4145 = vpop.permute.xlu0 %4144
  %4146 = vrot.lane.b32.xlu0 %v4065, 127
  %v4147 = vpop.permute.xlu0 %4146
  %4148 = vrot.lane.b32.xlu0 %v4066, 127
  %v4149 = vpop.permute.xlu0 %4148
  %4150 = vrot.lane.b32.xlu0 %v4067, 127
  %v4151 = vpop.permute.xlu0 %4150
  %4152 = vrot.lane.b32.xlu0 %v4068, 127
  %v4153 = vpop.permute.xlu0 %4152
  %4154 = vrot.lane.b32.xlu0 %v4069, 127
  %v4155 = vpop.permute.xlu0 %4154
  %4156 = vrot.lane.b32.xlu0 %v4070, 127
  %v4157 = vpop.permute.xlu0 %4156
  %4158 = vrot.lane.b32.xlu0 %v4071, 127
  %v4159 = vpop.permute.xlu0 %4158
  %4168 = vrot.lane.b32.xlu0 %v4064, 126
  %v4169 = vpop.permute.xlu0 %4168
  %4170 = vrot.lane.b32.xlu0 %v4065, 126
  %v4171 = vpop.permute.xlu0 %4170
  %4172 = vrot.lane.b32.xlu0 %v4066, 126
  %v4173 = vpop.permute.xlu0 %4172
  %4174 = vrot.lane.b32.xlu0 %v4067, 126
  %v4175 = vpop.permute.xlu0 %4174
  %4176 = vrot.lane.b32.xlu0 %v4068, 126
  %v4177 = vpop.permute.xlu0 %4176
  %4178 = vrot.lane.b32.xlu0 %v4069, 126
  %v4179 = vpop.permute.xlu0 %4178
  %4180 = vrot.lane.b32.xlu0 %v4070, 126
  %v4181 = vpop.permute.xlu0 %4180
  %4182 = vrot.lane.b32.xlu0 %v4071, 126
  %v4183 = vpop.permute.xlu0 %4182
  %4196 = vrot.lane.b32.xlu0 %v2722, 1
  %v4197 = vpop.permute.xlu0 %4196
  %4198 = vrot.lane.b32.xlu0 %v2727, 1
  %v4199 = vpop.permute.xlu0 %4198
  %4200 = vrot.lane.b32.xlu0 %v2732, 1
  %v4201 = vpop.permute.xlu0 %4200
  %4202 = vrot.lane.b32.xlu0 %v2737, 1
  %v4203 = vpop.permute.xlu0 %4202
  %v4208 = vsel %vm150, 0.0, %v4197
  %v4209 = vsel %vm150, 0.0, %v4199
  %v4210 = vsel %vm150, 0.0, %v4201
  %v4211 = vsel %vm150, 0.0, %v4203
  %4212 = vrot.lane.b32.xlu0 %v2722, 127
  %v4213 = vpop.permute.xlu0 %4212
  %4214 = vrot.lane.b32.xlu0 %v2727, 127
  %v4215 = vpop.permute.xlu0 %4214
  %4216 = vrot.lane.b32.xlu0 %v2732, 127
  %v4217 = vpop.permute.xlu0 %4216
  %4218 = vrot.lane.b32.xlu0 %v2737, 127
  %v4219 = vpop.permute.xlu0 %4218
  %v4224 = vsel %vm2812, %v4213, 0.0
  %v4225 = vsel %vm2812, %v4215, 0.0
  %v4226 = vsel %vm2812, %v4217, 0.0
  %v4227 = vsel %vm2812, %v4219, 0.0
  %4228 = vmatprep.subr.mxu0 0.0
  %4229 = vmatpush1.msra.mxu0 %v4208
  %4230 = vmatprep.subr.mxu0 0.0
  %4231 = vmatpush1.msra.mxu0 %v4209
  %4232 = vmatprep.subr.mxu0 0.0
  %4233 = vmatpush1.msra.mxu0 %v4210
  %4234 = vmatprep.subr.mxu0 0.0
  %4235 = vmatpush1.msra.mxu0 %v4211
  %4236 = vmatprep.subr.mxu0 0.0
  %4237 = vmatpush1.msra.mxu0 %v2722
  %4238 = vmatprep.subr.mxu0 0.0
  %4239 = vmatpush1.msra.mxu0 %v2727
  %4240 = vmatprep.subr.mxu0 0.0
  %4241 = vmatpush1.msra.mxu0 %v2732
  %4242 = vmatprep.subr.mxu0 0.0
  %4243 = vmatpush1.msra.mxu0 %v2737
  %4244 = vmatprep.subr.mxu0 0.0
  %4245 = vmatpush1.msra.mxu0 %v4224
  %4246 = vmatprep.subr.mxu0 0.0
  %4247 = vmatpush1.msra.mxu0 %v4225
  %4248 = vmatprep.subr.mxu0 0.0
  %4249 = vmatpush1.msra.mxu0 %v4226
  %4250 = vmatprep.subr.mxu0 0.0
  %4251 = vmatpush1.msra.mxu0 %v4227
  %4252 = vmatprep.subr.mxu0 0.0
  %4253 = vmatpush1.msra.mxu0 0.0
  %4254 = vmatprep.subr.mxu0 0.0
  %4255 = vmatpush1.msra.mxu0 0.0
  %4256 = vmatprep.subr.mxu0 0.0
  %4257 = vmatpush1.msra.mxu0 0.0
  %4258 = vmatprep.subr.mxu0 0.0
  %4259 = vmatpush1.msra.mxu0 0.0
  %4260 = vmatprep.subr.mxu0 0.0
  %4261 = vmatpush1.msra.mxu0 0.0
  %4262 = vmatprep.subr.mxu0 0.0
  %4263 = vmatpush1.msra.mxu0 0.0
  %4264 = vmatprep.subr.mxu0 0.0
  %4265 = vmatpush1.msra.mxu0 0.0
  %4266 = vmatprep.subr.mxu0 0.0
  %4267 = vmatpush1.msra.mxu0 0.0
  %4268 = vmatprep.subr.mxu0 0.0
  %4269 = vmatpush1.msra.mxu0 0.0
  %4270 = vmatprep.subr.mxu0 0.0
  %4271 = vmatpush1.msra.mxu0 0.0
  %4272 = vmatprep.subr.mxu0 0.0
  %4273 = vmatpush1.msra.mxu0 0.0
  %4274 = vmatprep.subr.mxu0 0.0
  %4275 = vmatpush1.msra.mxu0 0.0
  %4276 = vmatprep.subr.mxu0 0.0
  %4277 = vmatpush1.msra.mxu0 0.0
  %4278 = vmatprep.subr.mxu0 0.0
  %4279 = vmatpush1.msra.mxu0 0.0
  %4280 = vmatprep.subr.mxu0 0.0
  %4281 = vmatpush1.msra.mxu0 0.0
  %4282 = vmatprep.subr.mxu0 0.0
  %4283 = vmatpush1.msra.mxu0 0.0
  %4284 = vmatprep.subr.mxu0 0.0
  %4285 = vmatpush1.msra.mxu0 0.0
  %4286 = vmatprep.subr.mxu0 0.0
  %4287 = vmatpush1.msra.mxu0 0.0
  %4288 = vmatprep.subr.mxu0 0.0
  %4289 = vmatpush1.msra.mxu0 0.0
  %4290 = vmatprep.subr.mxu0 0.0
  %4291 = vmatpush1.msra.mxu0 0.0
  %4292 = vmatprep.mubr.f32.mxu0 0.0
  %4293 = vmatmul.mubr.f32.gmra.mrb[0].mxu0 %v2859
  %v4294 = vpop.f32.mrb[0].mxu0
  %v4295 = vadd.f32 %v2820, %v4294
  %v4296 = vpop.f32.mrb[0].mxu0
  %4297 = vmatprep.mubr.f32.mxu0 0.0
  %4298 = vmatmul.mubr.f32.gmra.mrb[0].mxu0 %v2862
  %v4299 = vpop.f32.mrb[0].mxu0
  %v4300 = vadd.f32 %v2825, %v4299
  %v4301 = vpop.f32.mrb[0].mxu0
  %4302 = vmatprep.mubr.f32.mxu0 0.0
  %4303 = vmatmul.mubr.f32.gmra.mrb[0].mxu0 %v2865
  %v4304 = vpop.f32.mrb[0].mxu0
  %v4305 = vadd.f32 %v2830, %v4304
  %v4306 = vpop.f32.mrb[0].mxu0
  %4307 = vmatprep.mubr.f32.mxu0 0.0
  %4308 = vmatmul.mubr.f32.gmra.mrb[0].mxu0 %v2868
  %v4309 = vpop.f32.mrb[0].mxu0
  %v4310 = vadd.f32 %v2835, %v4309
  %v4311 = vpop.f32.mrb[0].mxu0
  %4312 = vmatprep.mubr.f32.mxu0 0.0
  %4313 = vmatmul.mubr.f32.gmra.mrb[0].mxu0 %v2871
  %v4314 = vpop.f32.mrb[0].mxu0
  %v4315 = vadd.f32 %v2840, %v4314
  %v4316 = vpop.f32.mrb[0].mxu0
  %4317 = vmatprep.mubr.f32.mxu0 0.0
  %4318 = vmatmul.mubr.f32.gmra.mrb[0].mxu0 %v2874
  %v4319 = vpop.f32.mrb[0].mxu0
  %v4320 = vadd.f32 %v2845, %v4319
  %v4321 = vpop.f32.mrb[0].mxu0
  %4322 = vmatprep.mubr.f32.mxu0 0.0
  %4323 = vmatmul.mubr.f32.gmra.mrb[0].mxu0 %v2877
  %v4324 = vpop.f32.mrb[0].mxu0
  %v4325 = vadd.f32 %v2850, %v4324
  %v4326 = vpop.f32.mrb[0].mxu0
  %4327 = vmatprep.mubr.f32.mxu0 0.0
  %4328 = vmatmul.mubr.f32.gmra.mrb[0].mxu0 %v2880
  %v4329 = vpop.f32.mrb[0].mxu0
  %v4330 = vadd.f32 %v2855, %v4329
  %v4331 = vpop.f32.mrb[0].mxu0
  %4332 = vdwg.mxu0
  %v4333 = vmax.f32 %v4295, 0.0
  %v4334 = vmax.f32 %v4300, 0.0
  %v4335 = vmax.f32 %v4305, 0.0
  %v4336 = vmax.f32 %v4310, 0.0
  %v4337 = vmax.f32 %v4315, 0.0
  %v4338 = vmax.f32 %v4320, 0.0
  %v4339 = vmax.f32 %v4325, 0.0
  %v4340 = vmax.f32 %v4330, 0.0
  %4349 = vrot.lane.b32.xlu0 %v4333, 1
  %v4350 = vpop.permute.xlu0 %4349
  %4351 = vrot.lane.b32.xlu0 %v4334, 1
  %v4352 = vpop.permute.xlu0 %4351
  %4353 = vrot.lane.b32.xlu0 %v4335, 1
  %v4354 = vpop.permute.xlu0 %4353
  %4355 = vrot.lane.b32.xlu0 %v4336, 1
  %v4356 = vpop.permute.xlu0 %4355
  %4357 = vrot.lane.b32.xlu0 %v4337, 1
  %v4358 = vpop.permute.xlu0 %4357
  %4359 = vrot.lane.b32.xlu0 %v4338, 1
  %v4360 = vpop.permute.xlu0 %4359
  %4361 = vrot.lane.b32.xlu0 %v4339, 1
  %v4362 = vpop.permute.xlu0 %4361
  %4363 = vrot.lane.b32.xlu0 %v4340, 1
  %v4364 = vpop.permute.xlu0 %4363
  %v4373 = vsel %vm150, 0.0, %v4350
  %v4374 = vsel %vm150, 0.0, %v4352
  %v4375 = vsel %vm150, 0.0, %v4354
  %v4376 = vsel %vm150, 0.0, %v4356
  %v4377 = vsel %vm150, 0.0, %v4358
  %v4378 = vsel %vm150, 0.0, %v4360
  %v4379 = vsel %vm150, 0.0, %v4362
  %v4380 = vsel %vm150, 0.0, %v4364
  %4381 = vrot.lane.b32.xlu0 %v4333, 125
  %v4382 = vpop.permute.xlu0 %4381
  %4383 = vrot.lane.b32.xlu0 %v4334, 125
  %v4384 = vpop.permute.xlu0 %4383
  %4385 = vrot.lane.b32.xlu0 %v4335, 125
  %v4386 = vpop.permute.xlu0 %4385
  %4387 = vrot.lane.b32.xlu0 %v4336, 125
  %v4388 = vpop.permute.xlu0 %4387
  %4389 = vrot.lane.b32.xlu0 %v4337, 125
  %v4390 = vpop.permute.xlu0 %4389
  %4391 = vrot.lane.b32.xlu0 %v4338, 125
  %v4392 = vpop.permute.xlu0 %4391
  %4393 = vrot.lane.b32.xlu0 %v4339, 125
  %v4394 = vpop.permute.xlu0 %4393
  %4395 = vrot.lane.b32.xlu0 %v4340, 125
  %v4396 = vpop.permute.xlu0 %4395
  %v4405 = vsel %vm3059, %v4382, 0.0
  %v4406 = vsel %vm3059, %v4384, 0.0
  %v4407 = vsel %vm3059, %v4386, 0.0
  %v4408 = vsel %vm3059, %v4388, 0.0
  %v4409 = vsel %vm3059, %v4390, 0.0
  %v4410 = vsel %vm3059, %v4392, 0.0
  %v4411 = vsel %vm3059, %v4394, 0.0
  %v4412 = vsel %vm3059, %v4396, 0.0
  %4413 = vrot.lane.b32.xlu0 %v4333, 127
  %v4414 = vpop.permute.xlu0 %4413
  %4415 = vrot.lane.b32.xlu0 %v4334, 127
  %v4416 = vpop.permute.xlu0 %4415
  %4417 = vrot.lane.b32.xlu0 %v4335, 127
  %v4418 = vpop.permute.xlu0 %4417
  %4419 = vrot.lane.b32.xlu0 %v4336, 127
  %v4420 = vpop.permute.xlu0 %4419
  %4421 = vrot.lane.b32.xlu0 %v4337, 127
  %v4422 = vpop.permute.xlu0 %4421
  %4423 = vrot.lane.b32.xlu0 %v4338, 127
  %v4424 = vpop.permute.xlu0 %4423
  %4425 = vrot.lane.b32.xlu0 %v4339, 127
  %v4426 = vpop.permute.xlu0 %4425
  %4427 = vrot.lane.b32.xlu0 %v4340, 127
  %v4428 = vpop.permute.xlu0 %4427
  %4437 = vrot.lane.b32.xlu0 %v4333, 126
  %v4438 = vpop.permute.xlu0 %4437
  %4439 = vrot.lane.b32.xlu0 %v4334, 126
  %v4440 = vpop.permute.xlu0 %4439
  %4441 = vrot.lane.b32.xlu0 %v4335, 126
  %v4442 = vpop.permute.xlu0 %4441
  %4443 = vrot.lane.b32.xlu0 %v4336, 126
  %v4444 = vpop.permute.xlu0 %4443
  %4445 = vrot.lane.b32.xlu0 %v4337, 126
  %v4446 = vpop.permute.xlu0 %4445
  %4447 = vrot.lane.b32.xlu0 %v4338, 126
  %v4448 = vpop.permute.xlu0 %4447
  %4449 = vrot.lane.b32.xlu0 %v4339, 126
  %v4450 = vpop.permute.xlu0 %4449
  %4451 = vrot.lane.b32.xlu0 %v4340, 126
  %v4452 = vpop.permute.xlu0 %4451
  %4465 = vrot.lane.b32.xlu0 %v2742, 1
  %v4466 = vpop.permute.xlu0 %4465
  %4467 = vrot.lane.b32.xlu0 %v2747, 1
  %v4468 = vpop.permute.xlu0 %4467
  %4469 = vrot.lane.b32.xlu0 %v2752, 1
  %v4470 = vpop.permute.xlu0 %4469
  %4471 = vrot.lane.b32.xlu0 %v2757, 1
  %v4472 = vpop.permute.xlu0 %4471
  %v4477 = vsel %vm150, 0.0, %v4466
  %v4478 = vsel %vm150, 0.0, %v4468
  %v4479 = vsel %vm150, 0.0, %v4470
  %v4480 = vsel %vm150, 0.0, %v4472
  %4481 = vrot.lane.b32.xlu0 %v2742, 127
  %v4482 = vpop.permute.xlu0 %4481
  %4483 = vrot.lane.b32.xlu0 %v2747, 127
  %v4484 = vpop.permute.xlu0 %4483
  %4485 = vrot.lane.b32.xlu0 %v2752, 127
  %v4486 = vpop.permute.xlu0 %4485
  %4487 = vrot.lane.b32.xlu0 %v2757, 127
  %v4488 = vpop.permute.xlu0 %4487
  %v4493 = vsel %vm2812, %v4482, 0.0
  %v4494 = vsel %vm2812, %v4484, 0.0
  %v4495 = vsel %vm2812, %v4486, 0.0
  %v4496 = vsel %vm2812, %v4488, 0.0
  %4497 = vmatprep.subr.mxu0 0.0
  %4498 = vmatpush1.msra.mxu0 %v4477
  %4499 = vmatprep.subr.mxu0 0.0
  %4500 = vmatpush1.msra.mxu0 %v4478
  %4501 = vmatprep.subr.mxu0 0.0
  %4502 = vmatpush1.msra.mxu0 %v4479
  %4503 = vmatprep.subr.mxu0 0.0
  %4504 = vmatpush1.msra.mxu0 %v4480
  %4505 = vmatprep.subr.mxu0 0.0
  %4506 = vmatpush1.msra.mxu0 %v2742
  %4507 = vmatprep.subr.mxu0 0.0
  %4508 = vmatpush1.msra.mxu0 %v2747
  %4509 = vmatprep.subr.mxu0 0.0
  %4510 = vmatpush1.msra.mxu0 %v2752
  %4511 = vmatprep.subr.mxu0 0.0
  %4512 = vmatpush1.msra.mxu0 %v2757
  %4513 = vmatprep.subr.mxu0 0.0
  %4514 = vmatpush1.msra.mxu0 %v4493
  %4515 = vmatprep.subr.mxu0 0.0
  %4516 = vmatpush1.msra.mxu0 %v4494
  %4517 = vmatprep.subr.mxu0 0.0
  %4518 = vmatpush1.msra.mxu0 %v4495
  %4519 = vmatprep.subr.mxu0 0.0
  %4520 = vmatpush1.msra.mxu0 %v4496
  %4521 = vmatprep.subr.mxu0 0.0
  %4522 = vmatpush1.msra.mxu0 0.0
  %4523 = vmatprep.subr.mxu0 0.0
  %4524 = vmatpush1.msra.mxu0 0.0
  %4525 = vmatprep.subr.mxu0 0.0
  %4526 = vmatpush1.msra.mxu0 0.0
  %4527 = vmatprep.subr.mxu0 0.0
  %4528 = vmatpush1.msra.mxu0 0.0
  %4529 = vmatprep.subr.mxu0 0.0
  %4530 = vmatpush1.msra.mxu0 0.0
  %4531 = vmatprep.subr.mxu0 0.0
  %4532 = vmatpush1.msra.mxu0 0.0
  %4533 = vmatprep.subr.mxu0 0.0
  %4534 = vmatpush1.msra.mxu0 0.0
  %4535 = vmatprep.subr.mxu0 0.0
  %4536 = vmatpush1.msra.mxu0 0.0
  %4537 = vmatprep.subr.mxu0 0.0
  %4538 = vmatpush1.msra.mxu0 0.0
  %4539 = vmatprep.subr.mxu0 0.0
  %4540 = vmatpush1.msra.mxu0 0.0
  %4541 = vmatprep.subr.mxu0 0.0
  %4542 = vmatpush1.msra.mxu0 0.0
  %4543 = vmatprep.subr.mxu0 0.0
  %4544 = vmatpush1.msra.mxu0 0.0
  %4545 = vmatprep.subr.mxu0 0.0
  %4546 = vmatpush1.msra.mxu0 0.0
  %4547 = vmatprep.subr.mxu0 0.0
  %4548 = vmatpush1.msra.mxu0 0.0
  %4549 = vmatprep.subr.mxu0 0.0
  %4550 = vmatpush1.msra.mxu0 0.0
  %4551 = vmatprep.subr.mxu0 0.0
  %4552 = vmatpush1.msra.mxu0 0.0
  %4553 = vmatprep.subr.mxu0 0.0
  %4554 = vmatpush1.msra.mxu0 0.0
  %4555 = vmatprep.subr.mxu0 0.0
  %4556 = vmatpush1.msra.mxu0 0.0
  %4557 = vmatprep.subr.mxu0 0.0
  %4558 = vmatpush1.msra.mxu0 0.0
  %4559 = vmatprep.subr.mxu0 0.0
  %4560 = vmatpush1.msra.mxu0 0.0
  %4561 = vmatprep.mubr.f32.mxu0 0.0
  %4562 = vmatmul.mubr.f32.gmra.mrb[0].mxu0 %v2859
  %v4563 = vpop.f32.mrb[0].mxu0
  %v4564 = vadd.f32 %v2820, %v4563
  %v4565 = vpop.f32.mrb[0].mxu0
  %4566 = vmatprep.mubr.f32.mxu0 0.0
  %4567 = vmatmul.mubr.f32.gmra.mrb[0].mxu0 %v2862
  %v4568 = vpop.f32.mrb[0].mxu0
  %v4569 = vadd.f32 %v2825, %v4568
  %v4570 = vpop.f32.mrb[0].mxu0
  %4571 = vmatprep.mubr.f32.mxu0 0.0
  %4572 = vmatmul.mubr.f32.gmra.mrb[0].mxu0 %v2865
  %v4573 = vpop.f32.mrb[0].mxu0
  %v4574 = vadd.f32 %v2830, %v4573
  %v4575 = vpop.f32.mrb[0].mxu0
  %4576 = vmatprep.mubr.f32.mxu0 0.0
  %4577 = vmatmul.mubr.f32.gmra.mrb[0].mxu0 %v2868
  %v4578 = vpop.f32.mrb[0].mxu0
  %v4579 = vadd.f32 %v2835, %v4578
  %v4580 = vpop.f32.mrb[0].mxu0
  %4581 = vmatprep.mubr.f32.mxu0 0.0
  %4582 = vmatmul.mubr.f32.gmra.mrb[0].mxu0 %v2871
  %v4583 = vpop.f32.mrb[0].mxu0
  %v4584 = vadd.f32 %v2840, %v4583
  %v4585 = vpop.f32.mrb[0].mxu0
  %4586 = vmatprep.mubr.f32.mxu0 0.0
  %4587 = vmatmul.mubr.f32.gmra.mrb[0].mxu0 %v2874
  %v4588 = vpop.f32.mrb[0].mxu0
  %v4589 = vadd.f32 %v2845, %v4588
  %v4590 = vpop.f32.mrb[0].mxu0
  %4591 = vmatprep.mubr.f32.mxu0 0.0
  %4592 = vmatmul.mubr.f32.gmra.mrb[0].mxu0 %v2877
  %v4593 = vpop.f32.mrb[0].mxu0
  %v4594 = vadd.f32 %v2850, %v4593
  %v4595 = vpop.f32.mrb[0].mxu0
  %4596 = vmatprep.mubr.f32.mxu0 0.0
  %4597 = vmatmul.mubr.f32.gmra.mrb[0].mxu0 %v2880
  %v4598 = vpop.f32.mrb[0].mxu0
  %v4599 = vadd.f32 %v2855, %v4598
  %v4600 = vpop.f32.mrb[0].mxu0
  %4601 = vdwg.mxu0
  %v4602 = vmax.f32 %v4564, 0.0
  %v4603 = vmax.f32 %v4569, 0.0
  %v4604 = vmax.f32 %v4574, 0.0
  %v4605 = vmax.f32 %v4579, 0.0
  %v4606 = vmax.f32 %v4584, 0.0
  %v4607 = vmax.f32 %v4589, 0.0
  %v4608 = vmax.f32 %v4594, 0.0
  %v4609 = vmax.f32 %v4599, 0.0
  %4618 = vrot.lane.b32.xlu0 %v4602, 1
  %v4619 = vpop.permute.xlu0 %4618
  %4620 = vrot.lane.b32.xlu0 %v4603, 1
  %v4621 = vpop.permute.xlu0 %4620
  %4622 = vrot.lane.b32.xlu0 %v4604, 1
  %v4623 = vpop.permute.xlu0 %4622
  %4624 = vrot.lane.b32.xlu0 %v4605, 1
  %v4625 = vpop.permute.xlu0 %4624
  %4626 = vrot.lane.b32.xlu0 %v4606, 1
  %v4627 = vpop.permute.xlu0 %4626
  %4628 = vrot.lane.b32.xlu0 %v4607, 1
  %v4629 = vpop.permute.xlu0 %4628
  %4630 = vrot.lane.b32.xlu0 %v4608, 1
  %v4631 = vpop.permute.xlu0 %4630
  %4632 = vrot.lane.b32.xlu0 %v4609, 1
  %v4633 = vpop.permute.xlu0 %4632
  %v4642 = vsel %vm150, 0.0, %v4619
  %v4643 = vsel %vm150, 0.0, %v4621
  %v4644 = vsel %vm150, 0.0, %v4623
  %v4645 = vsel %vm150, 0.0, %v4625
  %v4646 = vsel %vm150, 0.0, %v4627
  %v4647 = vsel %vm150, 0.0, %v4629
  %v4648 = vsel %vm150, 0.0, %v4631
  %v4649 = vsel %vm150, 0.0, %v4633
  %4650 = vrot.lane.b32.xlu0 %v4602, 125
  %v4651 = vpop.permute.xlu0 %4650
  %4652 = vrot.lane.b32.xlu0 %v4603, 125
  %v4653 = vpop.permute.xlu0 %4652
  %4654 = vrot.lane.b32.xlu0 %v4604, 125
  %v4655 = vpop.permute.xlu0 %4654
  %4656 = vrot.lane.b32.xlu0 %v4605, 125
  %v4657 = vpop.permute.xlu0 %4656
  %4658 = vrot.lane.b32.xlu0 %v4606, 125
  %v4659 = vpop.permute.xlu0 %4658
  %4660 = vrot.lane.b32.xlu0 %v4607, 125
  %v4661 = vpop.permute.xlu0 %4660
  %4662 = vrot.lane.b32.xlu0 %v4608, 125
  %v4663 = vpop.permute.xlu0 %4662
  %4664 = vrot.lane.b32.xlu0 %v4609, 125
  %v4665 = vpop.permute.xlu0 %4664
  %v4674 = vsel %vm3059, %v4651, 0.0
  %v4675 = vsel %vm3059, %v4653, 0.0
  %v4676 = vsel %vm3059, %v4655, 0.0
  %v4677 = vsel %vm3059, %v4657, 0.0
  %v4678 = vsel %vm3059, %v4659, 0.0
  %v4679 = vsel %vm3059, %v4661, 0.0
  %v4680 = vsel %vm3059, %v4663, 0.0
  %v4681 = vsel %vm3059, %v4665, 0.0
  %4682 = vrot.lane.b32.xlu0 %v4602, 127
  %v4683 = vpop.permute.xlu0 %4682
  %4684 = vrot.lane.b32.xlu0 %v4603, 127
  %v4685 = vpop.permute.xlu0 %4684
  %4686 = vrot.lane.b32.xlu0 %v4604, 127
  %v4687 = vpop.permute.xlu0 %4686
  %4688 = vrot.lane.b32.xlu0 %v4605, 127
  %v4689 = vpop.permute.xlu0 %4688
  %4690 = vrot.lane.b32.xlu0 %v4606, 127
  %v4691 = vpop.permute.xlu0 %4690
  %4692 = vrot.lane.b32.xlu0 %v4607, 127
  %v4693 = vpop.permute.xlu0 %4692
  %4694 = vrot.lane.b32.xlu0 %v4608, 127
  %v4695 = vpop.permute.xlu0 %4694
  %4696 = vrot.lane.b32.xlu0 %v4609, 127
  %v4697 = vpop.permute.xlu0 %4696
  %4706 = vrot.lane.b32.xlu0 %v4602, 126
  %v4707 = vpop.permute.xlu0 %4706
  %4708 = vrot.lane.b32.xlu0 %v4603, 126
  %v4709 = vpop.permute.xlu0 %4708
  %4710 = vrot.lane.b32.xlu0 %v4604, 126
  %v4711 = vpop.permute.xlu0 %4710
  %4712 = vrot.lane.b32.xlu0 %v4605, 126
  %v4713 = vpop.permute.xlu0 %4712
  %4714 = vrot.lane.b32.xlu0 %v4606, 126
  %v4715 = vpop.permute.xlu0 %4714
  %4716 = vrot.lane.b32.xlu0 %v4607, 126
  %v4717 = vpop.permute.xlu0 %4716
  %4718 = vrot.lane.b32.xlu0 %v4608, 126
  %v4719 = vpop.permute.xlu0 %4718
  %4720 = vrot.lane.b32.xlu0 %v4609, 126
  %v4721 = vpop.permute.xlu0 %4720
  %4734 = vrot.lane.b32.xlu0 %v2762, 1
  %v4735 = vpop.permute.xlu0 %4734
  %4736 = vrot.lane.b32.xlu0 %v2767, 1
  %v4737 = vpop.permute.xlu0 %4736
  %4738 = vrot.lane.b32.xlu0 %v2772, 1
  %v4739 = vpop.permute.xlu0 %4738
  %4740 = vrot.lane.b32.xlu0 %v2777, 1
  %v4741 = vpop.permute.xlu0 %4740
  %v4746 = vsel %vm150, 0.0, %v4735
  %v4747 = vsel %vm150, 0.0, %v4737
  %v4748 = vsel %vm150, 0.0, %v4739
  %v4749 = vsel %vm150, 0.0, %v4741
  %4750 = vrot.lane.b32.xlu0 %v2762, 127
  %v4751 = vpop.permute.xlu0 %4750
  %4752 = vrot.lane.b32.xlu0 %v2767, 127
  %v4753 = vpop.permute.xlu0 %4752
  %4754 = vrot.lane.b32.xlu0 %v2772, 127
  %v4755 = vpop.permute.xlu0 %4754
  %4756 = vrot.lane.b32.xlu0 %v2777, 127
  %v4757 = vpop.permute.xlu0 %4756
  %v4762 = vsel %vm2812, %v4751, 0.0
  %v4763 = vsel %vm2812, %v4753, 0.0
  %v4764 = vsel %vm2812, %v4755, 0.0
  %v4765 = vsel %vm2812, %v4757, 0.0
  %4766 = vmatprep.subr.mxu0 0.0
  %4767 = vmatpush1.msra.mxu0 %v4746
  %4768 = vmatprep.subr.mxu0 0.0
  %4769 = vmatpush1.msra.mxu0 %v4747
  %4770 = vmatprep.subr.mxu0 0.0
  %4771 = vmatpush1.msra.mxu0 %v4748
  %4772 = vmatprep.subr.mxu0 0.0
  %4773 = vmatpush1.msra.mxu0 %v4749
  %4774 = vmatprep.subr.mxu0 0.0
  %4775 = vmatpush1.msra.mxu0 %v2762
  %4776 = vmatprep.subr.mxu0 0.0
  %4777 = vmatpush1.msra.mxu0 %v2767
  %4778 = vmatprep.subr.mxu0 0.0
  %4779 = vmatpush1.msra.mxu0 %v2772
  %4780 = vmatprep.subr.mxu0 0.0
  %4781 = vmatpush1.msra.mxu0 %v2777
  %4782 = vmatprep.subr.mxu0 0.0
  %4783 = vmatpush1.msra.mxu0 %v4762
  %4784 = vmatprep.subr.mxu0 0.0
  %4785 = vmatpush1.msra.mxu0 %v4763
  %4786 = vmatprep.subr.mxu0 0.0
  %4787 = vmatpush1.msra.mxu0 %v4764
  %4788 = vmatprep.subr.mxu0 0.0
  %4789 = vmatpush1.msra.mxu0 %v4765
  %4790 = vmatprep.subr.mxu0 0.0
  %4791 = vmatpush1.msra.mxu0 0.0
  %4792 = vmatprep.subr.mxu0 0.0
  %4793 = vmatpush1.msra.mxu0 0.0
  %4794 = vmatprep.subr.mxu0 0.0
  %4795 = vmatpush1.msra.mxu0 0.0
  %4796 = vmatprep.subr.mxu0 0.0
  %4797 = vmatpush1.msra.mxu0 0.0
  %4798 = vmatprep.subr.mxu0 0.0
  %4799 = vmatpush1.msra.mxu0 0.0
  %4800 = vmatprep.subr.mxu0 0.0
  %4801 = vmatpush1.msra.mxu0 0.0
  %4802 = vmatprep.subr.mxu0 0.0
  %4803 = vmatpush1.msra.mxu0 0.0
  %4804 = vmatprep.subr.mxu0 0.0
  %4805 = vmatpush1.msra.mxu0 0.0
  %4806 = vmatprep.subr.mxu0 0.0
  %4807 = vmatpush1.msra.mxu0 0.0
  %4808 = vmatprep.subr.mxu0 0.0
  %4809 = vmatpush1.msra.mxu0 0.0
  %4810 = vmatprep.subr.mxu0 0.0
  %4811 = vmatpush1.msra.mxu0 0.0
  %4812 = vmatprep.subr.mxu0 0.0
  %4813 = vmatpush1.msra.mxu0 0.0
  %4814 = vmatprep.subr.mxu0 0.0
  %4815 = vmatpush1.msra.mxu0 0.0
  %4816 = vmatprep.subr.mxu0 0.0
  %4817 = vmatpush1.msra.mxu0 0.0
  %4818 = vmatprep.subr.mxu0 0.0
  %4819 = vmatpush1.msra.mxu0 0.0
  %4820 = vmatprep.subr.mxu0 0.0
  %4821 = vmatpush1.msra.mxu0 0.0
  %4822 = vmatprep.subr.mxu0 0.0
  %4823 = vmatpush1.msra.mxu0 0.0
  %4824 = vmatprep.subr.mxu0 0.0
  %4825 = vmatpush1.msra.mxu0 0.0
  %4826 = vmatprep.subr.mxu0 0.0
  %4827 = vmatpush1.msra.mxu0 0.0
  %4828 = vmatprep.subr.mxu0 0.0
  %4829 = vmatpush1.msra.mxu0 0.0
  %4830 = vmatprep.mubr.f32.mxu0 0.0
  %4831 = vmatmul.mubr.f32.gmra.mrb[0].mxu0 %v2859
  %v4832 = vpop.f32.mrb[0].mxu0
  %v4833 = vadd.f32 %v2820, %v4832
  %v4834 = vpop.f32.mrb[0].mxu0
  %4835 = vmatprep.mubr.f32.mxu0 0.0
  %4836 = vmatmul.mubr.f32.gmra.mrb[0].mxu0 %v2862
  %v4837 = vpop.f32.mrb[0].mxu0
  %v4838 = vadd.f32 %v2825, %v4837
  %v4839 = vpop.f32.mrb[0].mxu0
  %4840 = vmatprep.mubr.f32.mxu0 0.0
  %4841 = vmatmul.mubr.f32.gmra.mrb[0].mxu0 %v2865
  %v4842 = vpop.f32.mrb[0].mxu0
  %v4843 = vadd.f32 %v2830, %v4842
  %v4844 = vpop.f32.mrb[0].mxu0
  %4845 = vmatprep.mubr.f32.mxu0 0.0
  %4846 = vmatmul.mubr.f32.gmra.mrb[0].mxu0 %v2868
  %v4847 = vpop.f32.mrb[0].mxu0
  %v4848 = vadd.f32 %v2835, %v4847
  %v4849 = vpop.f32.mrb[0].mxu0
  %4850 = vmatprep.mubr.f32.mxu0 0.0
  %4851 = vmatmul.mubr.f32.gmra.mrb[0].mxu0 %v2871
  %v4852 = vpop.f32.mrb[0].mxu0
  %v4853 = vadd.f32 %v2840, %v4852
  %v4854 = vpop.f32.mrb[0].mxu0
  %4855 = vmatprep.mubr.f32.mxu0 0.0
  %4856 = vmatmul.mubr.f32.gmra.mrb[0].mxu0 %v2874
  %v4857 = vpop.f32.mrb[0].mxu0
  %v4858 = vadd.f32 %v2845, %v4857
  %v4859 = vpop.f32.mrb[0].mxu0
  %4860 = vmatprep.mubr.f32.mxu0 0.0
  %4861 = vmatmul.mubr.f32.gmra.mrb[0].mxu0 %v2877
  %v4862 = vpop.f32.mrb[0].mxu0
  %v4863 = vadd.f32 %v2850, %v4862
  %v4864 = vpop.f32.mrb[0].mxu0
  %4865 = vmatprep.mubr.f32.mxu0 0.0
  %4866 = vmatmul.mubr.f32.gmra.mrb[0].mxu0 %v2880
  %v4867 = vpop.f32.mrb[0].mxu0
  %v4868 = vadd.f32 %v2855, %v4867
  %v4869 = vpop.f32.mrb[0].mxu0
  %4870 = vdwg.mxu0
  %v4871 = vmax.f32 %v4833, 0.0
  %v4872 = vmax.f32 %v4838, 0.0
  %v4873 = vmax.f32 %v4843, 0.0
  %v4874 = vmax.f32 %v4848, 0.0
  %v4875 = vmax.f32 %v4853, 0.0
  %v4876 = vmax.f32 %v4858, 0.0
  %v4877 = vmax.f32 %v4863, 0.0
  %v4878 = vmax.f32 %v4868, 0.0
  %4887 = vrot.lane.b32.xlu0 %v4871, 1
  %v4888 = vpop.permute.xlu0 %4887
  %4889 = vrot.lane.b32.xlu0 %v4872, 1
  %v4890 = vpop.permute.xlu0 %4889
  %4891 = vrot.lane.b32.xlu0 %v4873, 1
  %v4892 = vpop.permute.xlu0 %4891
  %4893 = vrot.lane.b32.xlu0 %v4874, 1
  %v4894 = vpop.permute.xlu0 %4893
  %4895 = vrot.lane.b32.xlu0 %v4875, 1
  %v4896 = vpop.permute.xlu0 %4895
  %4897 = vrot.lane.b32.xlu0 %v4876, 1
  %v4898 = vpop.permute.xlu0 %4897
  %4899 = vrot.lane.b32.xlu0 %v4877, 1
  %v4900 = vpop.permute.xlu0 %4899
  %4901 = vrot.lane.b32.xlu0 %v4878, 1
  %v4902 = vpop.permute.xlu0 %4901
  %v4911 = vsel %vm150, 0.0, %v4888
  %v4912 = vsel %vm150, 0.0, %v4890
  %v4913 = vsel %vm150, 0.0, %v4892
  %v4914 = vsel %vm150, 0.0, %v4894
  %v4915 = vsel %vm150, 0.0, %v4896
  %v4916 = vsel %vm150, 0.0, %v4898
  %v4917 = vsel %vm150, 0.0, %v4900
  %v4918 = vsel %vm150, 0.0, %v4902
  %4919 = vrot.lane.b32.xlu0 %v4871, 125
  %v4920 = vpop.permute.xlu0 %4919
  %4921 = vrot.lane.b32.xlu0 %v4872, 125
  %v4922 = vpop.permute.xlu0 %4921
  %4923 = vrot.lane.b32.xlu0 %v4873, 125
  %v4924 = vpop.permute.xlu0 %4923
  %4925 = vrot.lane.b32.xlu0 %v4874, 125
  %v4926 = vpop.permute.xlu0 %4925
  %4927 = vrot.lane.b32.xlu0 %v4875, 125
  %v4928 = vpop.permute.xlu0 %4927
  %4929 = vrot.lane.b32.xlu0 %v4876, 125
  %v4930 = vpop.permute.xlu0 %4929
  %4931 = vrot.lane.b32.xlu0 %v4877, 125
  %v4932 = vpop.permute.xlu0 %4931
  %4933 = vrot.lane.b32.xlu0 %v4878, 125
  %v4934 = vpop.permute.xlu0 %4933
  %v4943 = vsel %vm3059, %v4920, 0.0
  %v4944 = vsel %vm3059, %v4922, 0.0
  %v4945 = vsel %vm3059, %v4924, 0.0
  %v4946 = vsel %vm3059, %v4926, 0.0
  %v4947 = vsel %vm3059, %v4928, 0.0
  %v4948 = vsel %vm3059, %v4930, 0.0
  %v4949 = vsel %vm3059, %v4932, 0.0
  %v4950 = vsel %vm3059, %v4934, 0.0
  %4951 = vrot.lane.b32.xlu0 %v4871, 127
  %v4952 = vpop.permute.xlu0 %4951
  %4953 = vrot.lane.b32.xlu0 %v4872, 127
  %v4954 = vpop.permute.xlu0 %4953
  %4955 = vrot.lane.b32.xlu0 %v4873, 127
  %v4956 = vpop.permute.xlu0 %4955
  %4957 = vrot.lane.b32.xlu0 %v4874, 127
  %v4958 = vpop.permute.xlu0 %4957
  %4959 = vrot.lane.b32.xlu0 %v4875, 127
  %v4960 = vpop.permute.xlu0 %4959
  %4961 = vrot.lane.b32.xlu0 %v4876, 127
  %v4962 = vpop.permute.xlu0 %4961
  %4963 = vrot.lane.b32.xlu0 %v4877, 127
  %v4964 = vpop.permute.xlu0 %4963
  %4965 = vrot.lane.b32.xlu0 %v4878, 127
  %v4966 = vpop.permute.xlu0 %4965
  %4975 = vrot.lane.b32.xlu0 %v4871, 126
  %v4976 = vpop.permute.xlu0 %4975
  %4977 = vrot.lane.b32.xlu0 %v4872, 126
  %v4978 = vpop.permute.xlu0 %4977
  %4979 = vrot.lane.b32.xlu0 %v4873, 126
  %v4980 = vpop.permute.xlu0 %4979
  %4981 = vrot.lane.b32.xlu0 %v4874, 126
  %v4982 = vpop.permute.xlu0 %4981
  %4983 = vrot.lane.b32.xlu0 %v4875, 126
  %v4984 = vpop.permute.xlu0 %4983
  %4985 = vrot.lane.b32.xlu0 %v4876, 126
  %v4986 = vpop.permute.xlu0 %4985
  %4987 = vrot.lane.b32.xlu0 %v4877, 126
  %v4988 = vpop.permute.xlu0 %4987
  %4989 = vrot.lane.b32.xlu0 %v4878, 126
  %v4990 = vpop.permute.xlu0 %4989
  %v5000 = vlaneseq
  %v5001 = vshrl.u32 %v5000, 7
  %v5002 = vsub.s32 0, %v5001
  %v5003 = vrot.slane %v94, %v5002
  %5004 = vset.pattern.permute.xlu0 0
  %5005 = vperm.xlu0 %5004, %v5003
  %v5006 = vpop.permute.xlu0 %5005
  %5008 = vmatprep.subr.mxu0 0.0
  %5009 = vmatpush1.msra.mxu0 %v3027
  %5010 = vmatprep.subr.mxu0 0.0
  %5011 = vmatpush1.msra.mxu0 %v3028
  %5012 = vmatprep.subr.mxu0 0.0
  %5013 = vmatpush1.msra.mxu0 %v3029
  %5014 = vmatprep.subr.mxu0 0.0
  %5015 = vmatpush1.msra.mxu0 %v3030
  %5016 = vmatprep.subr.mxu0 0.0
  %5017 = vmatpush1.msra.mxu0 %v3031
  %5018 = vmatprep.subr.mxu0 0.0
  %5019 = vmatpush1.msra.mxu0 %v3032
  %5020 = vmatprep.subr.mxu0 0.0
  %5021 = vmatpush1.msra.mxu0 %v3033
  %5022 = vmatprep.subr.mxu0 0.0
  %5023 = vmatpush1.msra.mxu0 %v3034
  %5024 = vmatprep.subr.mxu0 0.0
  %5025 = vmatpush1.msra.mxu0 %v2987
  %5026 = vmatprep.subr.mxu0 0.0
  %5027 = vmatpush1.msra.mxu0 %v2988
  %5028 = vmatprep.subr.mxu0 0.0
  %5029 = vmatpush1.msra.mxu0 %v2989
  %5030 = vmatprep.subr.mxu0 0.0
  %5031 = vmatpush1.msra.mxu0 %v2990
  %5032 = vmatprep.subr.mxu0 0.0
  %5033 = vmatpush1.msra.mxu0 %v2991
  %5034 = vmatprep.subr.mxu0 0.0
  %5035 = vmatpush1.msra.mxu0 %v2992
  %5036 = vmatprep.subr.mxu0 0.0
  %5037 = vmatpush1.msra.mxu0 %v2993
  %5038 = vmatprep.subr.mxu0 0.0
  %5039 = vmatpush1.msra.mxu0 %v2994
  %5040 = vmatprep.subr.mxu0 0.0
  %5041 = vmatpush1.msra.mxu0 %v3069
  %5042 = vmatprep.subr.mxu0 0.0
  %5043 = vmatpush1.msra.mxu0 %v3071
  %5044 = vmatprep.subr.mxu0 0.0
  %5045 = vmatpush1.msra.mxu0 %v3073
  %5046 = vmatprep.subr.mxu0 0.0
  %5047 = vmatpush1.msra.mxu0 %v3075
  %5048 = vmatprep.subr.mxu0 0.0
  %5049 = vmatpush1.msra.mxu0 %v3077
  %5050 = vmatprep.subr.mxu0 0.0
  %5051 = vmatpush1.msra.mxu0 %v3079
  %5052 = vmatprep.subr.mxu0 0.0
  %5053 = vmatpush1.msra.mxu0 %v3081
  %5054 = vmatprep.subr.mxu0 0.0
  %5055 = vmatpush1.msra.mxu0 %v3083
  %5056 = vmatprep.subr.mxu0 0.0
  %5057 = vmatpush1.msra.mxu0 %v3093
  %5058 = vmatprep.subr.mxu0 0.0
  %5059 = vmatpush1.msra.mxu0 %v3095
  %5060 = vmatprep.subr.mxu0 0.0
  %5061 = vmatpush1.msra.mxu0 %v3097
  %5062 = vmatprep.subr.mxu0 0.0
  %5063 = vmatpush1.msra.mxu0 %v3099
  %5064 = vmatprep.subr.mxu0 0.0
  %5065 = vmatpush1.msra.mxu0 %v3101
  %5066 = vmatprep.subr.mxu0 0.0
  %5067 = vmatpush1.msra.mxu0 %v3103
  %5068 = vmatprep.subr.mxu0 0.0
  %5069 = vmatpush1.msra.mxu0 %v3105
  %5070 = vmatprep.subr.mxu0 0.0
  %5071 = vmatpush1.msra.mxu0 %v3107
  %5072 = vmatprep.mubr.f32.mxu0 %v75
  %5073 = vmatmul.mubr.f32.gmra.mrb[0].mxu0 %v74
  %v5074 = vpop.f32.mrb[0].mxu0
  %v5075 = vadd.f32 %v5006, %v5074
  %v5076 = vpop.f32.mrb[0].mxu0
  %5077 = vdwg.mxu0
  %5078 = vmatprep.subr.mxu0 0.0
  %5079 = vmatpush1.msra.mxu0 %v3060
  %5080 = vmatprep.subr.mxu0 0.0
  %5081 = vmatpush1.msra.mxu0 %v3061
  %5082 = vmatprep.subr.mxu0 0.0
  %5083 = vmatpush1.msra.mxu0 %v3062
  %5084 = vmatprep.subr.mxu0 0.0
  %5085 = vmatpush1.msra.mxu0 %v3063
  %5086 = vmatprep.subr.mxu0 0.0
  %5087 = vmatpush1.msra.mxu0 %v3064
  %5088 = vmatprep.subr.mxu0 0.0
  %5089 = vmatpush1.msra.mxu0 %v3065
  %5090 = vmatprep.subr.mxu0 0.0
  %5091 = vmatpush1.msra.mxu0 %v3066
  %5092 = vmatprep.subr.mxu0 0.0
  %5093 = vmatpush1.msra.mxu0 %v3067
  %5094 = vmatprep.subr.mxu0 0.0
  %5095 = vmatpush1.msra.mxu0 %v3297
  %5096 = vmatprep.subr.mxu0 0.0
  %5097 = vmatpush1.msra.mxu0 %v3298
  %5098 = vmatprep.subr.mxu0 0.0
  %5099 = vmatpush1.msra.mxu0 %v3299
  %5100 = vmatprep.subr.mxu0 0.0
  %5101 = vmatpush1.msra.mxu0 %v3300
  %5102 = vmatprep.subr.mxu0 0.0
  %5103 = vmatpush1.msra.mxu0 %v3301
  %5104 = vmatprep.subr.mxu0 0.0
  %5105 = vmatpush1.msra.mxu0 %v3302
  %5106 = vmatprep.subr.mxu0 0.0
  %5107 = vmatpush1.msra.mxu0 %v3303
  %5108 = vmatprep.subr.mxu0 0.0
  %5109 = vmatpush1.msra.mxu0 %v3304
  %5110 = vmatprep.subr.mxu0 0.0
  %5111 = vmatpush1.msra.mxu0 %v3257
  %5112 = vmatprep.subr.mxu0 0.0
  %5113 = vmatpush1.msra.mxu0 %v3258
  %5114 = vmatprep.subr.mxu0 0.0
  %5115 = vmatpush1.msra.mxu0 %v3259
  %5116 = vmatprep.subr.mxu0 0.0
  %5117 = vmatpush1.msra.mxu0 %v3260
  %5118 = vmatprep.subr.mxu0 0.0
  %5119 = vmatpush1.msra.mxu0 %v3261
  %5120 = vmatprep.subr.mxu0 0.0
  %5121 = vmatpush1.msra.mxu0 %v3262
  %5122 = vmatprep.subr.mxu0 0.0
  %5123 = vmatpush1.msra.mxu0 %v3263
  %5124 = vmatprep.subr.mxu0 0.0
  %5125 = vmatpush1.msra.mxu0 %v3264
  %5126 = vmatprep.subr.mxu0 0.0
  %5127 = vmatpush1.msra.mxu0 %v3338
  %5128 = vmatprep.subr.mxu0 0.0
  %5129 = vmatpush1.msra.mxu0 %v3340
  %5130 = vmatprep.subr.mxu0 0.0
  %5131 = vmatpush1.msra.mxu0 %v3342
  %5132 = vmatprep.subr.mxu0 0.0
  %5133 = vmatpush1.msra.mxu0 %v3344
  %5134 = vmatprep.subr.mxu0 0.0
  %5135 = vmatpush1.msra.mxu0 %v3346
  %5136 = vmatprep.subr.mxu0 0.0
  %5137 = vmatpush1.msra.mxu0 %v3348
  %5138 = vmatprep.subr.mxu0 0.0
  %5139 = vmatpush1.msra.mxu0 %v3350
  %5140 = vmatprep.subr.mxu0 0.0
  %5141 = vmatpush1.msra.mxu0 %v3352
  %5142 = vmatprep.mubr.f32.mxu0 %v77
  %5143 = vmatmul.mubr.f32.gmra.mrb[0].mxu0 %v76
  %v5144 = vpop.f32.mrb[0].mxu0
  %v5145 = vadd.f32 %v5075, %v5144
  %v5146 = vpop.f32.mrb[0].mxu0
  %5147 = vdwg.mxu0
  %5148 = vmatprep.subr.mxu0 0.0
  %5149 = vmatpush1.msra.mxu0 %v3362
  %5150 = vmatprep.subr.mxu0 0.0
  %5151 = vmatpush1.msra.mxu0 %v3364
  %5152 = vmatprep.subr.mxu0 0.0
  %5153 = vmatpush1.msra.mxu0 %v3366
  %5154 = vmatprep.subr.mxu0 0.0
  %5155 = vmatpush1.msra.mxu0 %v3368
  %5156 = vmatprep.subr.mxu0 0.0
  %5157 = vmatpush1.msra.mxu0 %v3370
  %5158 = vmatprep.subr.mxu0 0.0
  %5159 = vmatpush1.msra.mxu0 %v3372
  %5160 = vmatprep.subr.mxu0 0.0
  %5161 = vmatpush1.msra.mxu0 %v3374
  %5162 = vmatprep.subr.mxu0 0.0
  %5163 = vmatpush1.msra.mxu0 %v3376
  %5164 = vmatprep.subr.mxu0 0.0
  %5165 = vmatpush1.msra.mxu0 %v3329
  %5166 = vmatprep.subr.mxu0 0.0
  %5167 = vmatpush1.msra.mxu0 %v3330
  %5168 = vmatprep.subr.mxu0 0.0
  %5169 = vmatpush1.msra.mxu0 %v3331
  %5170 = vmatprep.subr.mxu0 0.0
  %5171 = vmatpush1.msra.mxu0 %v3332
  %5172 = vmatprep.subr.mxu0 0.0
  %5173 = vmatpush1.msra.mxu0 %v3333
  %5174 = vmatprep.subr.mxu0 0.0
  %5175 = vmatpush1.msra.mxu0 %v3334
  %5176 = vmatprep.subr.mxu0 0.0
  %5177 = vmatpush1.msra.mxu0 %v3335
  %5178 = vmatprep.subr.mxu0 0.0
  %5179 = vmatpush1.msra.mxu0 %v3336
  %5180 = vmatprep.subr.mxu0 0.0
  %5181 = vmatpush1.msra.mxu0 %v3566
  %5182 = vmatprep.subr.mxu0 0.0
  %5183 = vmatpush1.msra.mxu0 %v3567
  %5184 = vmatprep.subr.mxu0 0.0
  %5185 = vmatpush1.msra.mxu0 %v3568
  %5186 = vmatprep.subr.mxu0 0.0
  %5187 = vmatpush1.msra.mxu0 %v3569
  %5188 = vmatprep.subr.mxu0 0.0
  %5189 = vmatpush1.msra.mxu0 %v3570
  %5190 = vmatprep.subr.mxu0 0.0
  %5191 = vmatpush1.msra.mxu0 %v3571
  %5192 = vmatprep.subr.mxu0 0.0
  %5193 = vmatpush1.msra.mxu0 %v3572
  %5194 = vmatprep.subr.mxu0 0.0
  %5195 = vmatpush1.msra.mxu0 %v3573
  %5196 = vmatprep.subr.mxu0 0.0
  %5197 = vmatpush1.msra.mxu0 %v3526
  %5198 = vmatprep.subr.mxu0 0.0
  %5199 = vmatpush1.msra.mxu0 %v3527
  %5200 = vmatprep.subr.mxu0 0.0
  %5201 = vmatpush1.msra.mxu0 %v3528
  %5202 = vmatprep.subr.mxu0 0.0
  %5203 = vmatpush1.msra.mxu0 %v3529
  %5204 = vmatprep.subr.mxu0 0.0
  %5205 = vmatpush1.msra.mxu0 %v3530
  %5206 = vmatprep.subr.mxu0 0.0
  %5207 = vmatpush1.msra.mxu0 %v3531
  %5208 = vmatprep.subr.mxu0 0.0
  %5209 = vmatpush1.msra.mxu0 %v3532
  %5210 = vmatprep.subr.mxu0 0.0
  %5211 = vmatpush1.msra.mxu0 %v3533
  %5212 = vmatprep.mubr.f32.mxu0 %v79
  %5213 = vmatmul.mubr.f32.gmra.mrb[0].mxu0 %v78
  %v5214 = vpop.f32.mrb[0].mxu0
  %v5215 = vadd.f32 %v5145, %v5214
  %v5216 = vpop.f32.mrb[0].mxu0
  %5217 = vdwg.mxu0
  %5218 = vmatprep.subr.mxu0 0.0
  %5219 = vmatpush1.msra.mxu0 %v3607
  %5220 = vmatprep.subr.mxu0 0.0
  %5221 = vmatpush1.msra.mxu0 %v3609
  %5222 = vmatprep.subr.mxu0 0.0
  %5223 = vmatpush1.msra.mxu0 %v3611
  %5224 = vmatprep.subr.mxu0 0.0
  %5225 = vmatpush1.msra.mxu0 %v3613
  %5226 = vmatprep.subr.mxu0 0.0
  %5227 = vmatpush1.msra.mxu0 %v3615
  %5228 = vmatprep.subr.mxu0 0.0
  %5229 = vmatpush1.msra.mxu0 %v3617
  %5230 = vmatprep.subr.mxu0 0.0
  %5231 = vmatpush1.msra.mxu0 %v3619
  %5232 = vmatprep.subr.mxu0 0.0
  %5233 = vmatpush1.msra.mxu0 %v3621
  %5234 = vmatprep.subr.mxu0 0.0
  %5235 = vmatpush1.msra.mxu0 %v3631
  %5236 = vmatprep.subr.mxu0 0.0
  %5237 = vmatpush1.msra.mxu0 %v3633
  %5238 = vmatprep.subr.mxu0 0.0
  %5239 = vmatpush1.msra.mxu0 %v3635
  %5240 = vmatprep.subr.mxu0 0.0
  %5241 = vmatpush1.msra.mxu0 %v3637
  %5242 = vmatprep.subr.mxu0 0.0
  %5243 = vmatpush1.msra.mxu0 %v3639
  %5244 = vmatprep.subr.mxu0 0.0
  %5245 = vmatpush1.msra.mxu0 %v3641
  %5246 = vmatprep.subr.mxu0 0.0
  %5247 = vmatpush1.msra.mxu0 %v3643
  %5248 = vmatprep.subr.mxu0 0.0
  %5249 = vmatpush1.msra.mxu0 %v3645
  %5250 = vmatprep.subr.mxu0 0.0
  %5251 = vmatpush1.msra.mxu0 %v3598
  %5252 = vmatprep.subr.mxu0 0.0
  %5253 = vmatpush1.msra.mxu0 %v3599
  %5254 = vmatprep.subr.mxu0 0.0
  %5255 = vmatpush1.msra.mxu0 %v3600
  %5256 = vmatprep.subr.mxu0 0.0
  %5257 = vmatpush1.msra.mxu0 %v3601
  %5258 = vmatprep.subr.mxu0 0.0
  %5259 = vmatpush1.msra.mxu0 %v3602
  %5260 = vmatprep.subr.mxu0 0.0
  %5261 = vmatpush1.msra.mxu0 %v3603
  %5262 = vmatprep.subr.mxu0 0.0
  %5263 = vmatpush1.msra.mxu0 %v3604
  %5264 = vmatprep.subr.mxu0 0.0
  %5265 = vmatpush1.msra.mxu0 %v3605
  %5266 = vmatprep.subr.mxu0 0.0
  %5267 = vmatpush1.msra.mxu0 %v3835
  %5268 = vmatprep.subr.mxu0 0.0
  %5269 = vmatpush1.msra.mxu0 %v3836
  %5270 = vmatprep.subr.mxu0 0.0
  %5271 = vmatpush1.msra.mxu0 %v3837
  %5272 = vmatprep.subr.mxu0 0.0
  %5273 = vmatpush1.msra.mxu0 %v3838
  %5274 = vmatprep.subr.mxu0 0.0
  %5275 = vmatpush1.msra.mxu0 %v3839
  %5276 = vmatprep.subr.mxu0 0.0
  %5277 = vmatpush1.msra.mxu0 %v3840
  %5278 = vmatprep.subr.mxu0 0.0
  %5279 = vmatpush1.msra.mxu0 %v3841
  %5280 = vmatprep.subr.mxu0 0.0
  %5281 = vmatpush1.msra.mxu0 %v3842
  %5282 = vmatprep.mubr.f32.mxu0 %v81
  %5283 = vmatmul.mubr.f32.gmra.mrb[0].mxu0 %v80
  %v5284 = vpop.f32.mrb[0].mxu0
  %v5285 = vadd.f32 %v5215, %v5284
  %v5286 = vpop.f32.mrb[0].mxu0
  %5287 = vdwg.mxu0
  %5288 = vmatprep.subr.mxu0 0.0
  %5289 = vmatpush1.msra.mxu0 %v3795
  %5290 = vmatprep.subr.mxu0 0.0
  %5291 = vmatpush1.msra.mxu0 %v3796
  %5292 = vmatprep.subr.mxu0 0.0
  %5293 = vmatpush1.msra.mxu0 %v3797
  %5294 = vmatprep.subr.mxu0 0.0
  %5295 = vmatpush1.msra.mxu0 %v3798
  %5296 = vmatprep.subr.mxu0 0.0
  %5297 = vmatpush1.msra.mxu0 %v3799
  %5298 = vmatprep.subr.mxu0 0.0
  %5299 = vmatpush1.msra.mxu0 %v3800
  %5300 = vmatprep.subr.mxu0 0.0
  %5301 = vmatpush1.msra.mxu0 %v3801
  %5302 = vmatprep.subr.mxu0 0.0
  %5303 = vmatpush1.msra.mxu0 %v3802
  %5304 = vmatprep.subr.mxu0 0.0
  %5305 = vmatpush1.msra.mxu0 %v3876
  %5306 = vmatprep.subr.mxu0 0.0
  %5307 = vmatpush1.msra.mxu0 %v3878
  %5308 = vmatprep.subr.mxu0 0.0
  %5309 = vmatpush1.msra.mxu0 %v3880
  %5310 = vmatprep.subr.mxu0 0.0
  %5311 = vmatpush1.msra.mxu0 %v3882
  %5312 = vmatprep.subr.mxu0 0.0
  %5313 = vmatpush1.msra.mxu0 %v3884
  %5314 = vmatprep.subr.mxu0 0.0
  %5315 = vmatpush1.msra.mxu0 %v3886
  %5316 = vmatprep.subr.mxu0 0.0
  %5317 = vmatpush1.msra.mxu0 %v3888
  %5318 = vmatprep.subr.mxu0 0.0
  %5319 = vmatpush1.msra.mxu0 %v3890
  %5320 = vmatprep.subr.mxu0 0.0
  %5321 = vmatpush1.msra.mxu0 %v3900
  %5322 = vmatprep.subr.mxu0 0.0
  %5323 = vmatpush1.msra.mxu0 %v3902
  %5324 = vmatprep.subr.mxu0 0.0
  %5325 = vmatpush1.msra.mxu0 %v3904
  %5326 = vmatprep.subr.mxu0 0.0
  %5327 = vmatpush1.msra.mxu0 %v3906
  %5328 = vmatprep.subr.mxu0 0.0
  %5329 = vmatpush1.msra.mxu0 %v3908
  %5330 = vmatprep.subr.mxu0 0.0
  %5331 = vmatpush1.msra.mxu0 %v3910
  %5332 = vmatprep.subr.mxu0 0.0
  %5333 = vmatpush1.msra.mxu0 %v3912
  %5334 = vmatprep.subr.mxu0 0.0
  %5335 = vmatpush1.msra.mxu0 %v3914
  %5336 = vmatprep.subr.mxu0 0.0
  %5337 = vmatpush1.msra.mxu0 %v3867
  %5338 = vmatprep.subr.mxu0 0.0
  %5339 = vmatpush1.msra.mxu0 %v3868
  %5340 = vmatprep.subr.mxu0 0.0
  %5341 = vmatpush1.msra.mxu0 %v3869
  %5342 = vmatprep.subr.mxu0 0.0
  %5343 = vmatpush1.msra.mxu0 %v3870
  %5344 = vmatprep.subr.mxu0 0.0
  %5345 = vmatpush1.msra.mxu0 %v3871
  %5346 = vmatprep.subr.mxu0 0.0
  %5347 = vmatpush1.msra.mxu0 %v3872
  %5348 = vmatprep.subr.mxu0 0.0
  %5349 = vmatpush1.msra.mxu0 %v3873
  %5350 = vmatprep.subr.mxu0 0.0
  %5351 = vmatpush1.msra.mxu0 %v3874
  %5352 = vmatprep.mubr.f32.mxu0 %v83
  %5353 = vmatmul.mubr.f32.gmra.mrb[0].mxu0 %v82
  %v5354 = vpop.f32.mrb[0].mxu0
  %v5355 = vadd.f32 %v5285, %v5354
  %v5356 = vpop.f32.mrb[0].mxu0
  %5357 = vdwg.mxu0
  %5358 = vmatprep.subr.mxu0 0.0
  %5359 = vmatpush1.msra.mxu0 %v4104
  %5360 = vmatprep.subr.mxu0 0.0
  %5361 = vmatpush1.msra.mxu0 %v4105
  %5362 = vmatprep.subr.mxu0 0.0
  %5363 = vmatpush1.msra.mxu0 %v4106
  %5364 = vmatprep.subr.mxu0 0.0
  %5365 = vmatpush1.msra.mxu0 %v4107
  %5366 = vmatprep.subr.mxu0 0.0
  %5367 = vmatpush1.msra.mxu0 %v4108
  %5368 = vmatprep.subr.mxu0 0.0
  %5369 = vmatpush1.msra.mxu0 %v4109
  %5370 = vmatprep.subr.mxu0 0.0
  %5371 = vmatpush1.msra.mxu0 %v4110
  %5372 = vmatprep.subr.mxu0 0.0
  %5373 = vmatpush1.msra.mxu0 %v4111
  %5374 = vmatprep.subr.mxu0 0.0
  %5375 = vmatpush1.msra.mxu0 %v4064
  %5376 = vmatprep.subr.mxu0 0.0
  %5377 = vmatpush1.msra.mxu0 %v4065
  %5378 = vmatprep.subr.mxu0 0.0
  %5379 = vmatpush1.msra.mxu0 %v4066
  %5380 = vmatprep.subr.mxu0 0.0
  %5381 = vmatpush1.msra.mxu0 %v4067
  %5382 = vmatprep.subr.mxu0 0.0
  %5383 = vmatpush1.msra.mxu0 %v4068
  %5384 = vmatprep.subr.mxu0 0.0
  %5385 = vmatpush1.msra.mxu0 %v4069
  %5386 = vmatprep.subr.mxu0 0.0
  %5387 = vmatpush1.msra.mxu0 %v4070
  %5388 = vmatprep.subr.mxu0 0.0
  %5389 = vmatpush1.msra.mxu0 %v4071
  %5390 = vmatprep.subr.mxu0 0.0
  %5391 = vmatpush1.msra.mxu0 %v4145
  %5392 = vmatprep.subr.mxu0 0.0
  %5393 = vmatpush1.msra.mxu0 %v4147
  %5394 = vmatprep.subr.mxu0 0.0
  %5395 = vmatpush1.msra.mxu0 %v4149
  %5396 = vmatprep.subr.mxu0 0.0
  %5397 = vmatpush1.msra.mxu0 %v4151
  %5398 = vmatprep.subr.mxu0 0.0
  %5399 = vmatpush1.msra.mxu0 %v4153
  %5400 = vmatprep.subr.mxu0 0.0
  %5401 = vmatpush1.msra.mxu0 %v4155
  %5402 = vmatprep.subr.mxu0 0.0
  %5403 = vmatpush1.msra.mxu0 %v4157
  %5404 = vmatprep.subr.mxu0 0.0
  %5405 = vmatpush1.msra.mxu0 %v4159
  %5406 = vmatprep.subr.mxu0 0.0
  %5407 = vmatpush1.msra.mxu0 %v4169
  %5408 = vmatprep.subr.mxu0 0.0
  %5409 = vmatpush1.msra.mxu0 %v4171
  %5410 = vmatprep.subr.mxu0 0.0
  %5411 = vmatpush1.msra.mxu0 %v4173
  %5412 = vmatprep.subr.mxu0 0.0
  %5413 = vmatpush1.msra.mxu0 %v4175
  %5414 = vmatprep.subr.mxu0 0.0
  %5415 = vmatpush1.msra.mxu0 %v4177
  %5416 = vmatprep.subr.mxu0 0.0
  %5417 = vmatpush1.msra.mxu0 %v4179
  %5418 = vmatprep.subr.mxu0 0.0
  %5419 = vmatpush1.msra.mxu0 %v4181
  %5420 = vmatprep.subr.mxu0 0.0
  %5421 = vmatpush1.msra.mxu0 %v4183
  %5422 = vmatprep.mubr.f32.mxu0 %v85
  %5423 = vmatmul.mubr.f32.gmra.mrb[0].mxu0 %v84
  %v5424 = vpop.f32.mrb[0].mxu0
  %v5425 = vadd.f32 %v5355, %v5424
  %v5426 = vpop.f32.mrb[0].mxu0
  %5427 = vdwg.mxu0
  %5428 = vmatprep.subr.mxu0 0.0
  %5429 = vmatpush1.msra.mxu0 %v4136
  %5430 = vmatprep.subr.mxu0 0.0
  %5431 = vmatpush1.msra.mxu0 %v4137
  %5432 = vmatprep.subr.mxu0 0.0
  %5433 = vmatpush1.msra.mxu0 %v4138
  %5434 = vmatprep.subr.mxu0 0.0
  %5435 = vmatpush1.msra.mxu0 %v4139
  %5436 = vmatprep.subr.mxu0 0.0
  %5437 = vmatpush1.msra.mxu0 %v4140
  %5438 = vmatprep.subr.mxu0 0.0
  %5439 = vmatpush1.msra.mxu0 %v4141
  %5440 = vmatprep.subr.mxu0 0.0
  %5441 = vmatpush1.msra.mxu0 %v4142
  %5442 = vmatprep.subr.mxu0 0.0
  %5443 = vmatpush1.msra.mxu0 %v4143
  %5444 = vmatprep.subr.mxu0 0.0
  %5445 = vmatpush1.msra.mxu0 %v4373
  %5446 = vmatprep.subr.mxu0 0.0
  %5447 = vmatpush1.msra.mxu0 %v4374
  %5448 = vmatprep.subr.mxu0 0.0
  %5449 = vmatpush1.msra.mxu0 %v4375
  %5450 = vmatprep.subr.mxu0 0.0
  %5451 = vmatpush1.msra.mxu0 %v4376
  %5452 = vmatprep.subr.mxu0 0.0
  %5453 = vmatpush1.msra.mxu0 %v4377
  %5454 = vmatprep.subr.mxu0 0.0
  %5455 = vmatpush1.msra.mxu0 %v4378
  %5456 = vmatprep.subr.mxu0 0.0
  %5457 = vmatpush1.msra.mxu0 %v4379
  %5458 = vmatprep.subr.mxu0 0.0
  %5459 = vmatpush1.msra.mxu0 %v4380
  %5460 = vmatprep.subr.mxu0 0.0
  %5461 = vmatpush1.msra.mxu0 %v4333
  %5462 = vmatprep.subr.mxu0 0.0
  %5463 = vmatpush1.msra.mxu0 %v4334
  %5464 = vmatprep.subr.mxu0 0.0
  %5465 = vmatpush1.msra.mxu0 %v4335
  %5466 = vmatprep.subr.mxu0 0.0
  %5467 = vmatpush1.msra.mxu0 %v4336
  %5468 = vmatprep.subr.mxu0 0.0
  %5469 = vmatpush1.msra.mxu0 %v4337
  %5470 = vmatprep.subr.mxu0 0.0
  %5471 = vmatpush1.msra.mxu0 %v4338
  %5472 = vmatprep.subr.mxu0 0.0
  %5473 = vmatpush1.msra.mxu0 %v4339
  %5474 = vmatprep.subr.mxu0 0.0
  %5475 = vmatpush1.msra.mxu0 %v4340
  %5476 = vmatprep.subr.mxu0 0.0
  %5477 = vmatpush1.msra.mxu0 %v4414
  %5478 = vmatprep.subr.mxu0 0.0
  %5479 = vmatpush1.msra.mxu0 %v4416
  %5480 = vmatprep.subr.mxu0 0.0
  %5481 = vmatpush1.msra.mxu0 %v4418
  %5482 = vmatprep.subr.mxu0 0.0
  %5483 = vmatpush1.msra.mxu0 %v4420
  %5484 = vmatprep.subr.mxu0 0.0
  %5485 = vmatpush1.msra.mxu0 %v4422
  %5486 = vmatprep.subr.mxu0 0.0
  %5487 = vmatpush1.msra.mxu0 %v4424
  %5488 = vmatprep.subr.mxu0 0.0
  %5489 = vmatpush1.msra.mxu0 %v4426
  %5490 = vmatprep.subr.mxu0 0.0
  %5491 = vmatpush1.msra.mxu0 %v4428
  %5492 = vmatprep.mubr.f32.mxu0 %v87
  %5493 = vmatmul.mubr.f32.gmra.mrb[0].mxu0 %v86
  %v5494 = vpop.f32.mrb[0].mxu0
  %v5495 = vadd.f32 %v5425, %v5494
  %v5496 = vpop.f32.mrb[0].mxu0
  %5497 = vdwg.mxu0
  %5498 = vmatprep.subr.mxu0 0.0
  %5499 = vmatpush1.msra.mxu0 %v4438
  %5500 = vmatprep.subr.mxu0 0.0
  %5501 = vmatpush1.msra.mxu0 %v4440
  %5502 = vmatprep.subr.mxu0 0.0
  %5503 = vmatpush1.msra.mxu0 %v4442
  %5504 = vmatprep.subr.mxu0 0.0
  %5505 = vmatpush1.msra.mxu0 %v4444
  %5506 = vmatprep.subr.mxu0 0.0
  %5507 = vmatpush1.msra.mxu0 %v4446
  %5508 = vmatprep.subr.mxu0 0.0
  %5509 = vmatpush1.msra.mxu0 %v4448
  %5510 = vmatprep.subr.mxu0 0.0
  %5511 = vmatpush1.msra.mxu0 %v4450
  %5512 = vmatprep.subr.mxu0 0.0
  %5513 = vmatpush1.msra.mxu0 %v4452
  %5514 = vmatprep.subr.mxu0 0.0
  %5515 = vmatpush1.msra.mxu0 %v4405
  %5516 = vmatprep.subr.mxu0 0.0
  %5517 = vmatpush1.msra.mxu0 %v4406
  %5518 = vmatprep.subr.mxu0 0.0
  %5519 = vmatpush1.msra.mxu0 %v4407
  %5520 = vmatprep.subr.mxu0 0.0
  %5521 = vmatpush1.msra.mxu0 %v4408
  %5522 = vmatprep.subr.mxu0 0.0
  %5523 = vmatpush1.msra.mxu0 %v4409
  %5524 = vmatprep.subr.mxu0 0.0
  %5525 = vmatpush1.msra.mxu0 %v4410
  %5526 = vmatprep.subr.mxu0 0.0
  %5527 = vmatpush1.msra.mxu0 %v4411
  %5528 = vmatprep.subr.mxu0 0.0
  %5529 = vmatpush1.msra.mxu0 %v4412
  %5530 = vmatprep.subr.mxu0 0.0
  %5531 = vmatpush1.msra.mxu0 %v4642
  %5532 = vmatprep.subr.mxu0 0.0
  %5533 = vmatpush1.msra.mxu0 %v4643
  %5534 = vmatprep.subr.mxu0 0.0
  %5535 = vmatpush1.msra.mxu0 %v4644
  %5536 = vmatprep.subr.mxu0 0.0
  %5537 = vmatpush1.msra.mxu0 %v4645
  %5538 = vmatprep.subr.mxu0 0.0
  %5539 = vmatpush1.msra.mxu0 %v4646
  %5540 = vmatprep.subr.mxu0 0.0
  %5541 = vmatpush1.msra.mxu0 %v4647
  %5542 = vmatprep.subr.mxu0 0.0
  %5543 = vmatpush1.msra.mxu0 %v4648
  %5544 = vmatprep.subr.mxu0 0.0
  %5545 = vmatpush1.msra.mxu0 %v4649
  %5546 = vmatprep.subr.mxu0 0.0
  %5547 = vmatpush1.msra.mxu0 %v4602
  %5548 = vmatprep.subr.mxu0 0.0
  %5549 = vmatpush1.msra.mxu0 %v4603
  %5550 = vmatprep.subr.mxu0 0.0
  %5551 = vmatpush1.msra.mxu0 %v4604
  %5552 = vmatprep.subr.mxu0 0.0
  %5553 = vmatpush1.msra.mxu0 %v4605
  %5554 = vmatprep.subr.mxu0 0.0
  %5555 = vmatpush1.msra.mxu0 %v4606
  %5556 = vmatprep.subr.mxu0 0.0
  %5557 = vmatpush1.msra.mxu0 %v4607
  %5558 = vmatprep.subr.mxu0 0.0
  %5559 = vmatpush1.msra.mxu0 %v4608
  %5560 = vmatprep.subr.mxu0 0.0
  %5561 = vmatpush1.msra.mxu0 %v4609
  %5562 = vmatprep.mubr.f32.mxu0 %v89
  %5563 = vmatmul.mubr.f32.gmra.mrb[0].mxu0 %v88
  %v5564 = vpop.f32.mrb[0].mxu0
  %v5565 = vadd.f32 %v5495, %v5564
  %v5566 = vpop.f32.mrb[0].mxu0
  %5567 = vdwg.mxu0
  %5568 = vmatprep.subr.mxu0 0.0
  %5569 = vmatpush1.msra.mxu0 %v4683
  %5570 = vmatprep.subr.mxu0 0.0
  %5571 = vmatpush1.msra.mxu0 %v4685
  %5572 = vmatprep.subr.mxu0 0.0
  %5573 = vmatpush1.msra.mxu0 %v4687
  %5574 = vmatprep.subr.mxu0 0.0
  %5575 = vmatpush1.msra.mxu0 %v4689
  %5576 = vmatprep.subr.mxu0 0.0
  %5577 = vmatpush1.msra.mxu0 %v4691
  %5578 = vmatprep.subr.mxu0 0.0
  %5579 = vmatpush1.msra.mxu0 %v4693
  %5580 = vmatprep.subr.mxu0 0.0
  %5581 = vmatpush1.msra.mxu0 %v4695
  %5582 = vmatprep.subr.mxu0 0.0
  %5583 = vmatpush1.msra.mxu0 %v4697
  %5584 = vmatprep.subr.mxu0 0.0
  %5585 = vmatpush1.msra.mxu0 %v4707
  %5586 = vmatprep.subr.mxu0 0.0
  %5587 = vmatpush1.msra.mxu0 %v4709
  %5588 = vmatprep.subr.mxu0 0.0
  %5589 = vmatpush1.msra.mxu0 %v4711
  %5590 = vmatprep.subr.mxu0 0.0
  %5591 = vmatpush1.msra.mxu0 %v4713
  %5592 = vmatprep.subr.mxu0 0.0
  %5593 = vmatpush1.msra.mxu0 %v4715
  %5594 = vmatprep.subr.mxu0 0.0
  %5595 = vmatpush1.msra.mxu0 %v4717
  %5596 = vmatprep.subr.mxu0 0.0
  %5597 = vmatpush1.msra.mxu0 %v4719
  %5598 = vmatprep.subr.mxu0 0.0
  %5599 = vmatpush1.msra.mxu0 %v4721
  %5600 = vmatprep.subr.mxu0 0.0
  %5601 = vmatpush1.msra.mxu0 %v4674
  %5602 = vmatprep.subr.mxu0 0.0
  %5603 = vmatpush1.msra.mxu0 %v4675
  %5604 = vmatprep.subr.mxu0 0.0
  %5605 = vmatpush1.msra.mxu0 %v4676
  %5606 = vmatprep.subr.mxu0 0.0
  %5607 = vmatpush1.msra.mxu0 %v4677
  %5608 = vmatprep.subr.mxu0 0.0
  %5609 = vmatpush1.msra.mxu0 %v4678
  %5610 = vmatprep.subr.mxu0 0.0
  %5611 = vmatpush1.msra.mxu0 %v4679
  %5612 = vmatprep.subr.mxu0 0.0
  %5613 = vmatpush1.msra.mxu0 %v4680
  %5614 = vmatprep.subr.mxu0 0.0
  %5615 = vmatpush1.msra.mxu0 %v4681
  %5616 = vmatprep.subr.mxu0 0.0
  %5617 = vmatpush1.msra.mxu0 %v4911
  %5618 = vmatprep.subr.mxu0 0.0
  %5619 = vmatpush1.msra.mxu0 %v4912
  %5620 = vmatprep.subr.mxu0 0.0
  %5621 = vmatpush1.msra.mxu0 %v4913
  %5622 = vmatprep.subr.mxu0 0.0
  %5623 = vmatpush1.msra.mxu0 %v4914
  %5624 = vmatprep.subr.mxu0 0.0
  %5625 = vmatpush1.msra.mxu0 %v4915
  %5626 = vmatprep.subr.mxu0 0.0
  %5627 = vmatpush1.msra.mxu0 %v4916
  %5628 = vmatprep.subr.mxu0 0.0
  %5629 = vmatpush1.msra.mxu0 %v4917
  %5630 = vmatprep.subr.mxu0 0.0
  %5631 = vmatpush1.msra.mxu0 %v4918
  %5632 = vmatprep.mubr.f32.mxu0 %v91
  %5633 = vmatmul.mubr.f32.gmra.mrb[0].mxu0 %v90
  %v5634 = vpop.f32.mrb[0].mxu0
  %v5635 = vadd.f32 %v5565, %v5634
  %v5636 = vpop.f32.mrb[0].mxu0
  %5637 = vdwg.mxu0
  %5638 = vmatprep.subr.mxu0 0.0
  %5639 = vmatpush1.msra.mxu0 %v4871
  %5640 = vmatprep.subr.mxu0 0.0
  %5641 = vmatpush1.msra.mxu0 %v4872
  %5642 = vmatprep.subr.mxu0 0.0
  %5643 = vmatpush1.msra.mxu0 %v4873
  %5644 = vmatprep.subr.mxu0 0.0
  %5645 = vmatpush1.msra.mxu0 %v4874
  %5646 = vmatprep.subr.mxu0 0.0
  %5647 = vmatpush1.msra.mxu0 %v4875
  %5648 = vmatprep.subr.mxu0 0.0
  %5649 = vmatpush1.msra.mxu0 %v4876
  %5650 = vmatprep.subr.mxu0 0.0
  %5651 = vmatpush1.msra.mxu0 %v4877
  %5652 = vmatprep.subr.mxu0 0.0
  %5653 = vmatpush1.msra.mxu0 %v4878
  %5654 = vmatprep.subr.mxu0 0.0
  %5655 = vmatpush1.msra.mxu0 %v4952
  %5656 = vmatprep.subr.mxu0 0.0
  %5657 = vmatpush1.msra.mxu0 %v4954
  %5658 = vmatprep.subr.mxu0 0.0
  %5659 = vmatpush1.msra.mxu0 %v4956
  %5660 = vmatprep.subr.mxu0 0.0
  %5661 = vmatpush1.msra.mxu0 %v4958
  %5662 = vmatprep.subr.mxu0 0.0
  %5663 = vmatpush1.msra.mxu0 %v4960
  %5664 = vmatprep.subr.mxu0 0.0
  %5665 = vmatpush1.msra.mxu0 %v4962
  %5666 = vmatprep.subr.mxu0 0.0
  %5667 = vmatpush1.msra.mxu0 %v4964
  %5668 = vmatprep.subr.mxu0 0.0
  %5669 = vmatpush1.msra.mxu0 %v4966
  %5670 = vmatprep.subr.mxu0 0.0
  %5671 = vmatpush1.msra.mxu0 %v4976
  %5672 = vmatprep.subr.mxu0 0.0
  %5673 = vmatpush1.msra.mxu0 %v4978
  %5674 = vmatprep.subr.mxu0 0.0
  %5675 = vmatpush1.msra.mxu0 %v4980
  %5676 = vmatprep.subr.mxu0 0.0
  %5677 = vmatpush1.msra.mxu0 %v4982
  %5678 = vmatprep.subr.mxu0 0.0
  %5679 = vmatpush1.msra.mxu0 %v4984
  %5680 = vmatprep.subr.mxu0 0.0
  %5681 = vmatpush1.msra.mxu0 %v4986
  %5682 = vmatprep.subr.mxu0 0.0
  %5683 = vmatpush1.msra.mxu0 %v4988
  %5684 = vmatprep.subr.mxu0 0.0
  %5685 = vmatpush1.msra.mxu0 %v4990
  %5686 = vmatprep.subr.mxu0 0.0
  %5687 = vmatpush1.msra.mxu0 %v4943
  %5688 = vmatprep.subr.mxu0 0.0
  %5689 = vmatpush1.msra.mxu0 %v4944
  %5690 = vmatprep.subr.mxu0 0.0
  %5691 = vmatpush1.msra.mxu0 %v4945
  %5692 = vmatprep.subr.mxu0 0.0
  %5693 = vmatpush1.msra.mxu0 %v4946
  %5694 = vmatprep.subr.mxu0 0.0
  %5695 = vmatpush1.msra.mxu0 %v4947
  %5696 = vmatprep.subr.mxu0 0.0
  %5697 = vmatpush1.msra.mxu0 %v4948
  %5698 = vmatprep.subr.mxu0 0.0
  %5699 = vmatpush1.msra.mxu0 %v4949
  %5700 = vmatprep.subr.mxu0 0.0
  %5701 = vmatpush1.msra.mxu0 %v4950
  %5702 = vmatprep.mubr.f32.mxu0 %v93
  %5703 = vmatmul.mubr.f32.gmra.mrb[0].mxu0 %v92
  %v5704 = vpop.f32.mrb[0].mxu0
  %v5705 = vadd.f32 %v5635, %v5704
  %v5706 = vpop.f32.mrb[0].mxu0
  %5707 = vdwg.mxu0
  %v5708 = vmax.f32 %v5705, 0.0
  %5710 = vrot.lane.b32.xlu0 %v5708, 127
  %v5711 = vpop.permute.xlu0 %5710
  %v5713 = vsel %vm3059, %v5711, 0.0
  %v5714 = vmax.f32 %v5708, %v5713
  %vm5715 = vcmask 834560
  %v5717 = vsel %vm5715, %v5714, 0
  %vm5719 = vcmask 1045504
  %v5721 = vsel %vm5719, %v133, 0
  %5723 = vmatprep.subr.mxu0 0.0
  %5724 = vmatpush1.msra.mxu0 %v121
  %5725 = vmatprep.subr.mxu0 0.0
  %5726 = vmatpush1.msra.mxu0 %v122
  %5727 = vmatprep.subr.mxu0 0.0
  %5728 = vmatpush1.msra.mxu0 %v123
  %5729 = vmatprep.subr.mxu0 0.0
  %5730 = vmatpush1.msra.mxu0 %v124
  %5731 = vmatprep.subr.mxu0 0.0
  %5732 = vmatpush1.msra.mxu0 %v125
  %5733 = vmatprep.subr.mxu0 0.0
  %5734 = vmatpush1.msra.mxu0 %v126
  %5735 = vmatprep.subr.mxu0 0.0
  %5736 = vmatpush1.msra.mxu0 %v127
  %5737 = vmatprep.subr.mxu0 0.0
  %5738 = vmatpush1.msra.mxu0 %v128
  %5739 = vmatprep.subr.mxu0 0.0
  %5740 = vmatpush1.msra.mxu0 %v129
  %5741 = vmatprep.subr.mxu0 0.0
  %5742 = vmatpush1.msra.mxu0 %v130
  %5743 = vmatprep.subr.mxu0 0.0
  %5744 = vmatpush1.msra.mxu0 %v131
  %5745 = vmatprep.subr.mxu0 0.0
  %5746 = vmatpush1.msra.mxu0 %v132
  %5747 = vmatprep.subr.mxu0 0.0
  %5748 = vmatpush1.msra.mxu0 %v5721
  %5749 = vmatprep.subr.mxu0 0.0
  %5750 = vmatpush1.msra.mxu0 0.0
  %5751 = vmatprep.subr.mxu0 0.0
  %5752 = vmatpush1.msra.mxu0 0.0
  %5753 = vmatprep.subr.mxu0 0.0
  %5754 = vmatpush1.msra.mxu0 0.0
  %5755 = vmatprep.subr.mxu0 0.0
  %5756 = vmatpush1.msra.mxu0 0.0
  %5757 = vmatprep.subr.mxu0 0.0
  %5758 = vmatpush1.msra.mxu0 0.0
  %5759 = vmatprep.subr.mxu0 0.0
  %5760 = vmatpush1.msra.mxu0 0.0
  %5761 = vmatprep.subr.mxu0 0.0
  %5762 = vmatpush1.msra.mxu0 0.0
  %5763 = vmatprep.subr.mxu0 0.0
  %5764 = vmatpush1.msra.mxu0 0.0
  %5765 = vmatprep.subr.mxu0 0.0
  %5766 = vmatpush1.msra.mxu0 0.0
  %5767 = vmatprep.subr.mxu0 0.0
  %5768 = vmatpush1.msra.mxu0 0.0
  %5769 = vmatprep.subr.mxu0 0.0
  %5770 = vmatpush1.msra.mxu0 0.0
  %5771 = vmatprep.subr.mxu0 0.0
  %5772 = vmatpush1.msra.mxu0 0.0
  %5773 = vmatprep.subr.mxu0 0.0
  %5774 = vmatpush1.msra.mxu0 0.0
  %5775 = vmatprep.subr.mxu0 0.0
  %5776 = vmatpush1.msra.mxu0 0.0
  %5777 = vmatprep.subr.mxu0 0.0
  %5778 = vmatpush1.msra.mxu0 0.0
  %5779 = vmatprep.subr.mxu0 0.0
  %5780 = vmatpush1.msra.mxu0 0.0
  %5781 = vmatprep.subr.mxu0 0.0
  %5782 = vmatpush1.msra.mxu0 0.0
  %5783 = vmatprep.subr.mxu0 0.0
  %5784 = vmatpush1.msra.mxu0 0.0
  %5785 = vmatprep.subr.mxu0 0.0
  %5786 = vmatpush1.msra.mxu0 0.0
  %5787 = vmatprep.mubr.f32.mxu0 0.0
  %5788 = vmatmul.mubr.f32.gmra.mrb[0].mxu0 %v5717
  %v5789 = vpop.f32.mrb[0].mxu0
  %v5790 = vadd.f32 0.0, %v5789
  %v5791 = vpop.f32.mrb[0].mxu0
  %5792 = vdwg.mxu0
  %v5794 = vlaneseq
  %v5795 = vshrl.u32 %v5794, 7
  %v5796 = vsub.s32 0, %v5795
  %v5797 = vrot.slane %v141, %v5796
  %vm5799 = vcmask 416768
  %v5801 = vsel %vm5799, %v5790, 0
  %vm5803 = vcmask 1042432
  %v5805 = vsel %vm5803, %v140, 0
  %5807 = vmatprep.subr.mxu0 0.0
  %5808 = vmatpush1.msra.mxu0 %v134
  %5809 = vmatprep.subr.mxu0 0.0
  %5810 = vmatpush1.msra.mxu0 %v135
  %5811 = vmatprep.subr.mxu0 0.0
  %5812 = vmatpush1.msra.mxu0 %v136
  %5813 = vmatprep.subr.mxu0 0.0
  %5814 = vmatpush1.msra.mxu0 %v137
  %5815 = vmatprep.subr.mxu0 0.0
  %5816 = vmatpush1.msra.mxu0 %v138
  %5817 = vmatprep.subr.mxu0 0.0
  %5818 = vmatpush1.msra.mxu0 %v139
  %5819 = vmatprep.subr.mxu0 0.0
  %5820 = vmatpush1.msra.mxu0 %v5805
  %5821 = vmatprep.subr.mxu0 0.0
  %5822 = vmatpush1.msra.mxu0 0.0
  %5823 = vmatprep.subr.mxu0 0.0
  %5824 = vmatpush1.msra.mxu0 0.0
  %5825 = vmatprep.subr.mxu0 0.0
  %5826 = vmatpush1.msra.mxu0 0.0
  %5827 = vmatprep.subr.mxu0 0.0
  %5828 = vmatpush1.msra.mxu0 0.0
  %5829 = vmatprep.subr.mxu0 0.0
  %5830 = vmatpush1.msra.mxu0 0.0
  %5831 = vmatprep.subr.mxu0 0.0
  %5832 = vmatpush1.msra.mxu0 0.0
  %5833 = vmatprep.subr.mxu0 0.0
  %5834 = vmatpush1.msra.mxu0 0.0
  %5835 = vmatprep.subr.mxu0 0.0
  %5836 = vmatpush1.msra.mxu0 0.0
  %5837 = vmatprep.subr.mxu0 0.0
  %5838 = vmatpush1.msra.mxu0 0.0
  %5839 = vmatprep.subr.mxu0 0.0
  %5840 = vmatpush1.msra.mxu0 0.0
  %5841 = vmatprep.subr.mxu0 0.0
  %5842 = vmatpush1.msra.mxu0 0.0
  %5843 = vmatprep.subr.mxu0 0.0
  %5844 = vmatpush1.msra.mxu0 0.0
  %5845 = vmatprep.subr.mxu0 0.0
  %5846 = vmatpush1.msra.mxu0 0.0
  %5847 = vmatprep.subr.mxu0 0.0
  %5848 = vmatpush1.msra.mxu0 0.0
  %5849 = vmatprep.subr.mxu0 0.0
  %5850 = vmatpush1.msra.mxu0 0.0
  %5851 = vmatprep.subr.mxu0 0.0
  %5852 = vmatpush1.msra.mxu0 0.0
  %5853 = vmatprep.subr.mxu0 0.0
  %5854 = vmatpush1.msra.mxu0 0.0
  %5855 = vmatprep.subr.mxu0 0.0
  %5856 = vmatpush1.msra.mxu0 0.0
  %5857 = vmatprep.subr.mxu0 0.0
  %5858 = vmatpush1.msra.mxu0 0.0
  %5859 = vmatprep.subr.mxu0 0.0
  %5860 = vmatpush1.msra.mxu0 0.0
  %5861 = vmatprep.subr.mxu0 0.0
  %5862 = vmatpush1.msra.mxu0 0.0
  %5863 = vmatprep.subr.mxu0 0.0
  %5864 = vmatpush1.msra.mxu0 0.0
  %5865 = vmatprep.subr.mxu0 0.0
  %5866 = vmatpush1.msra.mxu0 0.0
  %5867 = vmatprep.subr.mxu0 0.0
  %5868 = vmatpush1.msra.mxu0 0.0
  %5869 = vmatprep.subr.mxu0 0.0
  %5870 = vmatpush1.msra.mxu0 0.0
  %5871 = vmatprep.mubr.f32.mxu0 0.0
  %5872 = vmatmul.mubr.f32.gmra.mrb[0].mxu0 %v5801
  %v5873 = vpop.f32.mrb[0].mxu0
  %v5874 = vadd.f32 %v5797, %v5873
  %v5875 = vpop.f32.mrb[0].mxu0
  %5876 = vdwg.mxu0
  %5877 = vst.msk [vmem:[%s13] sm:$0xff] %vm319, %v5874
  // Predicated region
  $region54: #{get_latent.1} parent=0 // pred_check
    _
  $region55: #{get_latent.1} parent=0 // pred_check_branch
    %5879 = sbr.rel (0) target = $region57
  $region56: #{get_latent.1} parent=0 // pred_region
    _
  $region57: #{get_latent.1} parent=0 // pred_fallthru
    _
  // Predicated region
  $region58: #{get_latent.1} parent=0 // pred_check
    _
  $region59: #{get_latent.1} parent=0 // pred_check_branch
    %5881 = sbr.rel (0) target = $region61
  $region60: #{get_latent.1} parent=0 // pred_region
    _
  $region61: #{get_latent.1} parent=0 // pred_fallthru
    _

</llo_original>
